<compile_context>
chip_gen: v5e
topology: v5e:2x2
jax: 0.10.0
libtpu: 0.0.40
codegen_flags: <defaults>
</compile_context>

<pallas_src>
import numpy as np
import jax
import jax.numpy as jnp
from jax.experimental import pallas as pl
from jax.experimental.pallas import tpu as pltpu


# --------------------------------------------------------------------------
# Model definition (yolov3-style mini cfg, embedded in-script)
# --------------------------------------------------------------------------
IMG = 16
BN_EPS = 1e-4          # matches the cfg's BatchNorm2d(eps=0.0001)
NUM_CLASSES = 4
NA = 3                 # anchors per head
NO = NUM_CLASSES + 5   # x, y, w, h, obj, classes
YOLO_STRIDES = [32, 16, 8]   # stride[yolo_index], as constructed in the reference

ANCHORS = np.array([[10., 13.], [16., 30.], [33., 23.],
                    [30., 61.], [62., 45.], [59., 119.]], dtype=np.float32)

MODULE_DEFINES = [
    {'type': 'convolutional', 'batch_normalize': 1, 'filters': 8,  'size': 3, 'stride': 1, 'pad': 1, 'activation': 'leaky'},   # 0: 16x16x8
    {'type': 'convolutional', 'batch_normalize': 1, 'filters': 16, 'size': 3, 'stride': 2, 'pad': 1, 'activation': 'leaky'},   # 1: 8x8x16
    {'type': 'convolutional', 'batch_normalize': 1, 'filters': 8,  'size': 1, 'stride': 1, 'pad': 1, 'activation': 'leaky'},   # 2: 8x8x8
    {'type': 'convolutional', 'batch_normalize': 1, 'filters': 16, 'size': 3, 'stride': 1, 'pad': 1, 'activation': 'leaky'},   # 3: 8x8x16
    {'type': 'shortcut', 'from': [-3], 'activation': 'linear'},                                                                # 4: 8x8x16
    {'type': 'convolutional', 'batch_normalize': 1, 'filters': 32, 'size': 3, 'stride': 2, 'pad': 1, 'activation': 'leaky'},   # 5: 4x4x32
    {'type': 'convolutional', 'batch_normalize': 1, 'filters': 32, 'size': 3, 'stride': 1, 'pad': 1, 'activation': 'leaky'},   # 6: 4x4x32
    {'type': 'convolutional', 'batch_normalize': 0, 'filters': 27, 'size': 1, 'stride': 1, 'pad': 1, 'activation': 'linear'},  # 7: 4x4x27
    {'type': 'yolo', 'mask': [0, 1, 2], 'classes': NUM_CLASSES},                                                               # 8
    {'type': 'route', 'layers': [-3]},                                                                                         # 9: 4x4x32
    {'type': 'convolutional', 'batch_normalize': 1, 'filters': 16, 'size': 1, 'stride': 1, 'pad': 1, 'activation': 'leaky'},   # 10: 4x4x16
    {'type': 'upsample', 'stride': 2},                                                                                         # 11: 8x8x16
    {'type': 'route', 'layers': [-1, -8]},                                                                                     # 12: 8x8x32
    {'type': 'convolutional', 'batch_normalize': 1, 'filters': 16, 'size': 3, 'stride': 1, 'pad': 1, 'activation': 'leaky'},   # 13: 8x8x16
    {'type': 'convolutional', 'batch_normalize': 0, 'filters': 27, 'size': 1, 'stride': 1, 'pad': 1, 'activation': 'linear'},  # 14: 8x8x27
    {'type': 'yolo', 'mask': [3, 4, 5], 'classes': NUM_CLASSES},                                                               # 15
]

NUM_CONV = sum(1 for m in MODULE_DEFINES if m['type'] == 'convolutional')


def _yolo_grid_sizes(img):
    """Static walk of the graph to find each YOLO head's (ny, nx)."""
    h = w = img
    sizes, heads = [], []
    for li, m in enumerate(MODULE_DEFINES):
        t = m['type']
        if t == 'convolutional':
            if m['stride'] == 2:
                h //= 2
                w //= 2
        elif t == 'upsample':
            h *= m['stride']
            w *= m['stride']
        elif t == 'route':
            l0 = m['layers'][0]
            h, w = sizes[li + l0 if l0 < 0 else l0]
        elif t == 'yolo':
            heads.append((h, w))
        sizes.append((h, w))
    return heads


# --------------------------------------------------------------------------
# In-kernel helpers
# --------------------------------------------------------------------------
def _roll_lanes(x, off):
    """Circular lane shift: y[:, m] = x[:, (m + off) % M].  off is a static int.

    Uses the XLU rotate (pltpu.roll, jnp.roll semantics) when the lane dim is a
    multiple of 128; falls back to an equivalent slice+concat for tiny lane dims.
    """
    M = x.shape[-1]
    s = (-off) % M
    if s == 0:
        return x
    if M % 128 == 0:
        return pltpu.roll(x, s, 1)
    return jnp.concatenate([x[:, M - s:], x[:, :M - s]], axis=1)


def _conv_layer(x, w_ref, b_ref, k, stride, H, W, leaky, mask_ref, down_ref):
    """x: [Cin, M] f32 (M = N*H*W, batch folded on lanes).
    w_ref: [Cout, k*k*Cin] bf16 (BN scale pre-folded, tap-major);
    b_ref: [Cout, 1] f32; mask_ref: [9, M] f32 boundary masks (3x3 convs only);
    down_ref: [M, M/4] bf16 stride-2 selector (precomputed, batch-block-diagonal).

    kxk same-padded conv: build the 9 shifted taps with roll+mask, stack them along
    sublanes and contract with ONE MXU matmul (contraction depth k*k*Cin)."""
    if k == 1:
        taps = x
    else:
        parts = []
        for di in range(k):
            for dj in range(k):
                dy, dx = di - k // 2, dj - k // 2
                if dy == 0 and dx == 0:
                    parts.append(x)
                else:
                    t = di * k + dj
                    parts.append(_roll_lanes(x, dy * W + dx) * mask_ref[t:t + 1, :])
        taps = jnp.concatenate(parts, axis=0)            # [k*k*Cin, M]
    acc = jnp.dot(w_ref[...], taps.astype(jnp.bfloat16),
                  preferred_element_type=jnp.float32)    # [Cout, M] f32
    if stride == 2:
        # Pure column selection (even rows / even cols) as a tiny selector matmul.
        acc = jnp.dot(acc.astype(jnp.bfloat16), down_ref[...],
                      preferred_element_type=jnp.float32)
    y = acc + b_ref[...]
    if leaky:
        y = jnp.where(y > 0.0, y, 0.1 * y)
    return y


def _yolo_decode(p, whmask, addgrid, mrow):
    """p: [na*no, M] (row r = a*no + c, col m = b*ny*nx + i*nx + j).
    whmask [na*no,1]: 1 on w/h rows.  addgrid [na*no,M]: grid x/y on the x/y rows,
    0 elsewhere.  mrow [na*no,1]: stride on x/y rows, anchor on w/h rows, 1 else.

    io = where(wh, exp(p), sigmoid(p)+grid) * mrow  (exp only fed w/h logits)."""
    sig = jax.nn.sigmoid(p)
    is_wh = whmask > 0.5
    ew = jnp.exp(jnp.where(is_wh, p, 0.0))
    return jnp.where(is_wh, ew, sig + addgrid) * mrow


# --------------------------------------------------------------------------
# The fused whole-network kernel (single invocation, everything in VMEM)
# --------------------------------------------------------------------------
def _darknet_fused_kernel(*refs):
    x_ref = refs[0]
    conv_refs = refs[1:1 + 2 * NUM_CONV]
    base = 1 + 2 * NUM_CONV
    mask_by_h = {16: refs[base + 0], 8: refs[base + 1], 4: refs[base + 2]}
    down_by_h = {16: refs[base + 3], 8: refs[base + 4]}
    up_by_h = {4: refs[base + 5]}
    whmask = refs[base + 6][...]
    head_consts = ((refs[base + 7], refs[base + 8]),
                   (refs[base + 9], refs[base + 10]))
    o = refs[base + 11: base + 15]
    head_outs = ((o[0], o[1]), (o[2], o[3]))

    x = x_ref[...]               # [Cin, N*H*W] (batch folded on lanes)
    H = W = IMG
    outs = []
    ci = 0
    yi = 0
    for li, mdef in enumerate(MODULE_DEFINES):
        t = mdef['type']
        if t == 'convolutional':
            w_ref = conv_refs[2 * ci]
            b_ref = conv_refs[2 * ci + 1]
            ci += 1
            k, s = mdef['size'], mdef['stride']
            x = _conv_layer(x, w_ref, b_ref, k, s, H, W,
                            mdef['activation'] == 'leaky',
                            mask_by_h[H] if k > 1 else None,
                            down_by_h[H] if s == 2 else None)
            if s == 2:
                H //= 2
                W //= 2
        elif t == 'shortcut':
            x = x + outs[li + mdef['from'][0]][0]
        elif t == 'route':
            feats = [outs[li + l if l < 0 else l] for l in mdef['layers']]
            H, W = feats[0][1]
            parts = [f[0] for f in feats]
            x = parts[0] if len(parts) == 1 else jnp.concatenate(parts, axis=0)
        elif t == 'upsample':
            s = mdef['stride']
            x = jnp.dot(x.astype(jnp.bfloat16), up_by_h[H][...],
                        preferred_element_type=jnp.float32)
            H *= s
            W *= s
        elif t == 'yolo':
            p_out, io_out = head_outs[yi]
            a_ref, mr_ref = head_consts[yi]
            yi += 1
            p_out[...] = x
            io_out[...] = _yolo_decode(x, whmask, a_ref[...], mr_ref[...])
        outs.append((x, (H, W)))


# --------------------------------------------------------------------------
# Host wrappers
# --------------------------------------------------------------------------
def darknet_pallas_forward(x2d, conv_params, consts):
    n = x2d.shape[1] // (IMG * IMG)
    (ny1, nx1), (ny2, nx2) = _yolo_grid_sizes(IMG)
    r = NA * NO

    flat = [x2d]
    for w_flat, bcol in conv_params:
        flat += [w_flat, bcol]
    flat += list(consts)

    out_shape = (
        jax.ShapeDtypeStruct((r, n * ny1 * nx1), jnp.float32),   # raw p head 0
        jax.ShapeDtypeStruct((r, n * ny1 * nx1), jnp.float32),   # decoded io head 0
        jax.ShapeDtypeStruct((r, n * ny2 * nx2), jnp.float32),   # raw p head 1
        jax.ShapeDtypeStruct((r, n * ny2 * nx2), jnp.float32),   # decoded io head 1
    )
    # grid=() : single invocation, every operand is a full-array VMEM block.
    return pl.pallas_call(_darknet_fused_kernel, out_shape=out_shape)(*flat)


def forward_once(x_nchw, conv_params, consts):
    """Darknet.forward_once, eval mode: returns (cat(io, dim=1), tuple(raw p))."""
    n, c = x_nchw.shape[0], x_nchw.shape[1]
    # NCHW -> [C, N*H*W]  (channels on sublanes, batch folded onto lanes)
    x2d = jnp.transpose(x_nchw.astype(jnp.float32), (1, 0, 2, 3)).reshape(c, n * IMG * IMG)
    (ny1, nx1), (ny2, nx2) = _yolo_grid_sizes(IMG)
    p1, io1, p2, io2 = darknet_pallas_forward(x2d, conv_params, consts)

    def to_torch_view(t, ny, nx):
        # [na*no, n*ny*nx] -> (n, na, ny, nx, no)
        return t.reshape(NA, NO, n, ny, nx).transpose(2, 0, 3, 4, 1)

    p1v = to_torch_view(p1, ny1, nx1)
    p2v = to_torch_view(p2, ny2, nx2)
    io = jnp.concatenate([to_torch_view(io1, ny1, nx1).reshape(n, -1, NO),
                          to_torch_view(io2, ny2, nx2).reshape(n, -1, NO)], axis=1)
    return io, (p1v, p2v)


# --------------------------------------------------------------------------
# Parameter / constant construction (all precomputed on host, once)
# --------------------------------------------------------------------------
def init_params(key):
    """Deterministic synthetic parameters.  BatchNorm (eval mode, running stats)
    is pre-fused into per-channel scale/bias; bias-only convs use scale=1."""
    params = []
    output_filters = [3]
    for m in MODULE_DEFINES:
        if m['type'] == 'convolutional':
            cin, cout, k = output_filters[-1], m['filters'], m['size']
            key, wk, gk, bk, mk, vk = jax.random.split(key, 6)
            w = 0.1 * jax.random.normal(wk, (cout, cin, k, k), jnp.float32)
            if m['batch_normalize']:
                gamma = 1.0 + 0.1 * jax.random.normal(gk, (cout,), jnp.float32)
                beta = 0.1 * jax.random.normal(bk, (cout,), jnp.float32)
                mean = 0.1 * jax.random.normal(mk, (cout,), jnp.float32)
                var = 1.0 + jnp.abs(jax.random.normal(vk, (cout,), jnp.float32))
                scale = gamma / jnp.sqrt(var + BN_EPS)
                bias = beta - mean * scale
            else:
                scale = jnp.ones((cout,), jnp.float32)
                bias = 0.1 * jax.random.normal(bk, (cout,), jnp.float32)
            params.append({'w': w, 'scale': scale, 'bias': bias})
            output_filters.append(cout)
        elif m['type'] == 'route':
            filters = sum(output_filters[l + 1 if l > 0 else l] for l in m['layers'])
            params.append(None)
            output_filters.append(filters)
        else:  # shortcut / upsample / yolo
            params.append(None)
            output_filters.append(output_filters[-1])
    return params


def prepare_kernel_params(params):
    """Fold BN scale into the weights and flatten them tap-major to
    [Cout, k*k*Cin] bf16 (matches the in-kernel tap stacking order)."""
    conv_params = []
    for m, p in zip(MODULE_DEFINES, params):
        if m['type'] != 'convolutional':
            continue
        w, scale, bias = p['w'], p['scale'], p['bias']
        cout, cin, k, _ = w.shape
        w_fold = w * scale[:, None, None, None]
        w_flat = jnp.transpose(w_fold, (0, 2, 3, 1)).reshape(cout, k * k * cin)
        conv_params.append((w_flat.astype(jnp.bfloat16),
                            bias.reshape(cout, 1).astype(jnp.float32)))
    return conv_params


def make_constants(n):
    """Host-precomputed kernel constants (no in-kernel iota/matrix construction):
    3x3 boundary masks per geometry, stride-2 / upsample selector matrices
    (batch-block-diagonal for the batch-on-lanes layout), and YOLO decode rows."""
    def tap_masks(H, W):
        HW = H * W
        cols = np.arange(n * HW)
        gi = (cols % HW) // W
        gj = cols % W
        m = np.zeros((9, n * HW), np.float32)
        for di in range(3):
            for dj in range(3):
                dy, dx = di - 1, dj - 1
                m[di * 3 + dj] = ((gi + dy >= 0) & (gi + dy < H) &
                                  (gj + dx >= 0) & (gj + dx < W)).astype(np.float32)
        return jnp.asarray(m)

    def down_matrix(H, W):
        HW, Ho, Wo = H * W, H // 2, W // 2
        HWo = Ho * Wo
        D = np.zeros((n * HW, n * HWo), np.float32)
        for b in range(n):
            for i in range(0, H, 2):
                for j in range(0, W, 2):
                    D[b * HW + i * W + j, b * HWo + (i // 2) * Wo + (j // 2)] = 1.0
        return jnp.asarray(D, dtype=jnp.bfloat16)

    def up_matrix(H, W, s):
        HW, Ho, Wo = H * W, H * s, W * s
        HWo = Ho * Wo
        U = np.zeros((n * HW, n * HWo), np.float32)
        for b in range(n):
            for oi in range(Ho):
                for oj in range(Wo):
                    U[b * HW + (oi // s) * W + (oj // s), b * HWo + oi * Wo + oj] = 1.0
        return jnp.asarray(U, dtype=jnp.bfloat16)

    def head_consts(mask_ids, ny, nx, stride):
        HW = ny * nx
        cols = np.arange(n * HW)
        gi = ((cols % HW) // nx).astype(np.float32)
        gj = (cols % nx).astype(np.float32)
        A = np.zeros((NA * NO, n * HW), np.float32)
        Mrow = np.ones((NA * NO, 1), np.float32)
        for a, mi in enumerate(mask_ids):
            A[a * NO + 0] = gj
            A[a * NO + 1] = gi
            Mrow[a * NO + 0, 0] = float(stride)
            Mrow[a * NO + 1, 0] = float(stride)
            Mrow[a * NO + 2, 0] = float(ANCHORS[mi, 0])
            Mrow[a * NO + 3, 0] = float(ANCHORS[mi, 1])
        return jnp.asarray(A), jnp.asarray(Mrow)

    whmask = np.zeros((NA * NO, 1), np.float32)
    for a in range(NA):
        whmask[a * NO + 2, 0] = 1.0
        whmask[a * NO + 3, 0] = 1.0

    (ny1, nx1), (ny2, nx2) = _yolo_grid_sizes(IMG)
    yolo_masks = [m['mask'] for m in MODULE_DEFINES if m['type'] == 'yolo']
    A1, M1 = head_consts(yolo_masks[0], ny1, nx1, YOLO_STRIDES[0])
    A2, M2 = head_consts(yolo_masks[1], ny2, nx2, YOLO_STRIDES[1])

    return [tap_masks(16, 16), tap_masks(8, 8), tap_masks(4, 4),
            down_matrix(16, 16), down_matrix(8, 8), up_matrix(4, 4, 2),
            jnp.asarray(whmask), A1, M1, A2, M2]


# --------------------------------------------------------------------------
# Plain-JAX reference (host-side, for the numerical self-check only)
# --------------------------------------------------------------------------
def reference_forward(x_nchw, params):
    x = x_nchw.astype(jnp.float32)
    outs, yolo = [], []
    yi = 0
    for i, m in enumerate(MODULE_DEFINES):
        t = m['type']
        if t == 'convolutional':
            p = params[i]
            k, s = m['size'], m['stride']
            pad = k // 2 if m['pad'] else 0
            y = jax.lax.conv_general_dilated(
                x, p['w'], window_strides=(s, s),
                padding=[(pad, pad), (pad, pad)],
                dimension_numbers=('NCHW', 'OIHW', 'NCHW'))
            y = y * p['scale'][None, :, None, None] + p['bias'][None, :, None, None]
            if m['activation'] == 'leaky':
                y = jnp.where(y > 0, y, 0.1 * y)
            x = y
        elif t == 'shortcut':
            x = x + outs[i + m['from'][0]]
        elif t == 'route':
            fs = [outs[i + l if l < 0 else l] for l in m['layers']]
            x = fs[0] if len(fs) == 1 else jnp.concatenate(fs, axis=1)
        elif t == 'upsample':
            s = m['stride']
            x = jnp.repeat(jnp.repeat(x, s, axis=2), s, axis=3)
        elif t == 'yolo':
            bs, _, ny, nx = x.shape
            stride = float(YOLO_STRIDES[yi])
            yi += 1
            anchors = jnp.asarray(ANCHORS[np.asarray(m['mask'])])
            p_raw = x.reshape(bs, NA, NO, ny, nx).transpose(0, 1, 3, 4, 2)
            yv, xv = jnp.meshgrid(jnp.arange(ny, dtype=jnp.float32),
                                  jnp.arange(nx, dtype=jnp.float32), indexing="ij")
            grid = jnp.stack([xv, yv], -1)[None, None]
            sig = jax.nn.sigmoid(p_raw)
            xy = (sig[..., :2] + grid) * stride
            wh = jnp.exp(p_raw[..., 2:4]) * anchors[None, :, None, None, :]
            io = jnp.concatenate([xy, wh, sig[..., 4:]], axis=-1).reshape(bs, -1, NO)
            yolo.append((io, p_raw))
        outs.append(x)
    ios, ps = zip(*yolo)
    return jnp.concatenate(ios, 1), ps


# --------------------------------------------------------------------------
if __name__ == "__main__":
    key = jax.random.PRNGKey(0)
    pkey, xkey = jax.random.split(key)
    params = init_params(pkey)
    conv_params = prepare_kernel_params(params)

    n = 2
    consts = make_constants(n)

    # PyTorch-style NCHW input: batch=2, channels=3, spatial=16x16
    x = jax.random.normal(xkey, (n, 3, IMG, IMG), jnp.float32)

    fwd = jax.jit(lambda xx: forward_once(xx, conv_params, consts))
    io, (p1, p2) = fwd(x)
    io = jax.block_until_ready(io)

    # head1: 3 anchors * 4*4 cells = 48, head2: 3 * 8*8 = 192 -> 240 boxes, no = 9
    assert io.shape == (n, 240, 9), io.shape
    assert p1.shape == (n, 3, 4, 4, 9) and p2.shape == (n, 3, 8, 8, 9)
    assert bool(jnp.all(jnp.isfinite(io)))

    # Numerical self-check against a plain-JAX reference of the same graph.
    # Loose tolerances: the kernel uses bf16 weights / bf16 MXU passes while the
    # reference runs XLA's default-precision f32 convolutions.
    io_ref, (p1_ref, p2_ref) = jax.jit(lambda xx: reference_forward(xx, params))(x)

    def close(a, b, rtol, atol):
        return bool(jnp.all(jnp.abs(a - b) <= atol + rtol * jnp.abs(b)))

    assert close(p1, p1_ref, 5e-2, 1e-1), "raw head-0 mismatch"
    assert close(p2, p2_ref, 5e-2, 1e-1), "raw head-1 mismatch"
    assert close(io, io_ref, 8e-2, 1.0), "decoded output mismatch"

    print("KERNEL_OK")
</pallas_src>

<mosaic_0001>
module attributes {stable_mosaic.version = 11 : i64} {
  func.func @_darknet_fused_kernel(%arg0: memref<3x512xf32, #tpu.memory_space<vmem>>, %arg1: memref<8x27xbf16, #tpu.memory_space<vmem>>, %arg2: memref<8x1xf32, #tpu.memory_space<vmem>>, %arg3: memref<16x72xbf16, #tpu.memory_space<vmem>>, %arg4: memref<16x1xf32, #tpu.memory_space<vmem>>, %arg5: memref<8x16xbf16, #tpu.memory_space<vmem>>, %arg6: memref<8x1xf32, #tpu.memory_space<vmem>>, %arg7: memref<16x72xbf16, #tpu.memory_space<vmem>>, %arg8: memref<16x1xf32, #tpu.memory_space<vmem>>, %arg9: memref<32x144xbf16, #tpu.memory_space<vmem>>, %arg10: memref<32x1xf32, #tpu.memory_space<vmem>>, %arg11: memref<32x288xbf16, #tpu.memory_space<vmem>>, %arg12: memref<32x1xf32, #tpu.memory_space<vmem>>, %arg13: memref<27x32xbf16, #tpu.memory_space<vmem>>, %arg14: memref<27x1xf32, #tpu.memory_space<vmem>>, %arg15: memref<16x32xbf16, #tpu.memory_space<vmem>>, %arg16: memref<16x1xf32, #tpu.memory_space<vmem>>, %arg17: memref<16x288xbf16, #tpu.memory_space<vmem>>, %arg18: memref<16x1xf32, #tpu.memory_space<vmem>>, %arg19: memref<27x16xbf16, #tpu.memory_space<vmem>>, %arg20: memref<27x1xf32, #tpu.memory_space<vmem>>, %arg21: memref<9x512xf32, #tpu.memory_space<vmem>>, %arg22: memref<9x128xf32, #tpu.memory_space<vmem>>, %arg23: memref<9x32xf32, #tpu.memory_space<vmem>>, %arg24: memref<512x128xbf16, #tpu.memory_space<vmem>>, %arg25: memref<128x32xbf16, #tpu.memory_space<vmem>>, %arg26: memref<32x128xbf16, #tpu.memory_space<vmem>>, %arg27: memref<27x1xf32, #tpu.memory_space<vmem>>, %arg28: memref<27x32xf32, #tpu.memory_space<vmem>>, %arg29: memref<27x1xf32, #tpu.memory_space<vmem>>, %arg30: memref<27x128xf32, #tpu.memory_space<vmem>>, %arg31: memref<27x1xf32, #tpu.memory_space<vmem>>, %arg32: memref<27x32xf32, #tpu.memory_space<vmem>>, %arg33: memref<27x32xf32, #tpu.memory_space<vmem>>, %arg34: memref<27x128xf32, #tpu.memory_space<vmem>>, %arg35: memref<27x128xf32, #tpu.memory_space<vmem>>) attributes {dimension_semantics = [], scalar_prefetch = 0 : i64, scratch_operands = 0 : i64, tpu.core_type = #tpu.core_type<tc>} {
    %c0 = arith.constant 0 : index
    %c0_0 = arith.constant 0 : index
    %0 = vector.load %arg27[%c0, %c0_0] : memref<27x1xf32, #tpu.memory_space<vmem>>, vector<27x1xf32>
    %c0_1 = arith.constant 0 : index
    %c0_2 = arith.constant 0 : index
    %1 = vector.load %arg0[%c0_1, %c0_2] : memref<3x512xf32, #tpu.memory_space<vmem>>, vector<3x512xf32>
    %c17_i32 = arith.constant 17 : i32
    %2 = tpu.dynamic_rotate %1 by %c17_i32 dim 1 : vector<3x512xf32>, i32 -> vector<3x512xf32>
    %c0_3 = arith.constant 0 : index
    %c0_4 = arith.constant 0 : index
    %3 = vector.load %arg21[%c0_3, %c0_4] : memref<9x512xf32, #tpu.memory_space<vmem>>, vector<1x512xf32>
    %4 = vector.broadcast %3 : vector<1x512xf32> to vector<3x512xf32>
    %5 = arith.mulf %2, %4 : vector<3x512xf32>
    %c16_i32 = arith.constant 16 : i32
    %6 = tpu.dynamic_rotate %1 by %c16_i32 dim 1 : vector<3x512xf32>, i32 -> vector<3x512xf32>
    %c1 = arith.constant 1 : index
    %c0_5 = arith.constant 0 : index
    %7 = vector.load %arg21[%c1, %c0_5] : memref<9x512xf32, #tpu.memory_space<vmem>>, vector<1x512xf32>
    %8 = vector.broadcast %7 : vector<1x512xf32> to vector<3x512xf32>
    %9 = arith.mulf %6, %8 : vector<3x512xf32>
    %c15_i32 = arith.constant 15 : i32
    %10 = tpu.dynamic_rotate %1 by %c15_i32 dim 1 : vector<3x512xf32>, i32 -> vector<3x512xf32>
    %c2 = arith.constant 2 : index
    %c0_6 = arith.constant 0 : index
    %11 = vector.load %arg21[%c2, %c0_6] : memref<9x512xf32, #tpu.memory_space<vmem>>, vector<1x512xf32>
    %12 = vector.broadcast %11 : vector<1x512xf32> to vector<3x512xf32>
    %13 = arith.mulf %10, %12 : vector<3x512xf32>
    %c1_i32 = arith.constant 1 : i32
    %14 = tpu.dynamic_rotate %1 by %c1_i32 dim 1 : vector<3x512xf32>, i32 -> vector<3x512xf32>
    %c3 = arith.constant 3 : index
    %c0_7 = arith.constant 0 : index
    %15 = vector.load %arg21[%c3, %c0_7] : memref<9x512xf32, #tpu.memory_space<vmem>>, vector<1x512xf32>
    %16 = vector.broadcast %15 : vector<1x512xf32> to vector<3x512xf32>
    %17 = arith.mulf %14, %16 : vector<3x512xf32>
    %c511_i32 = arith.constant 511 : i32
    %18 = tpu.dynamic_rotate %1 by %c511_i32 dim 1 : vector<3x512xf32>, i32 -> vector<3x512xf32>
    %c5 = arith.constant 5 : index
    %c0_8 = arith.constant 0 : index
    %19 = vector.load %arg21[%c5, %c0_8] : memref<9x512xf32, #tpu.memory_space<vmem>>, vector<1x512xf32>
    %20 = vector.broadcast %19 : vector<1x512xf32> to vector<3x512xf32>
    %21 = arith.mulf %18, %20 : vector<3x512xf32>
    %c497_i32 = arith.constant 497 : i32
    %22 = tpu.dynamic_rotate %1 by %c497_i32 dim 1 : vector<3x512xf32>, i32 -> vector<3x512xf32>
    %c6 = arith.constant 6 : index
    %c0_9 = arith.constant 0 : index
    %23 = vector.load %arg21[%c6, %c0_9] : memref<9x512xf32, #tpu.memory_space<vmem>>, vector<1x512xf32>
    %24 = vector.broadcast %23 : vector<1x512xf32> to vector<3x512xf32>
    %25 = arith.mulf %22, %24 : vector<3x512xf32>
    %c496_i32 = arith.constant 496 : i32
    %26 = tpu.dynamic_rotate %1 by %c496_i32 dim 1 : vector<3x512xf32>, i32 -> vector<3x512xf32>
    %c7 = arith.constant 7 : index
    %c0_10 = arith.constant 0 : index
    %27 = vector.load %arg21[%c7, %c0_10] : memref<9x512xf32, #tpu.memory_space<vmem>>, vector<1x512xf32>
    %28 = vector.broadcast %27 : vector<1x512xf32> to vector<3x512xf32>
    %29 = arith.mulf %26, %28 : vector<3x512xf32>
    %c495_i32 = arith.constant 495 : i32
    %30 = tpu.dynamic_rotate %1 by %c495_i32 dim 1 : vector<3x512xf32>, i32 -> vector<3x512xf32>
    %c8 = arith.constant 8 : index
    %c0_11 = arith.constant 0 : index
    %31 = vector.load %arg21[%c8, %c0_11] : memref<9x512xf32, #tpu.memory_space<vmem>>, vector<1x512xf32>
    %32 = vector.broadcast %31 : vector<1x512xf32> to vector<3x512xf32>
    %33 = arith.mulf %30, %32 : vector<3x512xf32>
    %34 = tpu.concatenate %5, %9, %13, %17, %1, %21, %25, %29, %33 in 0 : vector<3x512xf32>, vector<3x512xf32>, vector<3x512xf32>, vector<3x512xf32>, vector<3x512xf32>, vector<3x512xf32>, vector<3x512xf32>, vector<3x512xf32>, vector<3x512xf32> -> vector<27x512xf32>
    %c0_12 = arith.constant 0 : index
    %c0_13 = arith.constant 0 : index
    %35 = vector.load %arg1[%c0_12, %c0_13] : memref<8x27xbf16, #tpu.memory_space<vmem>>, vector<8x27xbf16>
    %36 = arith.truncf %34 : vector<27x512xf32> to vector<27x512xbf16>
    %cst = arith.constant dense<0.000000e+00> : vector<8x512xf32>
    %37 = tpu.matmul %35, %36, %cst {dimension_numbers = #tpu.dot_dimension_numbers<[1], [0], [0], [1], [0, 0, 1, 1], [], []>} : vector<8x27xbf16>, vector<27x512xbf16>, vector<8x512xf32> -> vector<8x512xf32>
    %c0_14 = arith.constant 0 : index
    %c0_15 = arith.constant 0 : index
    %38 = vector.load %arg2[%c0_14, %c0_15] : memref<8x1xf32, #tpu.memory_space<vmem>>, vector<8x1xf32>
    %39 = vector.broadcast %38 : vector<8x1xf32> to vector<8x512xf32>
    %40 = arith.addf %37, %39 : vector<8x512xf32>
    %cst_16 = arith.constant 0.000000e+00 : f32
    %41 = vector.broadcast %cst_16 : f32 to vector<8x512xf32>
    %42 = arith.cmpf ogt, %40, %41 : vector<8x512xf32>
    %cst_17 = arith.constant 1.000000e-01 : f32
    %43 = vector.broadcast %cst_17 : f32 to vector<8x512xf32>
    %44 = arith.mulf %43, %40 : vector<8x512xf32>
    %45 = arith.select %42, %40, %44 : vector<8x512xi1>, vector<8x512xf32>
    %c17_i32_18 = arith.constant 17 : i32
    %46 = tpu.dynamic_rotate %45 by %c17_i32_18 dim 1 : vector<8x512xf32>, i32 -> vector<8x512xf32>
    %c0_19 = arith.constant 0 : index
    %c0_20 = arith.constant 0 : index
    %47 = vector.load %arg21[%c0_19, %c0_20] : memref<9x512xf32, #tpu.memory_space<vmem>>, vector<1x512xf32>
    %48 = vector.broadcast %47 : vector<1x512xf32> to vector<8x512xf32>
    %49 = arith.mulf %46, %48 : vector<8x512xf32>
    %c16_i32_21 = arith.constant 16 : i32
    %50 = tpu.dynamic_rotate %45 by %c16_i32_21 dim 1 : vector<8x512xf32>, i32 -> vector<8x512xf32>
    %c1_22 = arith.constant 1 : index
    %c0_23 = arith.constant 0 : index
    %51 = vector.load %arg21[%c1_22, %c0_23] : memref<9x512xf32, #tpu.memory_space<vmem>>, vector<1x512xf32>
    %52 = vector.broadcast %51 : vector<1x512xf32> to vector<8x512xf32>
    %53 = arith.mulf %50, %52 : vector<8x512xf32>
    %c15_i32_24 = arith.constant 15 : i32
    %54 = tpu.dynamic_rotate %45 by %c15_i32_24 dim 1 : vector<8x512xf32>, i32 -> vector<8x512xf32>
    %c2_25 = arith.constant 2 : index
    %c0_26 = arith.constant 0 : index
    %55 = vector.load %arg21[%c2_25, %c0_26] : memref<9x512xf32, #tpu.memory_space<vmem>>, vector<1x512xf32>
    %56 = vector.broadcast %55 : vector<1x512xf32> to vector<8x512xf32>
    %57 = arith.mulf %54, %56 : vector<8x512xf32>
    %c1_i32_27 = arith.constant 1 : i32
    %58 = tpu.dynamic_rotate %45 by %c1_i32_27 dim 1 : vector<8x512xf32>, i32 -> vector<8x512xf32>
    %c3_28 = arith.constant 3 : index
    %c0_29 = arith.constant 0 : index
    %59 = vector.load %arg21[%c3_28, %c0_29] : memref<9x512xf32, #tpu.memory_space<vmem>>, vector<1x512xf32>
    %60 = vector.broadcast %59 : vector<1x512xf32> to vector<8x512xf32>
    %61 = arith.mulf %58, %60 : vector<8x512xf32>
    %c511_i32_30 = arith.constant 511 : i32
    %62 = tpu.dynamic_rotate %45 by %c511_i32_30 dim 1 : vector<8x512xf32>, i32 -> vector<8x512xf32>
    %c5_31 = arith.constant 5 : index
    %c0_32 = arith.constant 0 : index
    %63 = vector.load %arg21[%c5_31, %c0_32] : memref<9x512xf32, #tpu.memory_space<vmem>>, vector<1x512xf32>
    %64 = vector.broadcast %63 : vector<1x512xf32> to vector<8x512xf32>
    %65 = arith.mulf %62, %64 : vector<8x512xf32>
    %c497_i32_33 = arith.constant 497 : i32
    %66 = tpu.dynamic_rotate %45 by %c497_i32_33 dim 1 : vector<8x512xf32>, i32 -> vector<8x512xf32>
    %c6_34 = arith.constant 6 : index
    %c0_35 = arith.constant 0 : index
    %67 = vector.load %arg21[%c6_34, %c0_35] : memref<9x512xf32, #tpu.memory_space<vmem>>, vector<1x512xf32>
    %68 = vector.broadcast %67 : vector<1x512xf32> to vector<8x512xf32>
    %69 = arith.mulf %66, %68 : vector<8x512xf32>
    %c496_i32_36 = arith.constant 496 : i32
    %70 = tpu.dynamic_rotate %45 by %c496_i32_36 dim 1 : vector<8x512xf32>, i32 -> vector<8x512xf32>
    %c7_37 = arith.constant 7 : index
    %c0_38 = arith.constant 0 : index
    %71 = vector.load %arg21[%c7_37, %c0_38] : memref<9x512xf32, #tpu.memory_space<vmem>>, vector<1x512xf32>
    %72 = vector.broadcast %71 : vector<1x512xf32> to vector<8x512xf32>
    %73 = arith.mulf %70, %72 : vector<8x512xf32>
    %c495_i32_39 = arith.constant 495 : i32
    %74 = tpu.dynamic_rotate %45 by %c495_i32_39 dim 1 : vector<8x512xf32>, i32 -> vector<8x512xf32>
    %c8_40 = arith.constant 8 : index
    %c0_41 = arith.constant 0 : index
    %75 = vector.load %arg21[%c8_40, %c0_41] : memref<9x512xf32, #tpu.memory_space<vmem>>, vector<1x512xf32>
    %76 = vector.broadcast %75 : vector<1x512xf32> to vector<8x512xf32>
    %77 = arith.mulf %74, %76 : vector<8x512xf32>
    %78 = tpu.concatenate %49, %53, %57, %61, %45, %65, %69, %73, %77 in 0 : vector<8x512xf32>, vector<8x512xf32>, vector<8x512xf32>, vector<8x512xf32>, vector<8x512xf32>, vector<8x512xf32>, vector<8x512xf32>, vector<8x512xf32>, vector<8x512xf32> -> vector<72x512xf32>
    %c0_42 = arith.constant 0 : index
    %c0_43 = arith.constant 0 : index
    %79 = vector.load %arg3[%c0_42, %c0_43] : memref<16x72xbf16, #tpu.memory_space<vmem>>, vector<16x72xbf16>
    %80 = arith.truncf %78 : vector<72x512xf32> to vector<72x512xbf16>
    %cst_44 = arith.constant dense<0.000000e+00> : vector<16x512xf32>
    %81 = tpu.matmul %79, %80, %cst_44 {dimension_numbers = #tpu.dot_dimension_numbers<[1], [0], [0], [1], [0, 0, 1, 1], [], []>} : vector<16x72xbf16>, vector<72x512xbf16>, vector<16x512xf32> -> vector<16x512xf32>
    %82 = arith.truncf %81 : vector<16x512xf32> to vector<16x512xbf16>
    %c0_45 = arith.constant 0 : index
    %c0_46 = arith.constant 0 : index
    %83 = vector.load %arg24[%c0_45, %c0_46] : memref<512x128xbf16, #tpu.memory_space<vmem>>, vector<512x128xbf16>
    %cst_47 = arith.constant dense<0.000000e+00> : vector<16x128xf32>
    %84 = tpu.matmul %82, %83, %cst_47 {dimension_numbers = #tpu.dot_dimension_numbers<[1], [0], [0], [1], [0, 0, 1, 1], [], []>} : vector<16x512xbf16>, vector<512x128xbf16>, vector<16x128xf32> -> vector<16x128xf32>
    %c0_48 = arith.constant 0 : index
    %c0_49 = arith.constant 0 : index
    %85 = vector.load %arg4[%c0_48, %c0_49] : memref<16x1xf32, #tpu.memory_space<vmem>>, vector<16x1xf32>
    %86 = vector.broadcast %85 : vector<16x1xf32> to vector<16x128xf32>
    %87 = arith.addf %84, %86 : vector<16x128xf32>
    %cst_50 = arith.constant 0.000000e+00 : f32
    %88 = vector.broadcast %cst_50 : f32 to vector<16x128xf32>
    %89 = arith.cmpf ogt, %87, %88 : vector<16x128xf32>
    %cst_51 = arith.constant 1.000000e-01 : f32
    %90 = vector.broadcast %cst_51 : f32 to vector<16x128xf32>
    %91 = arith.mulf %90, %87 : vector<16x128xf32>
    %92 = arith.select %89, %87, %91 : vector<16x128xi1>, vector<16x128xf32>
    %c0_52 = arith.constant 0 : index
    %c0_53 = arith.constant 0 : index
    %93 = vector.load %arg5[%c0_52, %c0_53] : memref<8x16xbf16, #tpu.memory_space<vmem>>, vector<8x16xbf16>
    %94 = arith.truncf %92 : vector<16x128xf32> to vector<16x128xbf16>
    %cst_54 = arith.constant dense<0.000000e+00> : vector<8x128xf32>
    %95 = tpu.matmul %93, %94, %cst_54 {dimension_numbers = #tpu.dot_dimension_numbers<[1], [0], [0], [1], [0, 0, 1, 1], [], []>} : vector<8x16xbf16>, vector<16x128xbf16>, vector<8x128xf32> -> vector<8x128xf32>
    %c0_55 = arith.constant 0 : index
    %c0_56 = arith.constant 0 : index
    %96 = vector.load %arg6[%c0_55, %c0_56] : memref<8x1xf32, #tpu.memory_space<vmem>>, vector<8x1xf32>
    %97 = vector.broadcast %96 : vector<8x1xf32> to vector<8x128xf32>
    %98 = arith.addf %95, %97 : vector<8x128xf32>
    %cst_57 = arith.constant 0.000000e+00 : f32
    %99 = vector.broadcast %cst_57 : f32 to vector<8x128xf32>
    %100 = arith.cmpf ogt, %98, %99 : vector<8x128xf32>
    %cst_58 = arith.constant 1.000000e-01 : f32
    %101 = vector.broadcast %cst_58 : f32 to vector<8x128xf32>
    %102 = arith.mulf %101, %98 : vector<8x128xf32>
    %103 = arith.select %100, %98, %102 : vector<8x128xi1>, vector<8x128xf32>
    %c9_i32 = arith.constant 9 : i32
    %104 = tpu.dynamic_rotate %103 by %c9_i32 dim 1 : vector<8x128xf32>, i32 -> vector<8x128xf32>
    %c0_59 = arith.constant 0 : index
    %c0_60 = arith.constant 0 : index
    %105 = vector.load %arg22[%c0_59, %c0_60] : memref<9x128xf32, #tpu.memory_space<vmem>>, vector<1x128xf32>
    %106 = vector.broadcast %105 : vector<1x128xf32> to vector<8x128xf32>
    %107 = arith.mulf %104, %106 : vector<8x128xf32>
    %c8_i32 = arith.constant 8 : i32
    %108 = tpu.dynamic_rotate %103 by %c8_i32 dim 1 : vector<8x128xf32>, i32 -> vector<8x128xf32>
    %c1_61 = arith.constant 1 : index
    %c0_62 = arith.constant 0 : index
    %109 = vector.load %arg22[%c1_61, %c0_62] : memref<9x128xf32, #tpu.memory_space<vmem>>, vector<1x128xf32>
    %110 = vector.broadcast %109 : vector<1x128xf32> to vector<8x128xf32>
    %111 = arith.mulf %108, %110 : vector<8x128xf32>
    %c7_i32 = arith.constant 7 : i32
    %112 = tpu.dynamic_rotate %103 by %c7_i32 dim 1 : vector<8x128xf32>, i32 -> vector<8x128xf32>
    %c2_63 = arith.constant 2 : index
    %c0_64 = arith.constant 0 : index
    %113 = vector.load %arg22[%c2_63, %c0_64] : memref<9x128xf32, #tpu.memory_space<vmem>>, vector<1x128xf32>
    %114 = vector.broadcast %113 : vector<1x128xf32> to vector<8x128xf32>
    %115 = arith.mulf %112, %114 : vector<8x128xf32>
    %c1_i32_65 = arith.constant 1 : i32
    %116 = tpu.dynamic_rotate %103 by %c1_i32_65 dim 1 : vector<8x128xf32>, i32 -> vector<8x128xf32>
    %c3_66 = arith.constant 3 : index
    %c0_67 = arith.constant 0 : index
    %117 = vector.load %arg22[%c3_66, %c0_67] : memref<9x128xf32, #tpu.memory_space<vmem>>, vector<1x128xf32>
    %118 = vector.broadcast %117 : vector<1x128xf32> to vector<8x128xf32>
    %119 = arith.mulf %116, %118 : vector<8x128xf32>
    %c127_i32 = arith.constant 127 : i32
    %120 = tpu.dynamic_rotate %103 by %c127_i32 dim 1 : vector<8x128xf32>, i32 -> vector<8x128xf32>
    %c5_68 = arith.constant 5 : index
    %c0_69 = arith.constant 0 : index
    %121 = vector.load %arg22[%c5_68, %c0_69] : memref<9x128xf32, #tpu.memory_space<vmem>>, vector<1x128xf32>
    %122 = vector.broadcast %121 : vector<1x128xf32> to vector<8x128xf32>
    %123 = arith.mulf %120, %122 : vector<8x128xf32>
    %c121_i32 = arith.constant 121 : i32
    %124 = tpu.dynamic_rotate %103 by %c121_i32 dim 1 : vector<8x128xf32>, i32 -> vector<8x128xf32>
    %c6_70 = arith.constant 6 : index
    %c0_71 = arith.constant 0 : index
    %125 = vector.load %arg22[%c6_70, %c0_71] : memref<9x128xf32, #tpu.memory_space<vmem>>, vector<1x128xf32>
    %126 = vector.broadcast %125 : vector<1x128xf32> to vector<8x128xf32>
    %127 = arith.mulf %124, %126 : vector<8x128xf32>
    %c120_i32 = arith.constant 120 : i32
    %128 = tpu.dynamic_rotate %103 by %c120_i32 dim 1 : vector<8x128xf32>, i32 -> vector<8x128xf32>
    %c7_72 = arith.constant 7 : index
    %c0_73 = arith.constant 0 : index
    %129 = vector.load %arg22[%c7_72, %c0_73] : memref<9x128xf32, #tpu.memory_space<vmem>>, vector<1x128xf32>
    %130 = vector.broadcast %129 : vector<1x128xf32> to vector<8x128xf32>
    %131 = arith.mulf %128, %130 : vector<8x128xf32>
    %c119_i32 = arith.constant 119 : i32
    %132 = tpu.dynamic_rotate %103 by %c119_i32 dim 1 : vector<8x128xf32>, i32 -> vector<8x128xf32>
    %c8_74 = arith.constant 8 : index
    %c0_75 = arith.constant 0 : index
    %133 = vector.load %arg22[%c8_74, %c0_75] : memref<9x128xf32, #tpu.memory_space<vmem>>, vector<1x128xf32>
    %134 = vector.broadcast %133 : vector<1x128xf32> to vector<8x128xf32>
    %135 = arith.mulf %132, %134 : vector<8x128xf32>
    %136 = tpu.concatenate %107, %111, %115, %119, %103, %123, %127, %131, %135 in 0 : vector<8x128xf32>, vector<8x128xf32>, vector<8x128xf32>, vector<8x128xf32>, vector<8x128xf32>, vector<8x128xf32>, vector<8x128xf32>, vector<8x128xf32>, vector<8x128xf32> -> vector<72x128xf32>
    %c0_76 = arith.constant 0 : index
    %c0_77 = arith.constant 0 : index
    %137 = vector.load %arg7[%c0_76, %c0_77] : memref<16x72xbf16, #tpu.memory_space<vmem>>, vector<16x72xbf16>
    %138 = arith.truncf %136 : vector<72x128xf32> to vector<72x128xbf16>
    %cst_78 = arith.constant dense<0.000000e+00> : vector<16x128xf32>
    %139 = tpu.matmul %137, %138, %cst_78 {dimension_numbers = #tpu.dot_dimension_numbers<[1], [0], [0], [1], [0, 0, 1, 1], [], []>} : vector<16x72xbf16>, vector<72x128xbf16>, vector<16x128xf32> -> vector<16x128xf32>
    %c0_79 = arith.constant 0 : index
    %c0_80 = arith.constant 0 : index
    %140 = vector.load %arg8[%c0_79, %c0_80] : memref<16x1xf32, #tpu.memory_space<vmem>>, vector<16x1xf32>
    %141 = vector.broadcast %140 : vector<16x1xf32> to vector<16x128xf32>
    %142 = arith.addf %139, %141 : vector<16x128xf32>
    %cst_81 = arith.constant 0.000000e+00 : f32
    %143 = vector.broadcast %cst_81 : f32 to vector<16x128xf32>
    %144 = arith.cmpf ogt, %142, %143 : vector<16x128xf32>
    %cst_82 = arith.constant 1.000000e-01 : f32
    %145 = vector.broadcast %cst_82 : f32 to vector<16x128xf32>
    %146 = arith.mulf %145, %142 : vector<16x128xf32>
    %147 = arith.select %144, %142, %146 : vector<16x128xi1>, vector<16x128xf32>
    %148 = arith.addf %147, %92 : vector<16x128xf32>
    %c9_i32_83 = arith.constant 9 : i32
    %149 = tpu.dynamic_rotate %148 by %c9_i32_83 dim 1 : vector<16x128xf32>, i32 -> vector<16x128xf32>
    %c0_84 = arith.constant 0 : index
    %c0_85 = arith.constant 0 : index
    %150 = vector.load %arg22[%c0_84, %c0_85] : memref<9x128xf32, #tpu.memory_space<vmem>>, vector<1x128xf32>
    %151 = vector.broadcast %150 : vector<1x128xf32> to vector<16x128xf32>
    %152 = arith.mulf %149, %151 : vector<16x128xf32>
    %c8_i32_86 = arith.constant 8 : i32
    %153 = tpu.dynamic_rotate %148 by %c8_i32_86 dim 1 : vector<16x128xf32>, i32 -> vector<16x128xf32>
    %c1_87 = arith.constant 1 : index
    %c0_88 = arith.constant 0 : index
    %154 = vector.load %arg22[%c1_87, %c0_88] : memref<9x128xf32, #tpu.memory_space<vmem>>, vector<1x128xf32>
    %155 = vector.broadcast %154 : vector<1x128xf32> to vector<16x128xf32>
    %156 = arith.mulf %153, %155 : vector<16x128xf32>
    %c7_i32_89 = arith.constant 7 : i32
    %157 = tpu.dynamic_rotate %148 by %c7_i32_89 dim 1 : vector<16x128xf32>, i32 -> vector<16x128xf32>
    %c2_90 = arith.constant 2 : index
    %c0_91 = arith.constant 0 : index
    %158 = vector.load %arg22[%c2_90, %c0_91] : memref<9x128xf32, #tpu.memory_space<vmem>>, vector<1x128xf32>
    %159 = vector.broadcast %158 : vector<1x128xf32> to vector<16x128xf32>
    %160 = arith.mulf %157, %159 : vector<16x128xf32>
    %c1_i32_92 = arith.constant 1 : i32
    %161 = tpu.dynamic_rotate %148 by %c1_i32_92 dim 1 : vector<16x128xf32>, i32 -> vector<16x128xf32>
    %c3_93 = arith.constant 3 : index
    %c0_94 = arith.constant 0 : index
    %162 = vector.load %arg22[%c3_93, %c0_94] : memref<9x128xf32, #tpu.memory_space<vmem>>, vector<1x128xf32>
    %163 = vector.broadcast %162 : vector<1x128xf32> to vector<16x128xf32>
    %164 = arith.mulf %161, %163 : vector<16x128xf32>
    %c127_i32_95 = arith.constant 127 : i32
    %165 = tpu.dynamic_rotate %148 by %c127_i32_95 dim 1 : vector<16x128xf32>, i32 -> vector<16x128xf32>
    %c5_96 = arith.constant 5 : index
    %c0_97 = arith.constant 0 : index
    %166 = vector.load %arg22[%c5_96, %c0_97] : memref<9x128xf32, #tpu.memory_space<vmem>>, vector<1x128xf32>
    %167 = vector.broadcast %166 : vector<1x128xf32> to vector<16x128xf32>
    %168 = arith.mulf %165, %167 : vector<16x128xf32>
    %c121_i32_98 = arith.constant 121 : i32
    %169 = tpu.dynamic_rotate %148 by %c121_i32_98 dim 1 : vector<16x128xf32>, i32 -> vector<16x128xf32>
    %c6_99 = arith.constant 6 : index
    %c0_100 = arith.constant 0 : index
    %170 = vector.load %arg22[%c6_99, %c0_100] : memref<9x128xf32, #tpu.memory_space<vmem>>, vector<1x128xf32>
    %171 = vector.broadcast %170 : vector<1x128xf32> to vector<16x128xf32>
    %172 = arith.mulf %169, %171 : vector<16x128xf32>
    %c120_i32_101 = arith.constant 120 : i32
    %173 = tpu.dynamic_rotate %148 by %c120_i32_101 dim 1 : vector<16x128xf32>, i32 -> vector<16x128xf32>
    %c7_102 = arith.constant 7 : index
    %c0_103 = arith.constant 0 : index
    %174 = vector.load %arg22[%c7_102, %c0_103] : memref<9x128xf32, #tpu.memory_space<vmem>>, vector<1x128xf32>
    %175 = vector.broadcast %174 : vector<1x128xf32> to vector<16x128xf32>
    %176 = arith.mulf %173, %175 : vector<16x128xf32>
    %c119_i32_104 = arith.constant 119 : i32
    %177 = tpu.dynamic_rotate %148 by %c119_i32_104 dim 1 : vector<16x128xf32>, i32 -> vector<16x128xf32>
    %c8_105 = arith.constant 8 : index
    %c0_106 = arith.constant 0 : index
    %178 = vector.load %arg22[%c8_105, %c0_106] : memref<9x128xf32, #tpu.memory_space<vmem>>, vector<1x128xf32>
    %179 = vector.broadcast %178 : vector<1x128xf32> to vector<16x128xf32>
    %180 = arith.mulf %177, %179 : vector<16x128xf32>
    %181 = tpu.concatenate %152, %156, %160, %164, %148, %168, %172, %176, %180 in 0 : vector<16x128xf32>, vector<16x128xf32>, vector<16x128xf32>, vector<16x128xf32>, vector<16x128xf32>, vector<16x128xf32>, vector<16x128xf32>, vector<16x128xf32>, vector<16x128xf32> -> vector<144x128xf32>
    %c0_107 = arith.constant 0 : index
    %c0_108 = arith.constant 0 : index
    %182 = vector.load %arg9[%c0_107, %c0_108] : memref<32x144xbf16, #tpu.memory_space<vmem>>, vector<32x144xbf16>
    %183 = arith.truncf %181 : vector<144x128xf32> to vector<144x128xbf16>
    %cst_109 = arith.constant dense<0.000000e+00> : vector<32x128xf32>
    %184 = tpu.matmul %182, %183, %cst_109 {dimension_numbers = #tpu.dot_dimension_numbers<[1], [0], [0], [1], [0, 0, 1, 1], [], []>} : vector<32x144xbf16>, vector<144x128xbf16>, vector<32x128xf32> -> vector<32x128xf32>
    %185 = arith.truncf %184 : vector<32x128xf32> to vector<32x128xbf16>
    %c0_110 = arith.constant 0 : index
    %c0_111 = arith.constant 0 : index
    %186 = vector.load %arg25[%c0_110, %c0_111] : memref<128x32xbf16, #tpu.memory_space<vmem>>, vector<128x32xbf16>
    %cst_112 = arith.constant dense<0.000000e+00> : vector<32x32xf32>
    %187 = tpu.matmul %185, %186, %cst_112 {dimension_numbers = #tpu.dot_dimension_numbers<[1], [0], [0], [1], [0, 0, 1, 1], [], []>} : vector<32x128xbf16>, vector<128x32xbf16>, vector<32x32xf32> -> vector<32x32xf32>
    %c0_113 = arith.constant 0 : index
    %c0_114 = arith.constant 0 : index
    %188 = vector.load %arg10[%c0_113, %c0_114] : memref<32x1xf32, #tpu.memory_space<vmem>>, vector<32x1xf32>
    %189 = vector.broadcast %188 : vector<32x1xf32> to vector<32x32xf32>
    %190 = arith.addf %187, %189 : vector<32x32xf32>
    %cst_115 = arith.constant 0.000000e+00 : f32
    %191 = vector.broadcast %cst_115 : f32 to vector<32x32xf32>
    %192 = arith.cmpf ogt, %190, %191 : vector<32x32xf32>
    %cst_116 = arith.constant 1.000000e-01 : f32
    %193 = vector.broadcast %cst_116 : f32 to vector<32x32xf32>
    %194 = arith.mulf %193, %190 : vector<32x32xf32>
    %195 = arith.select %192, %190, %194 : vector<32x32xi1>, vector<32x32xf32>
    %196 = vector.extract_strided_slice %195 {offsets = [0, 27], sizes = [32, 5], strides = [1, 1]} : vector<32x32xf32> to vector<32x5xf32>
    %197 = vector.extract_strided_slice %195 {offsets = [0, 0], sizes = [32, 27], strides = [1, 1]} : vector<32x32xf32> to vector<32x27xf32>
    %198 = tpu.concatenate %196, %197 in 1 : vector<32x5xf32>, vector<32x27xf32> -> vector<32x32xf32>
    %c0_117 = arith.constant 0 : index
    %c0_118 = arith.constant 0 : index
    %199 = vector.load %arg23[%c0_117, %c0_118] : memref<9x32xf32, #tpu.memory_space<vmem>>, vector<1x32xf32>
    %200 = vector.broadcast %199 : vector<1x32xf32> to vector<32x32xf32>
    %201 = arith.mulf %198, %200 : vector<32x32xf32>
    %202 = vector.extract_strided_slice %195 {offsets = [0, 28], sizes = [32, 4], strides = [1, 1]} : vector<32x32xf32> to vector<32x4xf32>
    %203 = vector.extract_strided_slice %195 {offsets = [0, 0], sizes = [32, 28], strides = [1, 1]} : vector<32x32xf32> to vector<32x28xf32>
    %204 = tpu.concatenate %202, %203 in 1 : vector<32x4xf32>, vector<32x28xf32> -> vector<32x32xf32>
    %c1_119 = arith.constant 1 : index
    %c0_120 = arith.constant 0 : index
    %205 = vector.load %arg23[%c1_119, %c0_120] : memref<9x32xf32, #tpu.memory_space<vmem>>, vector<1x32xf32>
    %206 = vector.broadcast %205 : vector<1x32xf32> to vector<32x32xf32>
    %207 = arith.mulf %204, %206 : vector<32x32xf32>
    %208 = vector.extract_strided_slice %195 {offsets = [0, 29], sizes = [32, 3], strides = [1, 1]} : vector<32x32xf32> to vector<32x3xf32>
    %209 = vector.extract_strided_slice %195 {offsets = [0, 0], sizes = [32, 29], strides = [1, 1]} : vector<32x32xf32> to vector<32x29xf32>
    %210 = tpu.concatenate %208, %209 in 1 : vector<32x3xf32>, vector<32x29xf32> -> vector<32x32xf32>
    %c2_121 = arith.constant 2 : index
    %c0_122 = arith.constant 0 : index
    %211 = vector.load %arg23[%c2_121, %c0_122] : memref<9x32xf32, #tpu.memory_space<vmem>>, vector<1x32xf32>
    %212 = vector.broadcast %211 : vector<1x32xf32> to vector<32x32xf32>
    %213 = arith.mulf %210, %212 : vector<32x32xf32>
    %214 = vector.extract_strided_slice %195 {offsets = [0, 31], sizes = [32, 1], strides = [1, 1]} : vector<32x32xf32> to vector<32x1xf32>
    %215 = vector.extract_strided_slice %195 {offsets = [0, 0], sizes = [32, 31], strides = [1, 1]} : vector<32x32xf32> to vector<32x31xf32>
    %216 = tpu.concatenate %214, %215 in 1 : vector<32x1xf32>, vector<32x31xf32> -> vector<32x32xf32>
    %c3_123 = arith.constant 3 : index
    %c0_124 = arith.constant 0 : index
    %217 = vector.load %arg23[%c3_123, %c0_124] : memref<9x32xf32, #tpu.memory_space<vmem>>, vector<1x32xf32>
    %218 = vector.broadcast %217 : vector<1x32xf32> to vector<32x32xf32>
    %219 = arith.mulf %216, %218 : vector<32x32xf32>
    %220 = vector.extract_strided_slice %195 {offsets = [0, 1], sizes = [32, 31], strides = [1, 1]} : vector<32x32xf32> to vector<32x31xf32>
    %221 = vector.extract_strided_slice %195 {offsets = [0, 0], sizes = [32, 1], strides = [1, 1]} : vector<32x32xf32> to vector<32x1xf32>
    %222 = tpu.concatenate %220, %221 in 1 : vector<32x31xf32>, vector<32x1xf32> -> vector<32x32xf32>
    %c5_125 = arith.constant 5 : index
    %c0_126 = arith.constant 0 : index
    %223 = vector.load %arg23[%c5_125, %c0_126] : memref<9x32xf32, #tpu.memory_space<vmem>>, vector<1x32xf32>
    %224 = vector.broadcast %223 : vector<1x32xf32> to vector<32x32xf32>
    %225 = arith.mulf %222, %224 : vector<32x32xf32>
    %226 = vector.extract_strided_slice %195 {offsets = [0, 3], sizes = [32, 29], strides = [1, 1]} : vector<32x32xf32> to vector<32x29xf32>
    %227 = vector.extract_strided_slice %195 {offsets = [0, 0], sizes = [32, 3], strides = [1, 1]} : vector<32x32xf32> to vector<32x3xf32>
    %228 = tpu.concatenate %226, %227 in 1 : vector<32x29xf32>, vector<32x3xf32> -> vector<32x32xf32>
    %c6_127 = arith.constant 6 : index
    %c0_128 = arith.constant 0 : index
    %229 = vector.load %arg23[%c6_127, %c0_128] : memref<9x32xf32, #tpu.memory_space<vmem>>, vector<1x32xf32>
    %230 = vector.broadcast %229 : vector<1x32xf32> to vector<32x32xf32>
    %231 = arith.mulf %228, %230 : vector<32x32xf32>
    %232 = vector.extract_strided_slice %195 {offsets = [0, 4], sizes = [32, 28], strides = [1, 1]} : vector<32x32xf32> to vector<32x28xf32>
    %233 = vector.extract_strided_slice %195 {offsets = [0, 0], sizes = [32, 4], strides = [1, 1]} : vector<32x32xf32> to vector<32x4xf32>
    %234 = tpu.concatenate %232, %233 in 1 : vector<32x28xf32>, vector<32x4xf32> -> vector<32x32xf32>
    %c7_129 = arith.constant 7 : index
    %c0_130 = arith.constant 0 : index
    %235 = vector.load %arg23[%c7_129, %c0_130] : memref<9x32xf32, #tpu.memory_space<vmem>>, vector<1x32xf32>
    %236 = vector.broadcast %235 : vector<1x32xf32> to vector<32x32xf32>
    %237 = arith.mulf %234, %236 : vector<32x32xf32>
    %238 = vector.extract_strided_slice %195 {offsets = [0, 5], sizes = [32, 27], strides = [1, 1]} : vector<32x32xf32> to vector<32x27xf32>
    %239 = vector.extract_strided_slice %195 {offsets = [0, 0], sizes = [32, 5], strides = [1, 1]} : vector<32x32xf32> to vector<32x5xf32>
    %240 = tpu.concatenate %238, %239 in 1 : vector<32x27xf32>, vector<32x5xf32> -> vector<32x32xf32>
    %c8_131 = arith.constant 8 : index
    %c0_132 = arith.constant 0 : index
    %241 = vector.load %arg23[%c8_131, %c0_132] : memref<9x32xf32, #tpu.memory_space<vmem>>, vector<1x32xf32>
    %242 = vector.broadcast %241 : vector<1x32xf32> to vector<32x32xf32>
    %243 = arith.mulf %240, %242 : vector<32x32xf32>
    %244 = tpu.concatenate %201, %207, %213, %219, %195, %225, %231, %237, %243 in 0 : vector<32x32xf32>, vector<32x32xf32>, vector<32x32xf32>, vector<32x32xf32>, vector<32x32xf32>, vector<32x32xf32>, vector<32x32xf32>, vector<32x32xf32>, vector<32x32xf32> -> vector<288x32xf32>
    %c0_133 = arith.constant 0 : index
    %c0_134 = arith.constant 0 : index
    %245 = vector.load %arg11[%c0_133, %c0_134] : memref<32x288xbf16, #tpu.memory_space<vmem>>, vector<32x288xbf16>
    %246 = arith.truncf %244 : vector<288x32xf32> to vector<288x32xbf16>
    %cst_135 = arith.constant dense<0.000000e+00> : vector<32x32xf32>
    %247 = tpu.matmul %245, %246, %cst_135 {dimension_numbers = #tpu.dot_dimension_numbers<[1], [0], [0], [1], [0, 0, 1, 1], [], []>} : vector<32x288xbf16>, vector<288x32xbf16>, vector<32x32xf32> -> vector<32x32xf32>
    %c0_136 = arith.constant 0 : index
    %c0_137 = arith.constant 0 : index
    %248 = vector.load %arg12[%c0_136, %c0_137] : memref<32x1xf32, #tpu.memory_space<vmem>>, vector<32x1xf32>
    %249 = vector.broadcast %248 : vector<32x1xf32> to vector<32x32xf32>
    %250 = arith.addf %247, %249 : vector<32x32xf32>
    %cst_138 = arith.constant 0.000000e+00 : f32
    %251 = vector.broadcast %cst_138 : f32 to vector<32x32xf32>
    %252 = arith.cmpf ogt, %250, %251 : vector<32x32xf32>
    %cst_139 = arith.constant 1.000000e-01 : f32
    %253 = vector.broadcast %cst_139 : f32 to vector<32x32xf32>
    %254 = arith.mulf %253, %250 : vector<32x32xf32>
    %255 = arith.select %252, %250, %254 : vector<32x32xi1>, vector<32x32xf32>
    %c0_140 = arith.constant 0 : index
    %c0_141 = arith.constant 0 : index
    %256 = vector.load %arg13[%c0_140, %c0_141] : memref<27x32xbf16, #tpu.memory_space<vmem>>, vector<27x32xbf16>
    %257 = arith.truncf %255 : vector<32x32xf32> to vector<32x32xbf16>
    %cst_142 = arith.constant dense<0.000000e+00> : vector<27x32xf32>
    %258 = tpu.matmul %256, %257, %cst_142 {dimension_numbers = #tpu.dot_dimension_numbers<[1], [0], [0], [1], [0, 0, 1, 1], [], []>} : vector<27x32xbf16>, vector<32x32xbf16>, vector<27x32xf32> -> vector<27x32xf32>
    %c0_143 = arith.constant 0 : index
    %c0_144 = arith.constant 0 : index
    %259 = vector.load %arg14[%c0_143, %c0_144] : memref<27x1xf32, #tpu.memory_space<vmem>>, vector<27x1xf32>
    %260 = vector.broadcast %259 : vector<27x1xf32> to vector<27x32xf32>
    %261 = arith.addf %258, %260 : vector<27x32xf32>
    %c0_145 = arith.constant 0 : index
    %c0_146 = arith.constant 0 : index
    %262 = vector.load %arg32[%c0_145, %c0_146] : memref<27x32xf32, #tpu.memory_space<vmem>>, vector<27x32xf32>
    tpu.vector_store %arg32[%c0_145, %c0_146], %261 {strides = array<i32>} : memref<27x32xf32, #tpu.memory_space<vmem>>, vector<27x32xf32>,
    %c0_147 = arith.constant 0 : index
    %c0_148 = arith.constant 0 : index
    %263 = vector.load %arg28[%c0_147, %c0_148] : memref<27x32xf32, #tpu.memory_space<vmem>>, vector<27x32xf32>
    %c0_149 = arith.constant 0 : index
    %c0_150 = arith.constant 0 : index
    %264 = vector.load %arg29[%c0_149, %c0_150] : memref<27x1xf32, #tpu.memory_space<vmem>>, vector<27x1xf32>
    %265 = arith.negf %261 : vector<27x32xf32>
    %266 = math.exp %265 : vector<27x32xf32>
    %cst_151 = arith.constant 1.000000e+00 : f32
    %267 = vector.broadcast %cst_151 : f32 to vector<27x32xf32>
    %268 = arith.addf %267, %266 : vector<27x32xf32>
    %269 = arith.divf %267, %268 : vector<27x32xf32>
    %cst_152 = arith.constant 5.000000e-01 : f32
    %270 = vector.broadcast %cst_152 : f32 to vector<27x1xf32>
    %271 = arith.cmpf ogt, %0, %270 : vector<27x1xf32>
    %cst_153 = arith.constant 0.000000e+00 : f32
    %272 = vector.shape_cast %271 : vector<27x1xi1> to vector<27x1xi1>
    %273 = vector.broadcast %272 : vector<27x1xi1> to vector<27x32xi1>
    %274 = vector.broadcast %cst_153 : f32 to vector<27x32xf32>
    %275 = arith.select %273, %261, %274 : vector<27x32xi1>, vector<27x32xf32>
    %276 = math.exp %275 : vector<27x32xf32>
    %277 = arith.addf %269, %263 : vector<27x32xf32>
    %278 = vector.shape_cast %271 : vector<27x1xi1> to vector<27x1xi1>
    %279 = vector.broadcast %278 : vector<27x1xi1> to vector<27x32xi1>
    %280 = arith.select %279, %276, %277 : vector<27x32xi1>, vector<27x32xf32>
    %281 = vector.broadcast %264 : vector<27x1xf32> to vector<27x32xf32>
    %282 = arith.mulf %280, %281 : vector<27x32xf32>
    %c0_154 = arith.constant 0 : index
    %c0_155 = arith.constant 0 : index
    %283 = vector.load %arg33[%c0_154, %c0_155] : memref<27x32xf32, #tpu.memory_space<vmem>>, vector<27x32xf32>
    tpu.vector_store %arg33[%c0_154, %c0_155], %282 {strides = array<i32>} : memref<27x32xf32, #tpu.memory_space<vmem>>, vector<27x32xf32>,
    %c0_156 = arith.constant 0 : index
    %c0_157 = arith.constant 0 : index
    %284 = vector.load %arg15[%c0_156, %c0_157] : memref<16x32xbf16, #tpu.memory_space<vmem>>, vector<16x32xbf16>
    %285 = arith.truncf %255 : vector<32x32xf32> to vector<32x32xbf16>
    %cst_158 = arith.constant dense<0.000000e+00> : vector<16x32xf32>
    %286 = tpu.matmul %284, %285, %cst_158 {dimension_numbers = #tpu.dot_dimension_numbers<[1], [0], [0], [1], [0, 0, 1, 1], [], []>} : vector<16x32xbf16>, vector<32x32xbf16>, vector<16x32xf32> -> vector<16x32xf32>
    %c0_159 = arith.constant 0 : index
    %c0_160 = arith.constant 0 : index
    %287 = vector.load %arg16[%c0_159, %c0_160] : memref<16x1xf32, #tpu.memory_space<vmem>>, vector<16x1xf32>
    %288 = vector.broadcast %287 : vector<16x1xf32> to vector<16x32xf32>
    %289 = arith.addf %286, %288 : vector<16x32xf32>
    %cst_161 = arith.constant 0.000000e+00 : f32
    %290 = vector.broadcast %cst_161 : f32 to vector<16x32xf32>
    %291 = arith.cmpf ogt, %289, %290 : vector<16x32xf32>
    %cst_162 = arith.constant 1.000000e-01 : f32
    %292 = vector.broadcast %cst_162 : f32 to vector<16x32xf32>
    %293 = arith.mulf %292, %289 : vector<16x32xf32>
    %294 = arith.select %291, %289, %293 : vector<16x32xi1>, vector<16x32xf32>
    %295 = arith.truncf %294 : vector<16x32xf32> to vector<16x32xbf16>
    %c0_163 = arith.constant 0 : index
    %c0_164 = arith.constant 0 : index
    %296 = vector.load %arg26[%c0_163, %c0_164] : memref<32x128xbf16, #tpu.memory_space<vmem>>, vector<32x128xbf16>
    %cst_165 = arith.constant dense<0.000000e+00> : vector<16x128xf32>
    %297 = tpu.matmul %295, %296, %cst_165 {dimension_numbers = #tpu.dot_dimension_numbers<[1], [0], [0], [1], [0, 0, 1, 1], [], []>} : vector<16x32xbf16>, vector<32x128xbf16>, vector<16x128xf32> -> vector<16x128xf32>
    %298 = tpu.concatenate %297, %148 in 0 : vector<16x128xf32>, vector<16x128xf32> -> vector<32x128xf32>
    %c9_i32_166 = arith.constant 9 : i32
    %299 = tpu.dynamic_rotate %298 by %c9_i32_166 dim 1 : vector<32x128xf32>, i32 -> vector<32x128xf32>
    %c0_167 = arith.constant 0 : index
    %c0_168 = arith.constant 0 : index
    %300 = vector.load %arg22[%c0_167, %c0_168] : memref<9x128xf32, #tpu.memory_space<vmem>>, vector<1x128xf32>
    %301 = vector.broadcast %300 : vector<1x128xf32> to vector<32x128xf32>
    %302 = arith.mulf %299, %301 : vector<32x128xf32>
    %c8_i32_169 = arith.constant 8 : i32
    %303 = tpu.dynamic_rotate %298 by %c8_i32_169 dim 1 : vector<32x128xf32>, i32 -> vector<32x128xf32>
    %c1_170 = arith.constant 1 : index
    %c0_171 = arith.constant 0 : index
    %304 = vector.load %arg22[%c1_170, %c0_171] : memref<9x128xf32, #tpu.memory_space<vmem>>, vector<1x128xf32>
    %305 = vector.broadcast %304 : vector<1x128xf32> to vector<32x128xf32>
    %306 = arith.mulf %303, %305 : vector<32x128xf32>
    %c7_i32_172 = arith.constant 7 : i32
    %307 = tpu.dynamic_rotate %298 by %c7_i32_172 dim 1 : vector<32x128xf32>, i32 -> vector<32x128xf32>
    %c2_173 = arith.constant 2 : index
    %c0_174 = arith.constant 0 : index
    %308 = vector.load %arg22[%c2_173, %c0_174] : memref<9x128xf32, #tpu.memory_space<vmem>>, vector<1x128xf32>
    %309 = vector.broadcast %308 : vector<1x128xf32> to vector<32x128xf32>
    %310 = arith.mulf %307, %309 : vector<32x128xf32>
    %c1_i32_175 = arith.constant 1 : i32
    %311 = tpu.dynamic_rotate %298 by %c1_i32_175 dim 1 : vector<32x128xf32>, i32 -> vector<32x128xf32>
    %c3_176 = arith.constant 3 : index
    %c0_177 = arith.constant 0 : index
    %312 = vector.load %arg22[%c3_176, %c0_177] : memref<9x128xf32, #tpu.memory_space<vmem>>, vector<1x128xf32>
    %313 = vector.broadcast %312 : vector<1x128xf32> to vector<32x128xf32>
    %314 = arith.mulf %311, %313 : vector<32x128xf32>
    %c127_i32_178 = arith.constant 127 : i32
    %315 = tpu.dynamic_rotate %298 by %c127_i32_178 dim 1 : vector<32x128xf32>, i32 -> vector<32x128xf32>
    %c5_179 = arith.constant 5 : index
    %c0_180 = arith.constant 0 : index
    %316 = vector.load %arg22[%c5_179, %c0_180] : memref<9x128xf32, #tpu.memory_space<vmem>>, vector<1x128xf32>
    %317 = vector.broadcast %316 : vector<1x128xf32> to vector<32x128xf32>
    %318 = arith.mulf %315, %317 : vector<32x128xf32>
    %c121_i32_181 = arith.constant 121 : i32
    %319 = tpu.dynamic_rotate %298 by %c121_i32_181 dim 1 : vector<32x128xf32>, i32 -> vector<32x128xf32>
    %c6_182 = arith.constant 6 : index
    %c0_183 = arith.constant 0 : index
    %320 = vector.load %arg22[%c6_182, %c0_183] : memref<9x128xf32, #tpu.memory_space<vmem>>, vector<1x128xf32>
    %321 = vector.broadcast %320 : vector<1x128xf32> to vector<32x128xf32>
    %322 = arith.mulf %319, %321 : vector<32x128xf32>
    %c120_i32_184 = arith.constant 120 : i32
    %323 = tpu.dynamic_rotate %298 by %c120_i32_184 dim 1 : vector<32x128xf32>, i32 -> vector<32x128xf32>
    %c7_185 = arith.constant 7 : index
    %c0_186 = arith.constant 0 : index
    %324 = vector.load %arg22[%c7_185, %c0_186] : memref<9x128xf32, #tpu.memory_space<vmem>>, vector<1x128xf32>
    %325 = vector.broadcast %324 : vector<1x128xf32> to vector<32x128xf32>
    %326 = arith.mulf %323, %325 : vector<32x128xf32>
    %c119_i32_187 = arith.constant 119 : i32
    %327 = tpu.dynamic_rotate %298 by %c119_i32_187 dim 1 : vector<32x128xf32>, i32 -> vector<32x128xf32>
    %c8_188 = arith.constant 8 : index
    %c0_189 = arith.constant 0 : index
    %328 = vector.load %arg22[%c8_188, %c0_189] : memref<9x128xf32, #tpu.memory_space<vmem>>, vector<1x128xf32>
    %329 = vector.broadcast %328 : vector<1x128xf32> to vector<32x128xf32>
    %330 = arith.mulf %327, %329 : vector<32x128xf32>
    %331 = tpu.concatenate %302, %306, %310, %314, %298, %318, %322, %326, %330 in 0 : vector<32x128xf32>, vector<32x128xf32>, vector<32x128xf32>, vector<32x128xf32>, vector<32x128xf32>, vector<32x128xf32>, vector<32x128xf32>, vector<32x128xf32>, vector<32x128xf32> -> vector<288x128xf32>
    %c0_190 = arith.constant 0 : index
    %c0_191 = arith.constant 0 : index
    %332 = vector.load %arg17[%c0_190, %c0_191] : memref<16x288xbf16, #tpu.memory_space<vmem>>, vector<16x288xbf16>
    %333 = arith.truncf %331 : vector<288x128xf32> to vector<288x128xbf16>
    %cst_192 = arith.constant dense<0.000000e+00> : vector<16x128xf32>
    %334 = tpu.matmul %332, %333, %cst_192 {dimension_numbers = #tpu.dot_dimension_numbers<[1], [0], [0], [1], [0, 0, 1, 1], [], []>} : vector<16x288xbf16>, vector<288x128xbf16>, vector<16x128xf32> -> vector<16x128xf32>
    %c0_193 = arith.constant 0 : index
    %c0_194 = arith.constant 0 : index
    %335 = vector.load %arg18[%c0_193, %c0_194] : memref<16x1xf32, #tpu.memory_space<vmem>>, vector<16x1xf32>
    %336 = vector.broadcast %335 : vector<16x1xf32> to vector<16x128xf32>
    %337 = arith.addf %334, %336 : vector<16x128xf32>
    %cst_195 = arith.constant 0.000000e+00 : f32
    %338 = vector.broadcast %cst_195 : f32 to vector<16x128xf32>
    %339 = arith.cmpf ogt, %337, %338 : vector<16x128xf32>
    %cst_196 = arith.constant 1.000000e-01 : f32
    %340 = vector.broadcast %cst_196 : f32 to vector<16x128xf32>
    %341 = arith.mulf %340, %337 : vector<16x128xf32>
    %342 = arith.select %339, %337, %341 : vector<16x128xi1>, vector<16x128xf32>
    %c0_197 = arith.constant 0 : index
    %c0_198 = arith.constant 0 : index
    %343 = vector.load %arg19[%c0_197, %c0_198] : memref<27x16xbf16, #tpu.memory_space<vmem>>, vector<27x16xbf16>
    %344 = arith.truncf %342 : vector<16x128xf32> to vector<16x128xbf16>
    %cst_199 = arith.constant dense<0.000000e+00> : vector<27x128xf32>
    %345 = tpu.matmul %343, %344, %cst_199 {dimension_numbers = #tpu.dot_dimension_numbers<[1], [0], [0], [1], [0, 0, 1, 1], [], []>} : vector<27x16xbf16>, vector<16x128xbf16>, vector<27x128xf32> -> vector<27x128xf32>
    %c0_200 = arith.constant 0 : index
    %c0_201 = arith.constant 0 : index
    %346 = vector.load %arg20[%c0_200, %c0_201] : memref<27x1xf32, #tpu.memory_space<vmem>>, vector<27x1xf32>
    %347 = vector.broadcast %346 : vector<27x1xf32> to vector<27x128xf32>
    %348 = arith.addf %345, %347 : vector<27x128xf32>
    %c0_202 = arith.constant 0 : index
    %c0_203 = arith.constant 0 : index
    %349 = vector.load %arg34[%c0_202, %c0_203] : memref<27x128xf32, #tpu.memory_space<vmem>>, vector<27x128xf32>
    tpu.vector_store %arg34[%c0_202, %c0_203], %348 {strides = array<i32>} : memref<27x128xf32, #tpu.memory_space<vmem>>, vector<27x128xf32>,
    %c0_204 = arith.constant 0 : index
    %c0_205 = arith.constant 0 : index
    %350 = vector.load %arg30[%c0_204, %c0_205] : memref<27x128xf32, #tpu.memory_space<vmem>>, vector<27x128xf32>
    %c0_206 = arith.constant 0 : index
    %c0_207 = arith.constant 0 : index
    %351 = vector.load %arg31[%c0_206, %c0_207] : memref<27x1xf32, #tpu.memory_space<vmem>>, vector<27x1xf32>
    %352 = arith.negf %348 : vector<27x128xf32>
    %353 = math.exp %352 : vector<27x128xf32>
    %cst_208 = arith.constant 1.000000e+00 : f32
    %354 = vector.broadcast %cst_208 : f32 to vector<27x128xf32>
    %355 = arith.addf %354, %353 : vector<27x128xf32>
    %356 = arith.divf %354, %355 : vector<27x128xf32>
    %cst_209 = arith.constant 5.000000e-01 : f32
    %357 = vector.broadcast %cst_209 : f32 to vector<27x1xf32>
    %358 = arith.cmpf ogt, %0, %357 : vector<27x1xf32>
    %cst_210 = arith.constant 0.000000e+00 : f32
    %359 = vector.shape_cast %358 : vector<27x1xi1> to vector<27x1xi1>
    %360 = vector.broadcast %359 : vector<27x1xi1> to vector<27x128xi1>
    %361 = vector.broadcast %cst_210 : f32 to vector<27x128xf32>
    %362 = arith.select %360, %348, %361 : vector<27x128xi1>, vector<27x128xf32>
    %363 = math.exp %362 : vector<27x128xf32>
    %364 = arith.addf %356, %350 : vector<27x128xf32>
    %365 = vector.shape_cast %358 : vector<27x1xi1> to vector<27x1xi1>
    %366 = vector.broadcast %365 : vector<27x1xi1> to vector<27x128xi1>
    %367 = arith.select %366, %363, %364 : vector<27x128xi1>, vector<27x128xf32>
    %368 = vector.broadcast %351 : vector<27x1xf32> to vector<27x128xf32>
    %369 = arith.mulf %367, %368 : vector<27x128xf32>
    %c0_211 = arith.constant 0 : index
    %c0_212 = arith.constant 0 : index
    %370 = vector.load %arg35[%c0_211, %c0_212] : memref<27x128xf32, #tpu.memory_space<vmem>>, vector<27x128xf32>
    tpu.vector_store %arg35[%c0_211, %c0_212], %369 {strides = array<i32>} : memref<27x128xf32, #tpu.memory_space<vmem>>, vector<27x128xf32>,
    return
  }
}

</mosaic_0001>

<llo_original>
// kernel: _lambda_.1
$region0: #{_lambda_.1}
  #allocation0 [shape = 'u32[]', space=smem, size = 0x4, offset = 0x4, fixed_abs, tag = 'smem constant byte address 0x4 - core index']
  #allocation1 [shape = 'u32[72,128]{1,0:T(1,128)}', space=vmem, size = 0x9000, scoped, tag = 'internal scratch']
  %s0 = inlined_call_operand.smem [shape: u32[36], index: -1, kind: input, shape index: {}]
  %s1 = sld [smem:[%s0]]
  %s2 = scalar_lea.smem %s0, 1
  %s3 = sld [smem:[%s2]]
  %s4 = scalar_lea.smem %s0, 2
  %s5 = sld [smem:[%s4]]
  %s6 = scalar_lea.smem %s0, 3
  %s7 = sld [smem:[%s6]]
  %s8 = scalar_lea.smem %s0, 4
  %s9 = sld [smem:[%s8]]
  %s10 = scalar_lea.smem %s0, 5
  %s11 = sld [smem:[%s10]]
  %s12 = scalar_lea.smem %s0, 6
  %s13 = sld [smem:[%s12]]
  %s14 = scalar_lea.smem %s0, 7
  %s15 = sld [smem:[%s14]]
  %s16 = scalar_lea.smem %s0, 8
  %s17 = sld [smem:[%s16]]
  %s18 = scalar_lea.smem %s0, 9
  %s19 = sld [smem:[%s18]]
  %s20 = scalar_lea.smem %s0, 10
  %s21 = sld [smem:[%s20]]
  %s22 = scalar_lea.smem %s0, 11
  %s23 = sld [smem:[%s22]]
  %s24 = scalar_lea.smem %s0, 12
  %s25 = sld [smem:[%s24]]
  %s26 = scalar_lea.smem %s0, 13
  %s27 = sld [smem:[%s26]]
  %s28 = scalar_lea.smem %s0, 14
  %s29 = sld [smem:[%s28]]
  %s30 = scalar_lea.smem %s0, 15
  %s31 = sld [smem:[%s30]]
  %s32 = scalar_lea.smem %s0, 16
  %s33 = sld [smem:[%s32]]
  %s34 = scalar_lea.smem %s0, 17
  %s35 = sld [smem:[%s34]]
  %s36 = scalar_lea.smem %s0, 18
  %s37 = sld [smem:[%s36]]
  %s38 = scalar_lea.smem %s0, 19
  %s39 = sld [smem:[%s38]]
  %s40 = scalar_lea.smem %s0, 20
  %s41 = sld [smem:[%s40]]
  %s42 = scalar_lea.smem %s0, 21
  %s43 = sld [smem:[%s42]]
  %s44 = scalar_lea.smem %s0, 22
  %s45 = sld [smem:[%s44]]
  %s46 = scalar_lea.smem %s0, 23
  %s47 = sld [smem:[%s46]]
  %s48 = scalar_lea.smem %s0, 24
  %s49 = sld [smem:[%s48]]
  %s50 = scalar_lea.smem %s0, 25
  %s51 = sld [smem:[%s50]]
  %s52 = scalar_lea.smem %s0, 26
  %s53 = sld [smem:[%s52]]
  %s54 = scalar_lea.smem %s0, 27
  %s55 = sld [smem:[%s54]]
  %s56 = scalar_lea.smem %s0, 28
  %s57 = sld [smem:[%s56]]
  %s58 = scalar_lea.smem %s0, 29
  %s59 = sld [smem:[%s58]]
  %s60 = scalar_lea.smem %s0, 30
  %s61 = sld [smem:[%s60]]
  %s62 = scalar_lea.smem %s0, 31
  %s63 = sld [smem:[%s62]]
  %s64 = scalar_lea.smem %s0, 32
  %s65 = sld [smem:[%s64]]
  %s66 = scalar_lea.smem %s0, 33
  %s67 = sld [smem:[%s66]]
  %s68 = scalar_lea.smem %s0, 34
  %s69 = sld [smem:[%s68]]
  %s70 = scalar_lea.smem %s0, 35
  %s71 = sld [smem:[%s70]]
  %72 = xla_tuple %s65, %s67, %s69, %s71
  %s73 = sld [smem:[#allocation0]]
  $region266: #{_lambda_.1} parent=0
    _
  %s75 = ssub.s32 1, %s73
  %s76 = scalar_select 0, %s75, %s73
  $region1: #{_lambda_.1} parent=0
    #allocation2 [shape = 'u8[4096]{0}', space=vmem, size = 0x1000, scoped, tag = 'input window, operand 3, single buffered']
    #allocation3 [shape = 's32[1]{0}', space=sflag, size = 0x4, scoped, tag = 'scoped memory for _lambda_.1']
    #allocation4 [shape = 'u8[2048]{0}', space=vmem, size = 0x800, scoped, tag = 'input window, operand 5, single buffered']
    #allocation5 [shape = 's32[1]{0}', space=sflag, size = 0x4, scoped, tag = 'scoped memory for _lambda_.1']
    #allocation6 [shape = 'u8[4096]{0}', space=vmem, size = 0x1000, scoped, tag = 'input window, operand 6, single buffered']
    #allocation7 [shape = 'u8[4096]{0}', space=vmem, size = 0x1000, scoped, tag = 'input window, operand 7, single buffered']
    #allocation8 [shape = 's32[1]{0}', space=sflag, size = 0x4, scoped, tag = 'scoped memory for _lambda_.1']
    #allocation9 [shape = 'u8[8192]{0}', space=vmem, size = 0x2000, scoped, tag = 'input window, operand 8, single buffered']
    #allocation10 [shape = 'u8[16384]{0}', space=vmem, size = 0x4000, scoped, tag = 'input window, operand 9, single buffered']
    #allocation11 [shape = 's32[1]{0}', space=sflag, size = 0x4, scoped, tag = 'scoped memory for _lambda_.1']
    #allocation12 [shape = 'u8[16384]{0}', space=vmem, size = 0x4000, scoped, tag = 'input window, operand 10, single buffered']
    #allocation13 [shape = 'u8[16384]{0}', space=vmem, size = 0x4000, scoped, tag = 'input window, operand 12, single buffered']
    #allocation14 [shape = 's32[1]{0}', space=sflag, size = 0x4, scoped, tag = 'scoped memory for _lambda_.1']
    #allocation15 [shape = 'u8[8192]{0}', space=vmem, size = 0x2000, scoped, tag = 'input window, operand 13, single buffered']
    #allocation16 [shape = 'u8[16384]{0}', space=vmem, size = 0x4000, scoped, tag = 'input window, operand 14, single buffered']
    #allocation17 [shape = 's32[1]{0}', space=sflag, size = 0x4, scoped, tag = 'scoped memory for _lambda_.1']
    #allocation18 [shape = 'u8[4096]{0}', space=vmem, size = 0x1000, scoped, tag = 'input window, operand 15, single buffered']
    #allocation19 [shape = 'u8[8192]{0}', space=vmem, size = 0x2000, scoped, tag = 'input window, operand 16, single buffered']
    #allocation20 [shape = 's32[1]{0}', space=sflag, size = 0x4, scoped, tag = 'scoped memory for _lambda_.1']
    #allocation21 [shape = 'u8[12288]{0}', space=vmem, size = 0x3000, scoped, tag = 'input window, operand 17, single buffered']
    #allocation22 [shape = 'u8[8192]{0}', space=vmem, size = 0x2000, scoped, tag = 'input window, operand 18, single buffered']
    #allocation23 [shape = 's32[1]{0}', space=sflag, size = 0x4, scoped, tag = 'scoped memory for _lambda_.1']
    #allocation24 [shape = 'u8[8192]{0}', space=vmem, size = 0x2000, scoped, tag = 'input window, operand 19, single buffered']
    #allocation25 [shape = 'u8[16384]{0}', space=vmem, size = 0x4000, scoped, tag = 'input window, operand 20, single buffered']
    #allocation26 [shape = 's32[1]{0}', space=sflag, size = 0x4, scoped, tag = 'scoped memory for _lambda_.1']
    #allocation27 [shape = 'u8[32768]{0}', space=vmem, size = 0x8000, scoped, tag = 'input window, operand 21, single buffered']
    #allocation28 [shape = 'u8[8192]{0}', space=vmem, size = 0x2000, scoped, tag = 'input window, operand 22, single buffered']
    #allocation29 [shape = 's32[1]{0}', space=sflag, size = 0x4, scoped, tag = 'scoped memory for _lambda_.1']
    #allocation30 [shape = 'u8[8192]{0}', space=vmem, size = 0x2000, scoped, tag = 'input window, operand 23, single buffered']
    #allocation31 [shape = 'u8[32768]{0}', space=vmem, size = 0x8000, scoped, tag = 'input window, operand 25, single buffered']
    #allocation32 [shape = 's32[1]{0}', space=sflag, size = 0x4, scoped, tag = 'scoped memory for _lambda_.1']
    #allocation33 [shape = 'u8[8192]{0}', space=vmem, size = 0x2000, scoped, tag = 'input window, operand 26, single buffered']
    #allocation34 [shape = 'u8[16384]{0}', space=vmem, size = 0x4000, scoped, tag = 'input window, operand 27, single buffered']
    #allocation35 [shape = 's32[1]{0}', space=sflag, size = 0x4, scoped, tag = 'scoped memory for _lambda_.1']
    #allocation36 [shape = 'u8[16384]{0}', space=vmem, size = 0x4000, scoped, tag = 'input window, operand 28, single buffered']
    #allocation37 [shape = 'u8[16384]{0}', space=vmem, size = 0x4000, scoped, tag = 'input window, operand 29, single buffered']
    #allocation38 [shape = 's32[1]{0}', space=sflag, size = 0x4, scoped, tag = 'scoped memory for _lambda_.1']
    #allocation39 [shape = 'u8[16384]{0}', space=vmem, size = 0x4000, scoped, tag = 'input window, operand 30, single buffered']
    #allocation40 [shape = 'u8[16384]{0}', space=vmem, size = 0x4000, scoped, tag = 'input window, operand 31, single buffered']
    #allocation41 [shape = 's32[1]{0}', space=sflag, size = 0x4, scoped, tag = 'scoped memory for _lambda_.1']
    %77 = vsyncpa [#allocation3], 0
    %78 = vsyncpa [#allocation5], 0
    %79 = vsyncpa [#allocation8], 0
    %80 = vsyncpa [#allocation11], 0
    %81 = vsyncpa [#allocation14], 0
    %82 = vsyncpa [#allocation17], 0
    %83 = vsyncpa [#allocation20], 0
    %84 = vsyncpa [#allocation23], 0
    %85 = vsyncpa [#allocation26], 0
    %86 = vsyncpa [#allocation29], 0
    %87 = vsyncpa [#allocation32], 0
    %88 = vsyncpa [#allocation35], 0
    %89 = vsyncpa [#allocation38], 0
    %90 = vsyncpa [#allocation41], 0
    // Predicated region
    $region2: #{_lambda_.1} parent=1 // pred_check
      _
    $region3: #{_lambda_.1} parent=1 // pred_check_branch
      %92 = sbr.rel (0) target = $region5
    $region4: #{_lambda_.1} parent=1 // pred_region
      _
    $region5: #{_lambda_.1} parent=1 // pred_fallthru
      _
    // Predicated region
    $region6: #{_lambda_.1} parent=1 // pred_check
      _
    $region7: #{_lambda_.1} parent=1 // pred_check_branch
      %94 = sbr.rel (0) target = $region9
    $region8: #{_lambda_.1} parent=1 // pred_region
      _
    $region9: #{_lambda_.1} parent=1 // pred_fallthru
      _
    // Predicated region
    $region10: #{_lambda_.1} parent=1 // pred_check
      _
    $region11: #{_lambda_.1} parent=1 // pred_check_branch
      %96 = sbr.rel (0) target = $region13
    $region12: #{_lambda_.1} parent=1 // pred_region
      _
    $region13: #{_lambda_.1} parent=1 // pred_fallthru
      _
    // Predicated region
    $region14: #{_lambda_.1} parent=1 // pred_check
      _
    $region15: #{_lambda_.1} parent=1 // pred_check_branch
      %98 = sbr.rel (0) target = $region17
    $region16: #{_lambda_.1} parent=1 // pred_region
      %100 = vsyncadd [#allocation3], 0
      %s101 = sshll.u32 %s7, 4
      %s102 = int_to_ptr.hbm [resolvable:$true] %s101
      %s103 = sshll.u32 [#allocation2], 4
      %s104 = int_to_ptr.vmem [resolvable:$true] %s103
      %109 = dma.hbm_to_vmem [thread:$0]  %s102, 128, %s104, [#allocation3], 64, 64, 4
    $region17: #{_lambda_.1} parent=1 // pred_fallthru
      _
    // Predicated region
    $region18: #{_lambda_.1} parent=1 // pred_check
      _
    $region19: #{_lambda_.1} parent=1 // pred_check_branch
      %111 = sbr.rel (0) target = $region21
    $region20: #{_lambda_.1} parent=1 // pred_region
      _
    $region21: #{_lambda_.1} parent=1 // pred_fallthru
      _
    // Predicated region
    $region22: #{_lambda_.1} parent=1 // pred_check
      _
    $region23: #{_lambda_.1} parent=1 // pred_check_branch
      %113 = sbr.rel (0) target = $region25
    $region24: #{_lambda_.1} parent=1 // pred_region
      %115 = vsyncadd [#allocation5], 0
      %s117 = sshll.u32 %s11, 4
      %s118 = int_to_ptr.hbm [resolvable:$true] %s117
      %s119 = sshll.u32 [#allocation4], 4
      %s120 = int_to_ptr.vmem [resolvable:$true] %s119
      %122 = dma.hbm_to_vmem [thread:$0]  %s118, 64, %s120, [#allocation5]
    $region25: #{_lambda_.1} parent=1 // pred_fallthru
      _
    // Predicated region
    $region26: #{_lambda_.1} parent=1 // pred_check
      _
    $region27: #{_lambda_.1} parent=1 // pred_check_branch
      %124 = sbr.rel (0) target = $region29
    $region28: #{_lambda_.1} parent=1 // pred_region
      %126 = vsyncadd [#allocation5], 0
      %s128 = sshll.u32 %s13, 4
      %s129 = int_to_ptr.hbm [resolvable:$true] %s128
      %s130 = sshll.u32 [#allocation6], 4
      %s131 = int_to_ptr.vmem [resolvable:$true] %s130
      %133 = dma.hbm_to_vmem [thread:$0]  %s129, 128, %s131, [#allocation5]
    $region29: #{_lambda_.1} parent=1 // pred_fallthru
      _
    // Predicated region
    $region30: #{_lambda_.1} parent=1 // pred_check
      _
    $region31: #{_lambda_.1} parent=1 // pred_check_branch
      %135 = sbr.rel (0) target = $region33
    $region32: #{_lambda_.1} parent=1 // pred_region
      %137 = vsyncadd [#allocation8], 0
      %s138 = sshll.u32 %s15, 4
      %s139 = int_to_ptr.hbm [resolvable:$true] %s138
      %s140 = sshll.u32 [#allocation7], 4
      %s141 = int_to_ptr.vmem [resolvable:$true] %s140
      %146 = dma.hbm_to_vmem [thread:$0]  %s139, 128, %s141, [#allocation8], 64, 64, 4
    $region33: #{_lambda_.1} parent=1 // pred_fallthru
      _
    // Predicated region
    $region34: #{_lambda_.1} parent=1 // pred_check
      _
    $region35: #{_lambda_.1} parent=1 // pred_check_branch
      %148 = sbr.rel (0) target = $region37
    $region36: #{_lambda_.1} parent=1 // pred_region
      %150 = vsyncadd [#allocation8], 0
      %s151 = sshll.u32 %s17, 4
      %s152 = int_to_ptr.hbm [resolvable:$true] %s151
      %s153 = sshll.u32 [#allocation9], 4
      %s154 = int_to_ptr.vmem [resolvable:$true] %s153
      %159 = dma.hbm_to_vmem [thread:$0]  %s152, 256, %s154, [#allocation8], 128, 128, 8
    $region37: #{_lambda_.1} parent=1 // pred_fallthru
      _
    // Predicated region
    $region38: #{_lambda_.1} parent=1 // pred_check
      _
    $region39: #{_lambda_.1} parent=1 // pred_check_branch
      %161 = sbr.rel (0) target = $region41
    $region40: #{_lambda_.1} parent=1 // pred_region
      %163 = vsyncadd [#allocation11], 0
      %s164 = sshll.u32 %s19, 4
      %s165 = int_to_ptr.hbm [resolvable:$true] %s164
      %s166 = sshll.u32 [#allocation10], 4
      %s167 = int_to_ptr.vmem [resolvable:$true] %s166
      %172 = dma.hbm_to_vmem [thread:$0]  %s165, 512, %s167, [#allocation11], 128, 128, 8
    $region41: #{_lambda_.1} parent=1 // pred_fallthru
      _
    // Predicated region
    $region42: #{_lambda_.1} parent=1 // pred_check
      _
    $region43: #{_lambda_.1} parent=1 // pred_check_branch
      %174 = sbr.rel (0) target = $region45
    $region44: #{_lambda_.1} parent=1 // pred_region
      %176 = vsyncadd [#allocation11], 0
      %s177 = sshll.u32 %s21, 4
      %s178 = int_to_ptr.hbm [resolvable:$true] %s177
      %s179 = sshll.u32 [#allocation12], 4
      %s180 = int_to_ptr.vmem [resolvable:$true] %s179
      %185 = dma.hbm_to_vmem [thread:$0]  %s178, 512, %s180, [#allocation11], 128, 128, 8
    $region45: #{_lambda_.1} parent=1 // pred_fallthru
      _
    // Predicated region
    $region46: #{_lambda_.1} parent=1 // pred_check
      _
    $region47: #{_lambda_.1} parent=1 // pred_check_branch
      %187 = sbr.rel (0) target = $region49
    $region48: #{_lambda_.1} parent=1 // pred_region
      _
    $region49: #{_lambda_.1} parent=1 // pred_fallthru
      _
    // Predicated region
    $region50: #{_lambda_.1} parent=1 // pred_check
      _
    $region51: #{_lambda_.1} parent=1 // pred_check_branch
      %189 = sbr.rel (0) target = $region53
    $region52: #{_lambda_.1} parent=1 // pred_region
      %191 = vsyncadd [#allocation14], 0
      %s192 = sshll.u32 %s25, 4
      %s193 = int_to_ptr.hbm [resolvable:$true] %s192
      %s194 = sshll.u32 [#allocation13], 4
      %s195 = int_to_ptr.vmem [resolvable:$true] %s194
      %200 = dma.hbm_to_vmem [thread:$0]  %s193, 512, %s195, [#allocation14], 128, 128, 8
    $region53: #{_lambda_.1} parent=1 // pred_fallthru
      _
    // Predicated region
    $region54: #{_lambda_.1} parent=1 // pred_check
      _
    $region55: #{_lambda_.1} parent=1 // pred_check_branch
      %202 = sbr.rel (0) target = $region57
    $region56: #{_lambda_.1} parent=1 // pred_region
      %204 = vsyncadd [#allocation14], 0
      %s205 = sshll.u32 %s27, 4
      %s206 = int_to_ptr.hbm [resolvable:$true] %s205
      %s207 = sshll.u32 [#allocation15], 4
      %s208 = int_to_ptr.vmem [resolvable:$true] %s207
      %213 = dma.hbm_to_vmem [thread:$0]  %s206, 256, %s208, [#allocation14], 64, 64, 4
    $region57: #{_lambda_.1} parent=1 // pred_fallthru
      _
    // Predicated region
    $region58: #{_lambda_.1} parent=1 // pred_check
      _
    $region59: #{_lambda_.1} parent=1 // pred_check_branch
      %215 = sbr.rel (0) target = $region61
    $region60: #{_lambda_.1} parent=1 // pred_region
      %217 = vsyncadd [#allocation17], 0
      %s218 = sshll.u32 %s29, 4
      %s219 = int_to_ptr.hbm [resolvable:$true] %s218
      %s220 = sshll.u32 [#allocation16], 4
      %s221 = int_to_ptr.vmem [resolvable:$true] %s220
      %226 = dma.hbm_to_vmem [thread:$0]  %s219, 512, %s221, [#allocation17], 128, 128, 8
    $region61: #{_lambda_.1} parent=1 // pred_fallthru
      _
    // Predicated region
    $region62: #{_lambda_.1} parent=1 // pred_check
      _
    $region63: #{_lambda_.1} parent=1 // pred_check_branch
      %228 = sbr.rel (0) target = $region65
    $region64: #{_lambda_.1} parent=1 // pred_region
      %230 = vsyncadd [#allocation17], 0
      %s231 = sshll.u32 %s31, 4
      %s232 = int_to_ptr.hbm [resolvable:$true] %s231
      %s233 = sshll.u32 [#allocation18], 4
      %s234 = int_to_ptr.vmem [resolvable:$true] %s233
      %239 = dma.hbm_to_vmem [thread:$0]  %s232, 128, %s234, [#allocation17], 64, 64, 4
    $region65: #{_lambda_.1} parent=1 // pred_fallthru
      _
    // Predicated region
    $region66: #{_lambda_.1} parent=1 // pred_check
      _
    $region67: #{_lambda_.1} parent=1 // pred_check_branch
      %241 = sbr.rel (0) target = $region69
    $region68: #{_lambda_.1} parent=1 // pred_region
      %243 = vsyncadd [#allocation20], 0
      %s244 = sshll.u32 %s33, 4
      %s245 = int_to_ptr.hbm [resolvable:$true] %s244
      %s246 = sshll.u32 [#allocation19], 4
      %s247 = int_to_ptr.vmem [resolvable:$true] %s246
      %252 = dma.hbm_to_vmem [thread:$0]  %s245, 256, %s247, [#allocation20], 128, 128, 8
    $region69: #{_lambda_.1} parent=1 // pred_fallthru
      _
    // Predicated region
    $region70: #{_lambda_.1} parent=1 // pred_check
      _
    $region71: #{_lambda_.1} parent=1 // pred_check_branch
      %254 = sbr.rel (0) target = $region73
    $region72: #{_lambda_.1} parent=1 // pred_region
      %256 = vsyncadd [#allocation20], 0
      %s257 = sshll.u32 %s35, 4
      %s258 = int_to_ptr.hbm [resolvable:$true] %s257
      %s259 = sshll.u32 [#allocation21], 4
      %s260 = int_to_ptr.vmem [resolvable:$true] %s259
      %265 = dma.hbm_to_vmem [thread:$0]  %s258, 384, %s260, [#allocation20], 192, 192, 12
    $region73: #{_lambda_.1} parent=1 // pred_fallthru
      _
    // Predicated region
    $region74: #{_lambda_.1} parent=1 // pred_check
      _
    $region75: #{_lambda_.1} parent=1 // pred_check_branch
      %267 = sbr.rel (0) target = $region77
    $region76: #{_lambda_.1} parent=1 // pred_region
      %269 = vsyncadd [#allocation23], 0
      %s270 = sshll.u32 %s37, 4
      %s271 = int_to_ptr.hbm [resolvable:$true] %s270
      %s272 = sshll.u32 [#allocation22], 4
      %s273 = int_to_ptr.vmem [resolvable:$true] %s272
      %278 = dma.hbm_to_vmem [thread:$0]  %s271, 256, %s273, [#allocation23], 128, 128, 8
    $region77: #{_lambda_.1} parent=1 // pred_fallthru
      _
    // Predicated region
    $region78: #{_lambda_.1} parent=1 // pred_check
      _
    $region79: #{_lambda_.1} parent=1 // pred_check_branch
      %280 = sbr.rel (0) target = $region81
    $region80: #{_lambda_.1} parent=1 // pred_region
      %282 = vsyncadd [#allocation23], 0
      %s283 = sshll.u32 %s39, 4
      %s284 = int_to_ptr.hbm [resolvable:$true] %s283
      %s285 = sshll.u32 [#allocation24], 4
      %s286 = int_to_ptr.vmem [resolvable:$true] %s285
      %291 = dma.hbm_to_vmem [thread:$0]  %s284, 256, %s286, [#allocation23], 64, 64, 4
    $region81: #{_lambda_.1} parent=1 // pred_fallthru
      _
    // Predicated region
    $region82: #{_lambda_.1} parent=1 // pred_check
      _
    $region83: #{_lambda_.1} parent=1 // pred_check_branch
      %293 = sbr.rel (0) target = $region85
    $region84: #{_lambda_.1} parent=1 // pred_region
      %295 = vsyncadd [#allocation26], 0
      %s296 = sshll.u32 %s41, 4
      %s297 = int_to_ptr.hbm [resolvable:$true] %s296
      %s298 = sshll.u32 [#allocation25], 4
      %s299 = int_to_ptr.vmem [resolvable:$true] %s298
      %304 = dma.hbm_to_vmem [thread:$0]  %s297, 512, %s299, [#allocation26], 128, 128, 8
    $region85: #{_lambda_.1} parent=1 // pred_fallthru
      _
    // Predicated region
    $region86: #{_lambda_.1} parent=1 // pred_check
      _
    $region87: #{_lambda_.1} parent=1 // pred_check_branch
      %306 = sbr.rel (0) target = $region89
    $region88: #{_lambda_.1} parent=1 // pred_region
      %308 = vsyncadd [#allocation26], 0
      %s309 = sshll.u32 %s43, 4
      %s310 = int_to_ptr.hbm [resolvable:$true] %s309
      %s311 = sshll.u32 [#allocation27], 4
      %s312 = int_to_ptr.vmem [resolvable:$true] %s311
      %317 = dma.hbm_to_vmem [thread:$0]  %s310, 1024, %s312, [#allocation26], 512, 512, 32
    $region89: #{_lambda_.1} parent=1 // pred_fallthru
      _
    // Predicated region
    $region90: #{_lambda_.1} parent=1 // pred_check
      _
    $region91: #{_lambda_.1} parent=1 // pred_check_branch
      %319 = sbr.rel (0) target = $region93
    $region92: #{_lambda_.1} parent=1 // pred_region
      %321 = vsyncadd [#allocation29], 0
      %s322 = sshll.u32 %s45, 4
      %s323 = int_to_ptr.hbm [resolvable:$true] %s322
      %s324 = sshll.u32 [#allocation28], 4
      %s325 = int_to_ptr.vmem [resolvable:$true] %s324
      %330 = dma.hbm_to_vmem [thread:$0]  %s323, 256, %s325, [#allocation29], 128, 128, 8
    $region93: #{_lambda_.1} parent=1 // pred_fallthru
      _
    // Predicated region
    $region94: #{_lambda_.1} parent=1 // pred_check
      _
    $region95: #{_lambda_.1} parent=1 // pred_check_branch
      %332 = sbr.rel (0) target = $region97
    $region96: #{_lambda_.1} parent=1 // pred_region
      %334 = vsyncadd [#allocation29], 0
      %s335 = sshll.u32 %s47, 4
      %s336 = int_to_ptr.hbm [resolvable:$true] %s335
      %s337 = sshll.u32 [#allocation30], 4
      %s338 = int_to_ptr.vmem [resolvable:$true] %s337
      %343 = dma.hbm_to_vmem [thread:$0]  %s336, 256, %s338, [#allocation29], 128, 128, 8
    $region97: #{_lambda_.1} parent=1 // pred_fallthru
      _
    // Predicated region
    $region98: #{_lambda_.1} parent=1 // pred_check
      _
    $region99: #{_lambda_.1} parent=1 // pred_check_branch
      %345 = sbr.rel (0) target = $region101
    $region100: #{_lambda_.1} parent=1 // pred_region
      _
    $region101: #{_lambda_.1} parent=1 // pred_fallthru
      _
    // Predicated region
    $region102: #{_lambda_.1} parent=1 // pred_check
      _
    $region103: #{_lambda_.1} parent=1 // pred_check_branch
      %347 = sbr.rel (0) target = $region105
    $region104: #{_lambda_.1} parent=1 // pred_region
      %349 = vsyncadd [#allocation32], 0
      %s350 = sshll.u32 %s51, 4
      %s351 = int_to_ptr.hbm [resolvable:$true] %s350
      %s352 = sshll.u32 [#allocation31], 4
      %s353 = int_to_ptr.vmem [resolvable:$true] %s352
      %358 = dma.hbm_to_vmem [thread:$0]  %s351, 1024, %s353, [#allocation32], 64, 64, 4
    $region105: #{_lambda_.1} parent=1 // pred_fallthru
      _
    // Predicated region
    $region106: #{_lambda_.1} parent=1 // pred_check
      _
    $region107: #{_lambda_.1} parent=1 // pred_check_branch
      %360 = sbr.rel (0) target = $region109
    $region108: #{_lambda_.1} parent=1 // pred_region
      %362 = vsyncadd [#allocation32], 0
      %s363 = sshll.u32 %s53, 4
      %s364 = int_to_ptr.hbm [resolvable:$true] %s363
      %s365 = sshll.u32 [#allocation33], 4
      %s366 = int_to_ptr.vmem [resolvable:$true] %s365
      %371 = dma.hbm_to_vmem [thread:$0]  %s364, 256, %s366, [#allocation32], 64, 64, 4
    $region109: #{_lambda_.1} parent=1 // pred_fallthru
      _
    // Predicated region
    $region110: #{_lambda_.1} parent=1 // pred_check
      _
    $region111: #{_lambda_.1} parent=1 // pred_check_branch
      %373 = sbr.rel (0) target = $region113
    $region112: #{_lambda_.1} parent=1 // pred_region
      %375 = vsyncadd [#allocation35], 0
      %s376 = sshll.u32 %s55, 4
      %s377 = int_to_ptr.hbm [resolvable:$true] %s376
      %s378 = sshll.u32 [#allocation34], 4
      %s379 = int_to_ptr.vmem [resolvable:$true] %s378
      %384 = dma.hbm_to_vmem [thread:$0]  %s377, 512, %s379, [#allocation35], 128, 128, 8
    $region113: #{_lambda_.1} parent=1 // pred_fallthru
      _
    // Predicated region
    $region114: #{_lambda_.1} parent=1 // pred_check
      _
    $region115: #{_lambda_.1} parent=1 // pred_check_branch
      %386 = sbr.rel (0) target = $region117
    $region116: #{_lambda_.1} parent=1 // pred_region
      %388 = vsyncadd [#allocation35], 0
      %s389 = sshll.u32 %s57, 4
      %s390 = int_to_ptr.hbm [resolvable:$true] %s389
      %s391 = sshll.u32 [#allocation36], 4
      %s392 = int_to_ptr.vmem [resolvable:$true] %s391
      %397 = dma.hbm_to_vmem [thread:$0]  %s390, 512, %s392, [#allocation35], 128, 128, 8
    $region117: #{_lambda_.1} parent=1 // pred_fallthru
      _
    // Predicated region
    $region118: #{_lambda_.1} parent=1 // pred_check
      _
    $region119: #{_lambda_.1} parent=1 // pred_check_branch
      %399 = sbr.rel (0) target = $region121
    $region120: #{_lambda_.1} parent=1 // pred_region
      %401 = vsyncadd [#allocation38], 0
      %s402 = sshll.u32 %s59, 4
      %s403 = int_to_ptr.hbm [resolvable:$true] %s402
      %s404 = sshll.u32 [#allocation37], 4
      %s405 = int_to_ptr.vmem [resolvable:$true] %s404
      %410 = dma.hbm_to_vmem [thread:$0]  %s403, 512, %s405, [#allocation38], 128, 128, 8
    $region121: #{_lambda_.1} parent=1 // pred_fallthru
      _
    // Predicated region
    $region122: #{_lambda_.1} parent=1 // pred_check
      _
    $region123: #{_lambda_.1} parent=1 // pred_check_branch
      %412 = sbr.rel (0) target = $region125
    $region124: #{_lambda_.1} parent=1 // pred_region
      %414 = vsyncadd [#allocation38], 0
      %s415 = sshll.u32 %s61, 4
      %s416 = int_to_ptr.hbm [resolvable:$true] %s415
      %s417 = sshll.u32 [#allocation39], 4
      %s418 = int_to_ptr.vmem [resolvable:$true] %s417
      %423 = dma.hbm_to_vmem [thread:$0]  %s416, 512, %s418, [#allocation38], 128, 128, 8
    $region125: #{_lambda_.1} parent=1 // pred_fallthru
      _
    // Predicated region
    $region126: #{_lambda_.1} parent=1 // pred_check
      _
    $region127: #{_lambda_.1} parent=1 // pred_check_branch
      %425 = sbr.rel (0) target = $region129
    $region128: #{_lambda_.1} parent=1 // pred_region
      %427 = vsyncadd [#allocation41], 0
      %s428 = sshll.u32 %s63, 4
      %s429 = int_to_ptr.hbm [resolvable:$true] %s428
      %s430 = sshll.u32 [#allocation40], 4
      %s431 = int_to_ptr.vmem [resolvable:$true] %s430
      %436 = dma.hbm_to_vmem [thread:$0]  %s429, 512, %s431, [#allocation41], 128, 128, 8
    $region129: #{_lambda_.1} parent=1 // pred_fallthru
      _
    // Predicated region
    $region130: #{_lambda_.1} parent=1 // pred_check
      _
    $region131: #{_lambda_.1} parent=1 // pred_check_branch
      %438 = sbr.rel (0) target = $region133
    $region132: #{_lambda_.1} parent=1 // pred_region
      %440 = dma.done [#allocation3], 128
    $region133: #{_lambda_.1} parent=1 // pred_fallthru
      _
    // Predicated region
    $region134: #{_lambda_.1} parent=1 // pred_check
      _
    $region135: #{_lambda_.1} parent=1 // pred_check_branch
      %442 = sbr.rel (0) target = $region137
    $region136: #{_lambda_.1} parent=1 // pred_region
      %444 = dma.done [#allocation5], 64
    $region137: #{_lambda_.1} parent=1 // pred_fallthru
      _
    // Predicated region
    $region138: #{_lambda_.1} parent=1 // pred_check
      _
    $region139: #{_lambda_.1} parent=1 // pred_check_branch
      %446 = sbr.rel (0) target = $region141
    $region140: #{_lambda_.1} parent=1 // pred_region
      %448 = dma.done [#allocation5], 128
    $region141: #{_lambda_.1} parent=1 // pred_fallthru
      _
    // Predicated region
    $region142: #{_lambda_.1} parent=1 // pred_check
      _
    $region143: #{_lambda_.1} parent=1 // pred_check_branch
      %450 = sbr.rel (0) target = $region145
    $region144: #{_lambda_.1} parent=1 // pred_region
      %452 = dma.done [#allocation8], 128
    $region145: #{_lambda_.1} parent=1 // pred_fallthru
      _
    // Predicated region
    $region146: #{_lambda_.1} parent=1 // pred_check
      _
    $region147: #{_lambda_.1} parent=1 // pred_check_branch
      %454 = sbr.rel (0) target = $region149
    $region148: #{_lambda_.1} parent=1 // pred_region
      %456 = dma.done [#allocation8], 256
    $region149: #{_lambda_.1} parent=1 // pred_fallthru
      _
    // Predicated region
    $region150: #{_lambda_.1} parent=1 // pred_check
      _
    $region151: #{_lambda_.1} parent=1 // pred_check_branch
      %458 = sbr.rel (0) target = $region153
    $region152: #{_lambda_.1} parent=1 // pred_region
      %460 = dma.done [#allocation11], 512
    $region153: #{_lambda_.1} parent=1 // pred_fallthru
      _
    // Predicated region
    $region154: #{_lambda_.1} parent=1 // pred_check
      _
    $region155: #{_lambda_.1} parent=1 // pred_check_branch
      %462 = sbr.rel (0) target = $region157
    $region156: #{_lambda_.1} parent=1 // pred_region
      %464 = dma.done [#allocation11], 512
    $region157: #{_lambda_.1} parent=1 // pred_fallthru
      _
    // Predicated region
    $region158: #{_lambda_.1} parent=1 // pred_check
      _
    $region159: #{_lambda_.1} parent=1 // pred_check_branch
      %466 = sbr.rel (0) target = $region161
    $region160: #{_lambda_.1} parent=1 // pred_region
      %468 = dma.done [#allocation14], 512
    $region161: #{_lambda_.1} parent=1 // pred_fallthru
      _
    // Predicated region
    $region162: #{_lambda_.1} parent=1 // pred_check
      _
    $region163: #{_lambda_.1} parent=1 // pred_check_branch
      %470 = sbr.rel (0) target = $region165
    $region164: #{_lambda_.1} parent=1 // pred_region
      %472 = dma.done [#allocation14], 256
    $region165: #{_lambda_.1} parent=1 // pred_fallthru
      _
    // Predicated region
    $region166: #{_lambda_.1} parent=1 // pred_check
      _
    $region167: #{_lambda_.1} parent=1 // pred_check_branch
      %474 = sbr.rel (0) target = $region169
    $region168: #{_lambda_.1} parent=1 // pred_region
      %476 = dma.done [#allocation17], 512
    $region169: #{_lambda_.1} parent=1 // pred_fallthru
      _
    // Predicated region
    $region170: #{_lambda_.1} parent=1 // pred_check
      _
    $region171: #{_lambda_.1} parent=1 // pred_check_branch
      %478 = sbr.rel (0) target = $region173
    $region172: #{_lambda_.1} parent=1 // pred_region
      %480 = dma.done [#allocation17], 128
    $region173: #{_lambda_.1} parent=1 // pred_fallthru
      _
    // Predicated region
    $region174: #{_lambda_.1} parent=1 // pred_check
      _
    $region175: #{_lambda_.1} parent=1 // pred_check_branch
      %482 = sbr.rel (0) target = $region177
    $region176: #{_lambda_.1} parent=1 // pred_region
      %484 = dma.done [#allocation20], 256
    $region177: #{_lambda_.1} parent=1 // pred_fallthru
      _
    // Predicated region
    $region178: #{_lambda_.1} parent=1 // pred_check
      _
    $region179: #{_lambda_.1} parent=1 // pred_check_branch
      %486 = sbr.rel (0) target = $region181
    $region180: #{_lambda_.1} parent=1 // pred_region
      %488 = dma.done [#allocation20], 384
    $region181: #{_lambda_.1} parent=1 // pred_fallthru
      _
    // Predicated region
    $region182: #{_lambda_.1} parent=1 // pred_check
      _
    $region183: #{_lambda_.1} parent=1 // pred_check_branch
      %490 = sbr.rel (0) target = $region185
    $region184: #{_lambda_.1} parent=1 // pred_region
      %492 = dma.done [#allocation23], 256
    $region185: #{_lambda_.1} parent=1 // pred_fallthru
      _
    // Predicated region
    $region186: #{_lambda_.1} parent=1 // pred_check
      _
    $region187: #{_lambda_.1} parent=1 // pred_check_branch
      %494 = sbr.rel (0) target = $region189
    $region188: #{_lambda_.1} parent=1 // pred_region
      %496 = dma.done [#allocation23], 256
    $region189: #{_lambda_.1} parent=1 // pred_fallthru
      _
    // Predicated region
    $region190: #{_lambda_.1} parent=1 // pred_check
      _
    $region191: #{_lambda_.1} parent=1 // pred_check_branch
      %498 = sbr.rel (0) target = $region193
    $region192: #{_lambda_.1} parent=1 // pred_region
      %500 = dma.done [#allocation26], 512
    $region193: #{_lambda_.1} parent=1 // pred_fallthru
      _
    // Predicated region
    $region194: #{_lambda_.1} parent=1 // pred_check
      _
    $region195: #{_lambda_.1} parent=1 // pred_check_branch
      %502 = sbr.rel (0) target = $region197
    $region196: #{_lambda_.1} parent=1 // pred_region
      %504 = dma.done [#allocation26], 1024
    $region197: #{_lambda_.1} parent=1 // pred_fallthru
      _
    // Predicated region
    $region198: #{_lambda_.1} parent=1 // pred_check
      _
    $region199: #{_lambda_.1} parent=1 // pred_check_branch
      %506 = sbr.rel (0) target = $region201
    $region200: #{_lambda_.1} parent=1 // pred_region
      %508 = dma.done [#allocation29], 256
    $region201: #{_lambda_.1} parent=1 // pred_fallthru
      _
    // Predicated region
    $region202: #{_lambda_.1} parent=1 // pred_check
      _
    $region203: #{_lambda_.1} parent=1 // pred_check_branch
      %510 = sbr.rel (0) target = $region205
    $region204: #{_lambda_.1} parent=1 // pred_region
      %512 = dma.done [#allocation29], 256
    $region205: #{_lambda_.1} parent=1 // pred_fallthru
      _
    // Predicated region
    $region206: #{_lambda_.1} parent=1 // pred_check
      _
    $region207: #{_lambda_.1} parent=1 // pred_check_branch
      %514 = sbr.rel (0) target = $region209
    $region208: #{_lambda_.1} parent=1 // pred_region
      %516 = dma.done [#allocation32], 1024
    $region209: #{_lambda_.1} parent=1 // pred_fallthru
      _
    // Predicated region
    $region210: #{_lambda_.1} parent=1 // pred_check
      _
    $region211: #{_lambda_.1} parent=1 // pred_check_branch
      %518 = sbr.rel (0) target = $region213
    $region212: #{_lambda_.1} parent=1 // pred_region
      %520 = dma.done [#allocation32], 256
    $region213: #{_lambda_.1} parent=1 // pred_fallthru
      _
    // Predicated region
    $region214: #{_lambda_.1} parent=1 // pred_check
      _
    $region215: #{_lambda_.1} parent=1 // pred_check_branch
      %522 = sbr.rel (0) target = $region217
    $region216: #{_lambda_.1} parent=1 // pred_region
      %524 = dma.done [#allocation35], 512
    $region217: #{_lambda_.1} parent=1 // pred_fallthru
      _
    // Predicated region
    $region218: #{_lambda_.1} parent=1 // pred_check
      _
    $region219: #{_lambda_.1} parent=1 // pred_check_branch
      %526 = sbr.rel (0) target = $region221
    $region220: #{_lambda_.1} parent=1 // pred_region
      %528 = dma.done [#allocation35], 512
    $region221: #{_lambda_.1} parent=1 // pred_fallthru
      _
    // Predicated region
    $region222: #{_lambda_.1} parent=1 // pred_check
      _
    $region223: #{_lambda_.1} parent=1 // pred_check_branch
      %530 = sbr.rel (0) target = $region225
    $region224: #{_lambda_.1} parent=1 // pred_region
      %532 = dma.done [#allocation38], 512
    $region225: #{_lambda_.1} parent=1 // pred_fallthru
      _
    // Predicated region
    $region226: #{_lambda_.1} parent=1 // pred_check
      _
    $region227: #{_lambda_.1} parent=1 // pred_check_branch
      %534 = sbr.rel (0) target = $region229
    $region228: #{_lambda_.1} parent=1 // pred_region
      %536 = dma.done [#allocation38], 512
    $region229: #{_lambda_.1} parent=1 // pred_fallthru
      _
    // Predicated region
    $region230: #{_lambda_.1} parent=1 // pred_check
      _
    $region231: #{_lambda_.1} parent=1 // pred_check_branch
      %538 = sbr.rel (0) target = $region233
    $region232: #{_lambda_.1} parent=1 // pred_region
      %540 = dma.done [#allocation41], 512
    $region233: #{_lambda_.1} parent=1 // pred_fallthru
      _
    %v542 = vld [vmem:[#allocation34] sm:$0xff]
    %v543 = vld [vmem:[#allocation34 + $0x8] sm:$0xff]
    %v544 = vld [vmem:[#allocation34 + $0x10] sm:$0xff]
    %v545 = vld [vmem:[#allocation34 + $0x18] sm:$0x7]
    %v546 = vld [vmem:[%s1] sm:$0x77]
    %v547 = vld [vmem:[%s1 + $0x8] sm:$0x77]
    %550 = vst [vmem:[#allocation1] ss:$2 sm:$0xff] %v546
    %s551 = scalar_lea.vmem [#allocation1], 16
    %552 = vst [vmem:[%s551] ss:$2 sm:$0xff] %v547
    %v553 = vld.sshfl [vmem:[#allocation1] sm:$0xff pattern:$0x75316420]
    %v554 = vld.sshfl [vmem:[#allocation1 + $0x8] sm:$0xff pattern:$0x75316420]
    %v555 = vld.sshfl [vmem:[#allocation1 + $0x10] sm:$0xff pattern:$0x75316420]
    %v556 = vld.sshfl [vmem:[#allocation1 + $0x18] sm:$0xff pattern:$0x75316420]
    %561 = vrot.lane.b32.xlu0 %v553, 17
    %v562 = vpop.permute.xlu0 %561
    %563 = vrot.lane.b32.xlu0 %v554, 17
    %v564 = vpop.permute.xlu0 %563
    %565 = vrot.lane.b32.xlu0 %v555, 17
    %v566 = vpop.permute.xlu0 %565
    %567 = vrot.lane.b32.xlu0 %v556, 17
    %v568 = vpop.permute.xlu0 %567
    %v569 = vlaneseq
    %v570 = vand.u32 %v569, 127
    %vm571 = vcmp.lt.s32.totalorder %v570, 17
    %v572 = vsel %vm571, %v566, %v568
    %v573 = vsel %vm571, %v564, %v566
    %v574 = vsel %vm571, %v562, %v564
    %v575 = vsel %vm571, %v568, %v562
    %v576 = vld [vmem:[#allocation27] ss:$8 sm:$0xf]
    %v578 = vperm.slane %v576, 0
    %v579 = vperm.slane %v576, 1
    %v580 = vperm.slane %v576, 2
    %v581 = vperm.slane %v576, 3
    %v586 = vmul.f32 %v575, %v578
    %v587 = vmul.f32 %v574, %v579
    %v588 = vmul.f32 %v573, %v580
    %v589 = vmul.f32 %v572, %v581
    %590 = vst [vmem:[#allocation1] ss:$2 sm:$0xff] %v546
    %s591 = scalar_lea.vmem [#allocation1], 16
    %592 = vst [vmem:[%s591] ss:$2 sm:$0xff] %v547
    %v593 = vld.sshfl [vmem:[#allocation1] sm:$0xff pattern:$0x75316420]
    %v594 = vld.sshfl [vmem:[#allocation1 + $0x8] sm:$0xff pattern:$0x75316420]
    %v595 = vld.sshfl [vmem:[#allocation1 + $0x10] sm:$0xff pattern:$0x75316420]
    %v596 = vld.sshfl [vmem:[#allocation1 + $0x18] sm:$0xff pattern:$0x75316420]
    %601 = vrot.lane.b32.xlu0 %v593, 16
    %v602 = vpop.permute.xlu0 %601
    %603 = vrot.lane.b32.xlu0 %v594, 16
    %v604 = vpop.permute.xlu0 %603
    %605 = vrot.lane.b32.xlu0 %v595, 16
    %v606 = vpop.permute.xlu0 %605
    %607 = vrot.lane.b32.xlu0 %v596, 16
    %v608 = vpop.permute.xlu0 %607
    %vm609 = vcmp.lt.s32.totalorder %v570, 16
    %v610 = vsel %vm609, %v606, %v608
    %v611 = vsel %vm609, %v604, %v606
    %v612 = vsel %vm609, %v602, %v604
    %v613 = vsel %vm609, %v608, %v602
    %s614 = scalar_lea.vmem [#allocation27], 1
    %v615 = vld [vmem:[%s614] ss:$8 sm:$0xf]
    %v617 = vperm.slane %v615, 0
    %v618 = vperm.slane %v615, 1
    %v619 = vperm.slane %v615, 2
    %v620 = vperm.slane %v615, 3
    %v625 = vmul.f32 %v613, %v617
    %v626 = vmul.f32 %v612, %v618
    %v627 = vmul.f32 %v611, %v619
    %v628 = vmul.f32 %v610, %v620
    %629 = vst [vmem:[#allocation1] ss:$2 sm:$0xff] %v546
    %s630 = scalar_lea.vmem [#allocation1], 16
    %631 = vst [vmem:[%s630] ss:$2 sm:$0xff] %v547
    %v632 = vld.sshfl [vmem:[#allocation1] sm:$0xff pattern:$0x75316420]
    %v633 = vld.sshfl [vmem:[#allocation1 + $0x8] sm:$0xff pattern:$0x75316420]
    %v634 = vld.sshfl [vmem:[#allocation1 + $0x10] sm:$0xff pattern:$0x75316420]
    %v635 = vld.sshfl [vmem:[#allocation1 + $0x18] sm:$0xff pattern:$0x75316420]
    %640 = vrot.lane.b32.xlu0 %v632, 15
    %v641 = vpop.permute.xlu0 %640
    %642 = vrot.lane.b32.xlu0 %v633, 15
    %v643 = vpop.permute.xlu0 %642
    %644 = vrot.lane.b32.xlu0 %v634, 15
    %v645 = vpop.permute.xlu0 %644
    %646 = vrot.lane.b32.xlu0 %v635, 15
    %v647 = vpop.permute.xlu0 %646
    %vm648 = vcmp.lt.s32.totalorder %v570, 15
    %v649 = vsel %vm648, %v645, %v647
    %v650 = vsel %vm648, %v643, %v645
    %v651 = vsel %vm648, %v641, %v643
    %v652 = vsel %vm648, %v647, %v641
    %s653 = scalar_lea.vmem [#allocation27], 2
    %v654 = vld [vmem:[%s653] ss:$8 sm:$0xf]
    %v656 = vperm.slane %v654, 0
    %v657 = vperm.slane %v654, 1
    %v658 = vperm.slane %v654, 2
    %v659 = vperm.slane %v654, 3
    %v664 = vmul.f32 %v652, %v656
    %v665 = vmul.f32 %v651, %v657
    %v666 = vmul.f32 %v650, %v658
    %v667 = vmul.f32 %v649, %v659
    %668 = vst [vmem:[#allocation1] ss:$2 sm:$0xff] %v546
    %s669 = scalar_lea.vmem [#allocation1], 16
    %670 = vst [vmem:[%s669] ss:$2 sm:$0xff] %v547
    %v671 = vld.sshfl [vmem:[#allocation1] sm:$0xff pattern:$0x75316420]
    %v672 = vld.sshfl [vmem:[#allocation1 + $0x8] sm:$0xff pattern:$0x75316420]
    %v673 = vld.sshfl [vmem:[#allocation1 + $0x10] sm:$0xff pattern:$0x75316420]
    %v674 = vld.sshfl [vmem:[#allocation1 + $0x18] sm:$0xff pattern:$0x75316420]
    %679 = vrot.lane.b32.xlu0 %v671, 1
    %v680 = vpop.permute.xlu0 %679
    %681 = vrot.lane.b32.xlu0 %v672, 1
    %v682 = vpop.permute.xlu0 %681
    %683 = vrot.lane.b32.xlu0 %v673, 1
    %v684 = vpop.permute.xlu0 %683
    %685 = vrot.lane.b32.xlu0 %v674, 1
    %v686 = vpop.permute.xlu0 %685
    %vm687 = vcmp.lt.s32.totalorder %v570, 1
    %v688 = vsel %vm687, %v684, %v686
    %v689 = vsel %vm687, %v682, %v684
    %v690 = vsel %vm687, %v680, %v682
    %v691 = vsel %vm687, %v686, %v680
    %s692 = scalar_lea.vmem [#allocation27], 3
    %v693 = vld [vmem:[%s692] ss:$8 sm:$0xf]
    %v695 = vperm.slane %v693, 0
    %v696 = vperm.slane %v693, 1
    %v697 = vperm.slane %v693, 2
    %v698 = vperm.slane %v693, 3
    %v703 = vmul.f32 %v691, %v695
    %v704 = vmul.f32 %v690, %v696
    %v705 = vmul.f32 %v689, %v697
    %v706 = vmul.f32 %v688, %v698
    %707 = vst [vmem:[#allocation1] ss:$2 sm:$0xff] %v546
    %s708 = scalar_lea.vmem [#allocation1], 16
    %709 = vst [vmem:[%s708] ss:$2 sm:$0xff] %v547
    %v710 = vld.sshfl [vmem:[#allocation1] sm:$0xff pattern:$0x75316420]
    %v711 = vld.sshfl [vmem:[#allocation1 + $0x8] sm:$0xff pattern:$0x75316420]
    %v712 = vld.sshfl [vmem:[#allocation1 + $0x10] sm:$0xff pattern:$0x75316420]
    %v713 = vld.sshfl [vmem:[#allocation1 + $0x18] sm:$0xff pattern:$0x75316420]
    %718 = vrot.lane.b32.xlu0 %v710, 127
    %v719 = vpop.permute.xlu0 %718
    %720 = vrot.lane.b32.xlu0 %v711, 127
    %v721 = vpop.permute.xlu0 %720
    %722 = vrot.lane.b32.xlu0 %v712, 127
    %v723 = vpop.permute.xlu0 %722
    %724 = vrot.lane.b32.xlu0 %v713, 127
    %v725 = vpop.permute.xlu0 %724
    %vm726 = vcmp.lt.s32.totalorder %v570, 127
    %v727 = vsel %vm726, %v723, %v725
    %v728 = vsel %vm726, %v721, %v723
    %v729 = vsel %vm726, %v719, %v721
    %v730 = vsel %vm726, %v725, %v719
    %s731 = scalar_lea.vmem [#allocation27], 5
    %v732 = vld [vmem:[%s731] ss:$8 sm:$0xf]
    %v734 = vperm.slane %v732, 0
    %v735 = vperm.slane %v732, 1
    %v736 = vperm.slane %v732, 2
    %v737 = vperm.slane %v732, 3
    %v742 = vmul.f32 %v729, %v734
    %v743 = vmul.f32 %v728, %v735
    %v744 = vmul.f32 %v727, %v736
    %v745 = vmul.f32 %v730, %v737
    %746 = vst [vmem:[#allocation1] ss:$2 sm:$0xff] %v546
    %s747 = scalar_lea.vmem [#allocation1], 16
    %748 = vst [vmem:[%s747] ss:$2 sm:$0xff] %v547
    %v749 = vld.sshfl [vmem:[#allocation1] sm:$0xff pattern:$0x75316420]
    %v750 = vld.sshfl [vmem:[#allocation1 + $0x8] sm:$0xff pattern:$0x75316420]
    %v751 = vld.sshfl [vmem:[#allocation1 + $0x10] sm:$0xff pattern:$0x75316420]
    %v752 = vld.sshfl [vmem:[#allocation1 + $0x18] sm:$0xff pattern:$0x75316420]
    %757 = vrot.lane.b32.xlu0 %v749, 113
    %v758 = vpop.permute.xlu0 %757
    %759 = vrot.lane.b32.xlu0 %v750, 113
    %v760 = vpop.permute.xlu0 %759
    %761 = vrot.lane.b32.xlu0 %v751, 113
    %v762 = vpop.permute.xlu0 %761
    %763 = vrot.lane.b32.xlu0 %v752, 113
    %v764 = vpop.permute.xlu0 %763
    %vm765 = vcmp.lt.s32.totalorder %v570, 113
    %v766 = vsel %vm765, %v762, %v764
    %v767 = vsel %vm765, %v760, %v762
    %v768 = vsel %vm765, %v758, %v760
    %v769 = vsel %vm765, %v764, %v758
    %s770 = scalar_lea.vmem [#allocation27], 6
    %v771 = vld [vmem:[%s770] ss:$8 sm:$0xf]
    %v773 = vperm.slane %v771, 0
    %v774 = vperm.slane %v771, 1
    %v775 = vperm.slane %v771, 2
    %v776 = vperm.slane %v771, 3
    %v781 = vmul.f32 %v768, %v773
    %v782 = vmul.f32 %v767, %v774
    %v783 = vmul.f32 %v766, %v775
    %v784 = vmul.f32 %v769, %v776
    %785 = vst [vmem:[#allocation1] ss:$2 sm:$0xff] %v546
    %s786 = scalar_lea.vmem [#allocation1], 16
    %787 = vst [vmem:[%s786] ss:$2 sm:$0xff] %v547
    %v788 = vld.sshfl [vmem:[#allocation1] sm:$0xff pattern:$0x75316420]
    %v789 = vld.sshfl [vmem:[#allocation1 + $0x8] sm:$0xff pattern:$0x75316420]
    %v790 = vld.sshfl [vmem:[#allocation1 + $0x10] sm:$0xff pattern:$0x75316420]
    %v791 = vld.sshfl [vmem:[#allocation1 + $0x18] sm:$0xff pattern:$0x75316420]
    %796 = vrot.lane.b32.xlu0 %v788, 112
    %v797 = vpop.permute.xlu0 %796
    %798 = vrot.lane.b32.xlu0 %v789, 112
    %v799 = vpop.permute.xlu0 %798
    %800 = vrot.lane.b32.xlu0 %v790, 112
    %v801 = vpop.permute.xlu0 %800
    %802 = vrot.lane.b32.xlu0 %v791, 112
    %v803 = vpop.permute.xlu0 %802
    %vm804 = vcmp.lt.s32.totalorder %v570, 112
    %v805 = vsel %vm804, %v801, %v803
    %v806 = vsel %vm804, %v799, %v801
    %v807 = vsel %vm804, %v797, %v799
    %v808 = vsel %vm804, %v803, %v797
    %s809 = scalar_lea.vmem [#allocation27], 7
    %v810 = vld [vmem:[%s809] ss:$8 sm:$0xf]
    %v812 = vperm.slane %v810, 0
    %v813 = vperm.slane %v810, 1
    %v814 = vperm.slane %v810, 2
    %v815 = vperm.slane %v810, 3
    %v820 = vmul.f32 %v807, %v812
    %v821 = vmul.f32 %v806, %v813
    %v822 = vmul.f32 %v805, %v814
    %v823 = vmul.f32 %v808, %v815
    %824 = vst [vmem:[#allocation1] ss:$2 sm:$0xff] %v546
    %s825 = scalar_lea.vmem [#allocation1], 16
    %826 = vst [vmem:[%s825] ss:$2 sm:$0xff] %v547
    %v827 = vld.sshfl [vmem:[#allocation1] sm:$0xff pattern:$0x75316420]
    %v828 = vld.sshfl [vmem:[#allocation1 + $0x8] sm:$0xff pattern:$0x75316420]
    %v829 = vld.sshfl [vmem:[#allocation1 + $0x10] sm:$0xff pattern:$0x75316420]
    %v830 = vld.sshfl [vmem:[#allocation1 + $0x18] sm:$0xff pattern:$0x75316420]
    %835 = vrot.lane.b32.xlu0 %v827, 111
    %v836 = vpop.permute.xlu0 %835
    %837 = vrot.lane.b32.xlu0 %v828, 111
    %v838 = vpop.permute.xlu0 %837
    %839 = vrot.lane.b32.xlu0 %v829, 111
    %v840 = vpop.permute.xlu0 %839
    %841 = vrot.lane.b32.xlu0 %v830, 111
    %v842 = vpop.permute.xlu0 %841
    %vm843 = vcmp.lt.s32.totalorder %v570, 111
    %v844 = vsel %vm843, %v840, %v842
    %v845 = vsel %vm843, %v838, %v840
    %v846 = vsel %vm843, %v836, %v838
    %v847 = vsel %vm843, %v842, %v836
    %s848 = scalar_lea.vmem [#allocation27], 32
    %v849 = vld [vmem:[%s848] ss:$8 sm:$0xf]
    %v851 = vperm.slane %v849, 0
    %v852 = vperm.slane %v849, 1
    %v853 = vperm.slane %v849, 2
    %v854 = vperm.slane %v849, 3
    %v859 = vmul.f32 %v846, %v851
    %v860 = vmul.f32 %v845, %v852
    %v861 = vmul.f32 %v844, %v853
    %v862 = vmul.f32 %v847, %v854
    %v867 = vrot.slane %v625, 5
    %v868 = vrot.slane %v626, 5
    %v869 = vrot.slane %v627, 5
    %v870 = vrot.slane %v628, 5
    %v879 = vrot.slane %v664, 2
    %v880 = vrot.slane %v665, 2
    %v881 = vrot.slane %v666, 2
    %v882 = vrot.slane %v667, 2
    %v891 = vrot.slane %v703, 7
    %v892 = vrot.slane %v704, 7
    %v893 = vrot.slane %v705, 7
    %v894 = vrot.slane %v706, 7
    %s899 = scalar_lea.vmem [#allocation1], 1
    %900 = vst [vmem:[%s899] ss:$2 sm:$0xff] %v546
    %s901 = scalar_lea.vmem [#allocation1], 17
    %902 = vst [vmem:[%s901] ss:$2 sm:$0xff] %v547
    %v903 = vld.sshfl [vmem:[#allocation1] sm:$0xff pattern:$0x75316420]
    %v904 = vld.sshfl [vmem:[#allocation1 + $0x8] sm:$0xff pattern:$0x75316420]
    %v905 = vld.sshfl [vmem:[#allocation1 + $0x10] sm:$0xff pattern:$0x75316420]
    %v906 = vld.sshfl [vmem:[#allocation1 + $0x18] sm:$0xff pattern:$0x75316420]
    %v915 = vrot.slane %v742, 1
    %v916 = vrot.slane %v743, 1
    %v917 = vrot.slane %v744, 1
    %v918 = vrot.slane %v745, 1
    %v927 = vrot.slane %v781, 6
    %v928 = vrot.slane %v782, 6
    %v929 = vrot.slane %v783, 6
    %v930 = vrot.slane %v784, 6
    %v939 = vrot.slane %v820, 3
    %v940 = vrot.slane %v821, 3
    %v941 = vrot.slane %v822, 3
    %v942 = vrot.slane %v823, 3
    %vm947 = vcmask 1042432
    %v948 = vsel %vm947, %v586, %v867
    %v949 = vsel %vm947, %v587, %v868
    %v950 = vsel %vm947, %v588, %v869
    %v951 = vsel %vm947, %v589, %v870
    %vm952 = vcmask 1045504
    %v953 = vsel %vm952, %v948, %v879
    %v954 = vsel %vm952, %v949, %v880
    %v955 = vsel %vm952, %v950, %v881
    %v956 = vsel %vm952, %v951, %v882
    %vm957 = vcmask 1040384
    %v958 = vsel %vm957, %v879, %v891
    %v959 = vsel %vm957, %v880, %v892
    %v960 = vsel %vm957, %v881, %v893
    %v961 = vsel %vm957, %v882, %v894
    %vm962 = vcmask 1043456
    %v963 = vsel %vm962, %v958, %v903
    %v964 = vsel %vm962, %v959, %v904
    %v965 = vsel %vm962, %v960, %v905
    %v966 = vsel %vm962, %v961, %v906
    %vm967 = vcmask 1046528
    %v968 = vsel %vm967, %v963, %v915
    %v969 = vsel %vm967, %v964, %v916
    %v970 = vsel %vm967, %v965, %v917
    %v971 = vsel %vm967, %v966, %v918
    %vm972 = vcmask 1041408
    %v973 = vsel %vm972, %v915, %v927
    %v974 = vsel %vm972, %v916, %v928
    %v975 = vsel %vm972, %v917, %v929
    %v976 = vsel %vm972, %v918, %v930
    %vm977 = vcmask 1044480
    %v978 = vsel %vm977, %v973, %v939
    %v979 = vsel %vm977, %v974, %v940
    %v980 = vsel %vm977, %v975, %v941
    %v981 = vsel %vm977, %v976, %v942
    %v982 = vld [vmem:[%s3] sm:$0xf]
    %v983 = vpack.c.bf16 %v968, %v953
    %v984 = vpack.c.bf16 %v969, %v954
    %v985 = vpack.c.bf16 %v970, %v955
    %v986 = vpack.c.bf16 %v971, %v956
    %v987 = vpack.c.bf16 %v859, %v978
    %v988 = vpack.c.bf16 %v860, %v979
    %v989 = vpack.c.bf16 %v861, %v980
    %v990 = vpack.c.bf16 %v862, %v981
    %v991 = vld [vmem:[%s5] sm:$0xff]
    %993 = vset.pattern.permute.xlu0 0
    %994 = vperm.xlu0 %993, %v991
    %v995 = vpop.permute.xlu0 %994
    %vm997 = vcmask 220160
    %v999 = vsel %vm997, %v982, 0
    %v1001 = vsel %vm977, 4294967295, 65535
    %v1002 = vsel %vm952, %v1001, 0
    %v1004 = vand.u32 %v987, %v1002
    %v1007 = vand.u32 %v988, %v1002
    %v1010 = vand.u32 %v989, %v1002
    %v1013 = vand.u32 %v990, %v1002
    %1015 = vmatpush.bf16.msra.mxu0 0
    %1016 = vmatpush.bf16.msra.mxu0 0
    %1017 = vmatpush.bf16.msra.mxu0 0
    %1018 = vmatpush.bf16.msra.mxu0 0
    %1019 = vmatpush.bf16.msra.mxu0 0
    %1020 = vmatpush.bf16.msra.mxu0 0
    %1021 = vmatpush.bf16.msra.mxu0 %v1004
    %1022 = vmatpush.bf16.msra.mxu0 %v983
    %1023 = vmatmul.bf16.gmra.mxu0 %v999
    %v1024 = vpop.f32.mrf.mxu0
    %v1025 = vadd.f32 %v995, %v1024
    %v1026 = vpop.f32.mrf.mxu0
    %1027 = vdwg.mxu0
    %1028 = vmatpush.bf16.msra.mxu0 0
    %1029 = vmatpush.bf16.msra.mxu0 0
    %1030 = vmatpush.bf16.msra.mxu0 0
    %1031 = vmatpush.bf16.msra.mxu0 0
    %1032 = vmatpush.bf16.msra.mxu0 0
    %1033 = vmatpush.bf16.msra.mxu0 0
    %1034 = vmatpush.bf16.msra.mxu0 %v1007
    %1035 = vmatpush.bf16.msra.mxu0 %v984
    %1036 = vmatmul.bf16.gmra.mxu0 %v999
    %v1037 = vpop.f32.mrf.mxu0
    %v1038 = vadd.f32 %v995, %v1037
    %v1039 = vpop.f32.mrf.mxu0
    %1040 = vdwg.mxu0
    %1041 = vmatpush.bf16.msra.mxu0 0
    %1042 = vmatpush.bf16.msra.mxu0 0
    %1043 = vmatpush.bf16.msra.mxu0 0
    %1044 = vmatpush.bf16.msra.mxu0 0
    %1045 = vmatpush.bf16.msra.mxu0 0
    %1046 = vmatpush.bf16.msra.mxu0 0
    %1047 = vmatpush.bf16.msra.mxu0 %v1010
    %1048 = vmatpush.bf16.msra.mxu0 %v985
    %1049 = vmatmul.bf16.gmra.mxu0 %v999
    %v1050 = vpop.f32.mrf.mxu0
    %v1051 = vadd.f32 %v995, %v1050
    %v1052 = vpop.f32.mrf.mxu0
    %1053 = vdwg.mxu0
    %1054 = vmatpush.bf16.msra.mxu0 0
    %1055 = vmatpush.bf16.msra.mxu0 0
    %1056 = vmatpush.bf16.msra.mxu0 0
    %1057 = vmatpush.bf16.msra.mxu0 0
    %1058 = vmatpush.bf16.msra.mxu0 0
    %1059 = vmatpush.bf16.msra.mxu0 0
    %1060 = vmatpush.bf16.msra.mxu0 %v1013
    %1061 = vmatpush.bf16.msra.mxu0 %v986
    %1062 = vmatmul.bf16.gmra.mxu0 %v999
    %v1063 = vpop.f32.mrf.mxu0
    %v1064 = vadd.f32 %v995, %v1063
    %v1065 = vpop.f32.mrf.mxu0
    %1066 = vdwg.mxu0
    %vm1067 = vcmp.gt.f32.partialorder %v1025, 0.0
    %vm1068 = vcmp.gt.f32.partialorder %v1038, 0.0
    %vm1069 = vcmp.gt.f32.partialorder %v1051, 0.0
    %vm1070 = vcmp.gt.f32.partialorder %v1064, 0.0
    %v1071 = vmul.f32 %v1025, 0.1
    %v1072 = vmul.f32 %v1038, 0.1
    %v1073 = vmul.f32 %v1051, 0.1
    %v1074 = vmul.f32 %v1064, 0.1
    %v1075 = vsel %vm1067, %v1025, %v1071
    %v1076 = vsel %vm1068, %v1038, %v1072
    %v1077 = vsel %vm1069, %v1051, %v1073
    %v1078 = vsel %vm1070, %v1064, %v1074
    %1079 = vrot.lane.b32.xlu0 %v1075, 17
    %v1080 = vpop.permute.xlu0 %1079
    %1081 = vrot.lane.b32.xlu0 %v1076, 17
    %v1082 = vpop.permute.xlu0 %1081
    %1083 = vrot.lane.b32.xlu0 %v1077, 17
    %v1084 = vpop.permute.xlu0 %1083
    %1085 = vrot.lane.b32.xlu0 %v1078, 17
    %v1086 = vpop.permute.xlu0 %1085
    %v1087 = vsel %vm571, %v1084, %v1086
    %v1088 = vsel %vm571, %v1082, %v1084
    %v1089 = vsel %vm571, %v1080, %v1082
    %v1090 = vsel %vm571, %v1086, %v1080
    %v1091 = vmul.f32 %v1090, %v578
    %v1092 = vmul.f32 %v1089, %v579
    %v1093 = vmul.f32 %v1088, %v580
    %v1094 = vmul.f32 %v1087, %v581
    %1095 = vrot.lane.b32.xlu0 %v1075, 16
    %v1096 = vpop.permute.xlu0 %1095
    %1097 = vrot.lane.b32.xlu0 %v1076, 16
    %v1098 = vpop.permute.xlu0 %1097
    %1099 = vrot.lane.b32.xlu0 %v1077, 16
    %v1100 = vpop.permute.xlu0 %1099
    %1101 = vrot.lane.b32.xlu0 %v1078, 16
    %v1102 = vpop.permute.xlu0 %1101
    %v1103 = vsel %vm609, %v1100, %v1102
    %v1104 = vsel %vm609, %v1098, %v1100
    %v1105 = vsel %vm609, %v1096, %v1098
    %v1106 = vsel %vm609, %v1102, %v1096
    %v1107 = vmul.f32 %v1106, %v617
    %v1108 = vmul.f32 %v1105, %v618
    %v1109 = vmul.f32 %v1104, %v619
    %v1110 = vmul.f32 %v1103, %v620
    %1111 = vrot.lane.b32.xlu0 %v1075, 15
    %v1112 = vpop.permute.xlu0 %1111
    %1113 = vrot.lane.b32.xlu0 %v1076, 15
    %v1114 = vpop.permute.xlu0 %1113
    %1115 = vrot.lane.b32.xlu0 %v1077, 15
    %v1116 = vpop.permute.xlu0 %1115
    %1117 = vrot.lane.b32.xlu0 %v1078, 15
    %v1118 = vpop.permute.xlu0 %1117
    %v1119 = vsel %vm648, %v1116, %v1118
    %v1120 = vsel %vm648, %v1114, %v1116
    %v1121 = vsel %vm648, %v1112, %v1114
    %v1122 = vsel %vm648, %v1118, %v1112
    %v1123 = vmul.f32 %v1122, %v656
    %v1124 = vmul.f32 %v1121, %v657
    %v1125 = vmul.f32 %v1120, %v658
    %v1126 = vmul.f32 %v1119, %v659
    %1127 = vrot.lane.b32.xlu0 %v1075, 1
    %v1128 = vpop.permute.xlu0 %1127
    %1129 = vrot.lane.b32.xlu0 %v1076, 1
    %v1130 = vpop.permute.xlu0 %1129
    %1131 = vrot.lane.b32.xlu0 %v1077, 1
    %v1132 = vpop.permute.xlu0 %1131
    %1133 = vrot.lane.b32.xlu0 %v1078, 1
    %v1134 = vpop.permute.xlu0 %1133
    %v1135 = vsel %vm687, %v1132, %v1134
    %v1136 = vsel %vm687, %v1130, %v1132
    %v1137 = vsel %vm687, %v1128, %v1130
    %v1138 = vsel %vm687, %v1134, %v1128
    %v1139 = vmul.f32 %v1138, %v695
    %v1140 = vmul.f32 %v1137, %v696
    %v1141 = vmul.f32 %v1136, %v697
    %v1142 = vmul.f32 %v1135, %v698
    %1143 = vrot.lane.b32.xlu0 %v1075, 127
    %v1144 = vpop.permute.xlu0 %1143
    %1145 = vrot.lane.b32.xlu0 %v1076, 127
    %v1146 = vpop.permute.xlu0 %1145
    %1147 = vrot.lane.b32.xlu0 %v1077, 127
    %v1148 = vpop.permute.xlu0 %1147
    %1149 = vrot.lane.b32.xlu0 %v1078, 127
    %v1150 = vpop.permute.xlu0 %1149
    %v1151 = vsel %vm726, %v1148, %v1150
    %v1152 = vsel %vm726, %v1146, %v1148
    %v1153 = vsel %vm726, %v1144, %v1146
    %v1154 = vsel %vm726, %v1150, %v1144
    %v1155 = vmul.f32 %v1153, %v734
    %v1156 = vmul.f32 %v1152, %v735
    %v1157 = vmul.f32 %v1151, %v736
    %v1158 = vmul.f32 %v1154, %v737
    %1159 = vrot.lane.b32.xlu0 %v1075, 113
    %v1160 = vpop.permute.xlu0 %1159
    %1161 = vrot.lane.b32.xlu0 %v1076, 113
    %v1162 = vpop.permute.xlu0 %1161
    %1163 = vrot.lane.b32.xlu0 %v1077, 113
    %v1164 = vpop.permute.xlu0 %1163
    %1165 = vrot.lane.b32.xlu0 %v1078, 113
    %v1166 = vpop.permute.xlu0 %1165
    %v1167 = vsel %vm765, %v1164, %v1166
    %v1168 = vsel %vm765, %v1162, %v1164
    %v1169 = vsel %vm765, %v1160, %v1162
    %v1170 = vsel %vm765, %v1166, %v1160
    %v1171 = vmul.f32 %v1169, %v773
    %v1172 = vmul.f32 %v1168, %v774
    %v1173 = vmul.f32 %v1167, %v775
    %v1174 = vmul.f32 %v1170, %v776
    %1175 = vrot.lane.b32.xlu0 %v1075, 112
    %v1176 = vpop.permute.xlu0 %1175
    %1177 = vrot.lane.b32.xlu0 %v1076, 112
    %v1178 = vpop.permute.xlu0 %1177
    %1179 = vrot.lane.b32.xlu0 %v1077, 112
    %v1180 = vpop.permute.xlu0 %1179
    %1181 = vrot.lane.b32.xlu0 %v1078, 112
    %v1182 = vpop.permute.xlu0 %1181
    %v1183 = vsel %vm804, %v1180, %v1182
    %v1184 = vsel %vm804, %v1178, %v1180
    %v1185 = vsel %vm804, %v1176, %v1178
    %v1186 = vsel %vm804, %v1182, %v1176
    %v1187 = vmul.f32 %v1185, %v812
    %v1188 = vmul.f32 %v1184, %v813
    %v1189 = vmul.f32 %v1183, %v814
    %v1190 = vmul.f32 %v1186, %v815
    %1191 = vrot.lane.b32.xlu0 %v1075, 111
    %v1192 = vpop.permute.xlu0 %1191
    %1193 = vrot.lane.b32.xlu0 %v1076, 111
    %v1194 = vpop.permute.xlu0 %1193
    %1195 = vrot.lane.b32.xlu0 %v1077, 111
    %v1196 = vpop.permute.xlu0 %1195
    %1197 = vrot.lane.b32.xlu0 %v1078, 111
    %v1198 = vpop.permute.xlu0 %1197
    %v1199 = vsel %vm843, %v1196, %v1198
    %v1200 = vsel %vm843, %v1194, %v1196
    %v1201 = vsel %vm843, %v1192, %v1194
    %v1202 = vsel %vm843, %v1198, %v1192
    %v1203 = vmul.f32 %v1201, %v851
    %v1204 = vmul.f32 %v1200, %v852
    %v1205 = vmul.f32 %v1199, %v853
    %v1206 = vmul.f32 %v1202, %v854
    %v1207 = vld [vmem:[#allocation2] sm:$0xf]
    %v1208 = vld [vmem:[#allocation2 + $0x4] sm:$0xf]
    %v1209 = vpack.c.bf16 %v1107, %v1091
    %v1210 = vpack.c.bf16 %v1108, %v1092
    %v1211 = vpack.c.bf16 %v1109, %v1093
    %v1212 = vpack.c.bf16 %v1110, %v1094
    %v1213 = vpack.c.bf16 %v1139, %v1123
    %v1214 = vpack.c.bf16 %v1140, %v1124
    %v1215 = vpack.c.bf16 %v1141, %v1125
    %v1216 = vpack.c.bf16 %v1142, %v1126
    %v1217 = vpack.c.bf16 %v1155, %v1075
    %v1218 = vpack.c.bf16 %v1156, %v1076
    %v1219 = vpack.c.bf16 %v1157, %v1077
    %v1220 = vpack.c.bf16 %v1158, %v1078
    %v1221 = vpack.c.bf16 %v1187, %v1171
    %v1222 = vpack.c.bf16 %v1188, %v1172
    %v1223 = vpack.c.bf16 %v1189, %v1173
    %v1224 = vpack.c.bf16 %v1190, %v1174
    %v1225 = vpack.c.bf16 %v1203, %v1203
    %v1226 = vpack.c.bf16 %v1204, %v1204
    %v1227 = vpack.c.bf16 %v1205, %v1205
    %v1228 = vpack.c.bf16 %v1206, %v1206
    %v1231 = vunpack.c.l.b16 %v1207
    %v1232 = vunpack.c.l.b16 %v1208
    %v1233 = vpack.c.b16 %v1232, %v1231
    %vm1234 = vcmask 588800
    %v1236 = vsel %vm1234, %v1233, 0
    %v1239 = vsel %vm962, %v1225, 0
    %v1242 = vsel %vm962, %v1226, 0
    %v1245 = vsel %vm962, %v1227, 0
    %v1248 = vsel %vm962, %v1228, 0
    %1250 = vmatpush.bf16.msra.mxu0 0
    %1251 = vmatpush.bf16.msra.mxu0 0
    %1252 = vmatpush.bf16.msra.mxu0 0
    %1253 = vmatpush.bf16.msra.mxu0 %v1239
    %1254 = vmatpush.bf16.msra.mxu0 %v1221
    %1255 = vmatpush.bf16.msra.mxu0 %v1217
    %1256 = vmatpush.bf16.msra.mxu0 %v1213
    %1257 = vmatpush.bf16.msra.mxu0 %v1209
    %1258 = vmatmul.bf16.gmra.mxu0 %v1236
    %v1259 = vpop.f32.mrf.mxu0
    %v1260 = vadd.f32 0.0, %v1259
    %v1261 = vpop.f32.mrf.mxu0
    %v1262 = vadd.f32 0.0, %v1261
    %1263 = vdwg.mxu0
    %1264 = vmatpush.bf16.msra.mxu0 0
    %1265 = vmatpush.bf16.msra.mxu0 0
    %1266 = vmatpush.bf16.msra.mxu0 0
    %1267 = vmatpush.bf16.msra.mxu0 %v1242
    %1268 = vmatpush.bf16.msra.mxu0 %v1222
    %1269 = vmatpush.bf16.msra.mxu0 %v1218
    %1270 = vmatpush.bf16.msra.mxu0 %v1214
    %1271 = vmatpush.bf16.msra.mxu0 %v1210
    %1272 = vmatmul.bf16.gmra.mxu0 %v1236
    %v1273 = vpop.f32.mrf.mxu0
    %v1274 = vadd.f32 0.0, %v1273
    %v1275 = vpop.f32.mrf.mxu0
    %v1276 = vadd.f32 0.0, %v1275
    %1277 = vdwg.mxu0
    %1278 = vmatpush.bf16.msra.mxu0 0
    %1279 = vmatpush.bf16.msra.mxu0 0
    %1280 = vmatpush.bf16.msra.mxu0 0
    %1281 = vmatpush.bf16.msra.mxu0 %v1245
    %1282 = vmatpush.bf16.msra.mxu0 %v1223
    %1283 = vmatpush.bf16.msra.mxu0 %v1219
    %1284 = vmatpush.bf16.msra.mxu0 %v1215
    %1285 = vmatpush.bf16.msra.mxu0 %v1211
    %1286 = vmatmul.bf16.gmra.mxu0 %v1236
    %v1287 = vpop.f32.mrf.mxu0
    %v1288 = vadd.f32 0.0, %v1287
    %v1289 = vpop.f32.mrf.mxu0
    %v1290 = vadd.f32 0.0, %v1289
    %1291 = vdwg.mxu0
    %1292 = vmatpush.bf16.msra.mxu0 0
    %1293 = vmatpush.bf16.msra.mxu0 0
    %1294 = vmatpush.bf16.msra.mxu0 0
    %1295 = vmatpush.bf16.msra.mxu0 %v1248
    %1296 = vmatpush.bf16.msra.mxu0 %v1224
    %1297 = vmatpush.bf16.msra.mxu0 %v1220
    %1298 = vmatpush.bf16.msra.mxu0 %v1216
    %1299 = vmatpush.bf16.msra.mxu0 %v1212
    %1300 = vmatmul.bf16.gmra.mxu0 %v1236
    %v1301 = vpop.f32.mrf.mxu0
    %v1302 = vadd.f32 0.0, %v1301
    %v1303 = vpop.f32.mrf.mxu0
    %v1304 = vadd.f32 0.0, %v1303
    %1305 = vdwg.mxu0
    %v1306 = vpack.c.bf16 %v1262, %v1260
    %v1307 = vpack.c.bf16 %v1276, %v1274
    %v1308 = vpack.c.bf16 %v1290, %v1288
    %v1309 = vpack.c.bf16 %v1304, %v1302
    %v1310 = vld [vmem:[%s49] sm:$0xf]
    %v1311 = vld [vmem:[%s49 + $0x4] sm:$0xf]
    %v1312 = vld [vmem:[%s49 + $0x8] sm:$0xf]
    %v1313 = vld [vmem:[%s49 + $0xc] sm:$0xf]
    %v1314 = vld [vmem:[%s49 + $0x10] sm:$0xf]
    %v1315 = vld [vmem:[%s49 + $0x14] sm:$0xf]
    %v1316 = vld [vmem:[%s49 + $0x18] sm:$0xf]
    %v1317 = vld [vmem:[%s49 + $0x1c] sm:$0xf]
    %v1318 = vld [vmem:[%s49 + $0x20] sm:$0xf]
    %v1319 = vld [vmem:[%s49 + $0x24] sm:$0xf]
    %v1320 = vld [vmem:[%s49 + $0x28] sm:$0xf]
    %v1321 = vld [vmem:[%s49 + $0x2c] sm:$0xf]
    %v1322 = vld [vmem:[%s49 + $0x30] sm:$0xf]
    %v1323 = vld [vmem:[%s49 + $0x34] sm:$0xf]
    %v1324 = vld [vmem:[%s49 + $0x38] sm:$0xf]
    %v1325 = vld [vmem:[%s49 + $0x3c] sm:$0xf]
    %v1326 = vld [vmem:[%s49 + $0x40] sm:$0xf]
    %v1327 = vld [vmem:[%s49 + $0x44] sm:$0xf]
    %v1328 = vld [vmem:[%s49 + $0x48] sm:$0xf]
    %v1329 = vld [vmem:[%s49 + $0x4c] sm:$0xf]
    %v1330 = vld [vmem:[%s49 + $0x50] sm:$0xf]
    %v1331 = vld [vmem:[%s49 + $0x54] sm:$0xf]
    %v1332 = vld [vmem:[%s49 + $0x58] sm:$0xf]
    %v1333 = vld [vmem:[%s49 + $0x5c] sm:$0xf]
    %v1334 = vld [vmem:[%s49 + $0x60] sm:$0xf]
    %v1335 = vld [vmem:[%s49 + $0x64] sm:$0xf]
    %v1336 = vld [vmem:[%s49 + $0x68] sm:$0xf]
    %v1337 = vld [vmem:[%s49 + $0x6c] sm:$0xf]
    %v1338 = vld [vmem:[%s49 + $0x70] sm:$0xf]
    %v1339 = vld [vmem:[%s49 + $0x74] sm:$0xf]
    %v1340 = vld [vmem:[%s49 + $0x78] sm:$0xf]
    %v1341 = vld [vmem:[%s49 + $0x7c] sm:$0xf]
    %v1342 = vld [vmem:[%s49 + $0x80] sm:$0xf]
    %v1343 = vld [vmem:[%s49 + $0x84] sm:$0xf]
    %v1344 = vld [vmem:[%s49 + $0x88] sm:$0xf]
    %v1345 = vld [vmem:[%s49 + $0x8c] sm:$0xf]
    %v1346 = vld [vmem:[%s49 + $0x90] sm:$0xf]
    %v1347 = vld [vmem:[%s49 + $0x94] sm:$0xf]
    %v1348 = vld [vmem:[%s49 + $0x98] sm:$0xf]
    %v1349 = vld [vmem:[%s49 + $0x9c] sm:$0xf]
    %v1350 = vld [vmem:[%s49 + $0xa0] sm:$0xf]
    %v1351 = vld [vmem:[%s49 + $0xa4] sm:$0xf]
    %v1352 = vld [vmem:[%s49 + $0xa8] sm:$0xf]
    %v1353 = vld [vmem:[%s49 + $0xac] sm:$0xf]
    %v1354 = vld [vmem:[%s49 + $0xb0] sm:$0xf]
    %v1355 = vld [vmem:[%s49 + $0xb4] sm:$0xf]
    %v1356 = vld [vmem:[%s49 + $0xb8] sm:$0xf]
    %v1357 = vld [vmem:[%s49 + $0xbc] sm:$0xf]
    %v1358 = vld [vmem:[%s49 + $0xc0] sm:$0xf]
    %v1359 = vld [vmem:[%s49 + $0xc4] sm:$0xf]
    %v1360 = vld [vmem:[%s49 + $0xc8] sm:$0xf]
    %v1361 = vld [vmem:[%s49 + $0xcc] sm:$0xf]
    %v1362 = vld [vmem:[%s49 + $0xd0] sm:$0xf]
    %v1363 = vld [vmem:[%s49 + $0xd4] sm:$0xf]
    %v1364 = vld [vmem:[%s49 + $0xd8] sm:$0xf]
    %v1365 = vld [vmem:[%s49 + $0xdc] sm:$0xf]
    %v1366 = vld [vmem:[%s49 + $0xe0] sm:$0xf]
    %v1367 = vld [vmem:[%s49 + $0xe4] sm:$0xf]
    %v1368 = vld [vmem:[%s49 + $0xe8] sm:$0xf]
    %v1369 = vld [vmem:[%s49 + $0xec] sm:$0xf]
    %v1370 = vld [vmem:[%s49 + $0xf0] sm:$0xf]
    %v1371 = vld [vmem:[%s49 + $0xf4] sm:$0xf]
    %v1372 = vld [vmem:[%s49 + $0xf8] sm:$0xf]
    %v1373 = vld [vmem:[%s49 + $0xfc] sm:$0xf]
    %v1374 = vld [vmem:[%s9] sm:$0xff]
    %v1375 = vld [vmem:[%s9 + $0x8] sm:$0xff]
    %1377 = vset.pattern.permute.xlu0 0
    %1378 = vperm.xlu0 %1377, %v1374
    %v1379 = vpop.permute.xlu0 %1378
    %1382 = vset.pattern.permute.xlu0 0
    %1383 = vperm.xlu0 %1382, %v1375
    %v1384 = vpop.permute.xlu0 %1383
    %v1450 = vunpack.c.l.b16 %v1310
    %v1451 = vunpack.c.l.b16 %v1311
    %v1452 = vunpack.c.l.b16 %v1312
    %v1453 = vunpack.c.l.b16 %v1313
    %v1454 = vunpack.c.l.b16 %v1314
    %v1455 = vunpack.c.l.b16 %v1315
    %v1456 = vunpack.c.l.b16 %v1316
    %v1457 = vunpack.c.l.b16 %v1317
    %v1458 = vunpack.c.l.b16 %v1318
    %v1459 = vunpack.c.l.b16 %v1319
    %v1460 = vunpack.c.l.b16 %v1320
    %v1461 = vunpack.c.l.b16 %v1321
    %v1462 = vunpack.c.l.b16 %v1322
    %v1463 = vunpack.c.l.b16 %v1323
    %v1464 = vunpack.c.l.b16 %v1324
    %v1465 = vunpack.c.l.b16 %v1325
    %v1466 = vunpack.c.l.b16 %v1326
    %v1467 = vunpack.c.l.b16 %v1327
    %v1468 = vunpack.c.l.b16 %v1328
    %v1469 = vunpack.c.l.b16 %v1329
    %v1470 = vunpack.c.l.b16 %v1330
    %v1471 = vunpack.c.l.b16 %v1331
    %v1472 = vunpack.c.l.b16 %v1332
    %v1473 = vunpack.c.l.b16 %v1333
    %v1474 = vunpack.c.l.b16 %v1334
    %v1475 = vunpack.c.l.b16 %v1335
    %v1476 = vunpack.c.l.b16 %v1336
    %v1477 = vunpack.c.l.b16 %v1337
    %v1478 = vunpack.c.l.b16 %v1338
    %v1479 = vunpack.c.l.b16 %v1339
    %v1480 = vunpack.c.l.b16 %v1340
    %v1481 = vunpack.c.l.b16 %v1341
    %v1482 = vunpack.c.l.b16 %v1342
    %v1483 = vunpack.c.l.b16 %v1343
    %v1484 = vunpack.c.l.b16 %v1344
    %v1485 = vunpack.c.l.b16 %v1345
    %v1486 = vunpack.c.l.b16 %v1346
    %v1487 = vunpack.c.l.b16 %v1347
    %v1488 = vunpack.c.l.b16 %v1348
    %v1489 = vunpack.c.l.b16 %v1349
    %v1490 = vunpack.c.l.b16 %v1350
    %v1491 = vunpack.c.l.b16 %v1351
    %v1492 = vunpack.c.l.b16 %v1352
    %v1493 = vunpack.c.l.b16 %v1353
    %v1494 = vunpack.c.l.b16 %v1354
    %v1495 = vunpack.c.l.b16 %v1355
    %v1496 = vunpack.c.l.b16 %v1356
    %v1497 = vunpack.c.l.b16 %v1357
    %v1498 = vunpack.c.l.b16 %v1358
    %v1499 = vunpack.c.l.b16 %v1359
    %v1500 = vunpack.c.l.b16 %v1360
    %v1501 = vunpack.c.l.b16 %v1361
    %v1502 = vunpack.c.l.b16 %v1362
    %v1503 = vunpack.c.l.b16 %v1363
    %v1504 = vunpack.c.l.b16 %v1364
    %v1505 = vunpack.c.l.b16 %v1365
    %v1506 = vunpack.c.l.b16 %v1366
    %v1507 = vunpack.c.l.b16 %v1367
    %v1508 = vunpack.c.l.b16 %v1368
    %v1509 = vunpack.c.l.b16 %v1369
    %v1510 = vunpack.c.l.b16 %v1370
    %v1511 = vunpack.c.l.b16 %v1371
    %v1512 = vunpack.c.l.b16 %v1372
    %v1513 = vunpack.c.l.b16 %v1373
    %v1514 = vpack.c.b16 %v1451, %v1450
    %v1515 = vpack.c.b16 %v1453, %v1452
    %v1516 = vpack.c.b16 %v1455, %v1454
    %v1517 = vpack.c.b16 %v1457, %v1456
    %v1518 = vpack.c.b16 %v1459, %v1458
    %v1519 = vpack.c.b16 %v1461, %v1460
    %v1520 = vpack.c.b16 %v1463, %v1462
    %v1521 = vpack.c.b16 %v1465, %v1464
    %v1522 = vpack.c.b16 %v1467, %v1466
    %v1523 = vpack.c.b16 %v1469, %v1468
    %v1524 = vpack.c.b16 %v1471, %v1470
    %v1525 = vpack.c.b16 %v1473, %v1472
    %v1526 = vpack.c.b16 %v1475, %v1474
    %v1527 = vpack.c.b16 %v1477, %v1476
    %v1528 = vpack.c.b16 %v1479, %v1478
    %v1529 = vpack.c.b16 %v1481, %v1480
    %v1530 = vpack.c.b16 %v1483, %v1482
    %v1531 = vpack.c.b16 %v1485, %v1484
    %v1532 = vpack.c.b16 %v1487, %v1486
    %v1533 = vpack.c.b16 %v1489, %v1488
    %v1534 = vpack.c.b16 %v1491, %v1490
    %v1535 = vpack.c.b16 %v1493, %v1492
    %v1536 = vpack.c.b16 %v1495, %v1494
    %v1537 = vpack.c.b16 %v1497, %v1496
    %v1538 = vpack.c.b16 %v1499, %v1498
    %v1539 = vpack.c.b16 %v1501, %v1500
    %v1540 = vpack.c.b16 %v1503, %v1502
    %v1541 = vpack.c.b16 %v1505, %v1504
    %v1542 = vpack.c.b16 %v1507, %v1506
    %v1543 = vpack.c.b16 %v1509, %v1508
    %v1544 = vpack.c.b16 %v1511, %v1510
    %v1545 = vpack.c.b16 %v1513, %v1512
    %1578 = vmatpush.bf16.msra.mxu0 %v1521
    %1579 = vmatpush.bf16.msra.mxu0 %v1520
    %1580 = vmatpush.bf16.msra.mxu0 %v1519
    %1581 = vmatpush.bf16.msra.mxu0 %v1518
    %1582 = vmatpush.bf16.msra.mxu0 %v1517
    %1583 = vmatpush.bf16.msra.mxu0 %v1516
    %1584 = vmatpush.bf16.msra.mxu0 %v1515
    %1585 = vmatpush.bf16.msra.mxu0 %v1514
    %1586 = vmatmul.bf16.gmra.mxu0 %v1306
    %v1587 = vpop.f32.mrf.mxu0
    %v1588 = vadd.f32 %v1379, %v1587
    %v1589 = vpop.f32.mrf.mxu0
    %v1590 = vadd.f32 %v1384, %v1589
    %1591 = vdwg.mxu0
    %1592 = vmatpush.bf16.msra.mxu0 %v1529
    %1593 = vmatpush.bf16.msra.mxu0 %v1528
    %1594 = vmatpush.bf16.msra.mxu0 %v1527
    %1595 = vmatpush.bf16.msra.mxu0 %v1526
    %1596 = vmatpush.bf16.msra.mxu0 %v1525
    %1597 = vmatpush.bf16.msra.mxu0 %v1524
    %1598 = vmatpush.bf16.msra.mxu0 %v1523
    %1599 = vmatpush.bf16.msra.mxu0 %v1522
    %1600 = vmatmul.bf16.gmra.mxu0 %v1307
    %v1601 = vpop.f32.mrf.mxu0
    %v1602 = vadd.f32 %v1588, %v1601
    %v1603 = vpop.f32.mrf.mxu0
    %v1604 = vadd.f32 %v1590, %v1603
    %1605 = vdwg.mxu0
    %1606 = vmatpush.bf16.msra.mxu0 %v1537
    %1607 = vmatpush.bf16.msra.mxu0 %v1536
    %1608 = vmatpush.bf16.msra.mxu0 %v1535
    %1609 = vmatpush.bf16.msra.mxu0 %v1534
    %1610 = vmatpush.bf16.msra.mxu0 %v1533
    %1611 = vmatpush.bf16.msra.mxu0 %v1532
    %1612 = vmatpush.bf16.msra.mxu0 %v1531
    %1613 = vmatpush.bf16.msra.mxu0 %v1530
    %1614 = vmatmul.bf16.gmra.mxu0 %v1308
    %v1615 = vpop.f32.mrf.mxu0
    %v1616 = vadd.f32 %v1602, %v1615
    %v1617 = vpop.f32.mrf.mxu0
    %v1618 = vadd.f32 %v1604, %v1617
    %1619 = vdwg.mxu0
    %1620 = vmatpush.bf16.msra.mxu0 %v1545
    %1621 = vmatpush.bf16.msra.mxu0 %v1544
    %1622 = vmatpush.bf16.msra.mxu0 %v1543
    %1623 = vmatpush.bf16.msra.mxu0 %v1542
    %1624 = vmatpush.bf16.msra.mxu0 %v1541
    %1625 = vmatpush.bf16.msra.mxu0 %v1540
    %1626 = vmatpush.bf16.msra.mxu0 %v1539
    %1627 = vmatpush.bf16.msra.mxu0 %v1538
    %1628 = vmatmul.bf16.gmra.mxu0 %v1309
    %v1629 = vpop.f32.mrf.mxu0
    %v1630 = vadd.f32 %v1616, %v1629
    %v1631 = vpop.f32.mrf.mxu0
    %v1632 = vadd.f32 %v1618, %v1631
    %1633 = vdwg.mxu0
    %vm1634 = vcmp.gt.f32.partialorder %v1630, 0.0
    %vm1635 = vcmp.gt.f32.partialorder %v1632, 0.0
    %v1636 = vmul.f32 %v1630, 0.1
    %v1637 = vmul.f32 %v1632, 0.1
    %v1638 = vsel %vm1634, %v1630, %v1636
    %v1639 = vsel %vm1635, %v1632, %v1637
    %v1640 = vld [vmem:[#allocation4] sm:$0xf]
    %v1641 = vpack.c.bf16 %v1639, %v1638
    %v1642 = vld [vmem:[#allocation6] sm:$0xff]
    %1644 = vset.pattern.permute.xlu0 0
    %1645 = vperm.xlu0 %1644, %v1642
    %v1646 = vpop.permute.xlu0 %1645
    %vm1648 = vcmask 130048
    %v1650 = vsel %vm1648, %v1640, 0
    %1652 = vmatpush.bf16.msra.mxu0 0
    %1653 = vmatpush.bf16.msra.mxu0 0
    %1654 = vmatpush.bf16.msra.mxu0 0
    %1655 = vmatpush.bf16.msra.mxu0 0
    %1656 = vmatpush.bf16.msra.mxu0 0
    %1657 = vmatpush.bf16.msra.mxu0 0
    %1658 = vmatpush.bf16.msra.mxu0 0
    %1659 = vmatpush.bf16.msra.mxu0 %v1641
    %1660 = vmatmul.bf16.gmra.mxu0 %v1650
    %v1661 = vpop.f32.mrf.mxu0
    %v1662 = vadd.f32 %v1646, %v1661
    %v1663 = vpop.f32.mrf.mxu0
    %1664 = vdwg.mxu0
    %vm1665 = vcmp.gt.f32.partialorder %v1662, 0.0
    %v1666 = vmul.f32 %v1662, 0.1
    %v1667 = vsel %vm1665, %v1662, %v1666
    %1668 = vrot.lane.b32.xlu0 %v1667, 9
    %v1669 = vpop.permute.xlu0 %1668
    %v1670 = vld [vmem:[#allocation28] sm:$0x1]
    %v1671 = vperm.slane %v1670, 0
    %v1672 = vmul.f32 %v1669, %v1671
    %1673 = vrot.lane.b32.xlu0 %v1667, 8
    %v1674 = vpop.permute.xlu0 %1673
    %v1675 = vld [vmem:[#allocation28 + $0x1] sm:$0x1]
    %v1676 = vperm.slane %v1675, 0
    %v1677 = vmul.f32 %v1674, %v1676
    %1678 = vrot.lane.b32.xlu0 %v1667, 7
    %v1679 = vpop.permute.xlu0 %1678
    %v1680 = vld [vmem:[#allocation28 + $0x2] sm:$0x1]
    %v1681 = vperm.slane %v1680, 0
    %v1682 = vmul.f32 %v1679, %v1681
    %1683 = vrot.lane.b32.xlu0 %v1667, 1
    %v1684 = vpop.permute.xlu0 %1683
    %v1685 = vld [vmem:[#allocation28 + $0x3] sm:$0x1]
    %v1686 = vperm.slane %v1685, 0
    %v1687 = vmul.f32 %v1684, %v1686
    %1688 = vrot.lane.b32.xlu0 %v1667, 127
    %v1689 = vpop.permute.xlu0 %1688
    %v1690 = vld [vmem:[#allocation28 + $0x5] sm:$0x1]
    %v1691 = vperm.slane %v1690, 0
    %v1692 = vmul.f32 %v1689, %v1691
    %1693 = vrot.lane.b32.xlu0 %v1667, 121
    %v1694 = vpop.permute.xlu0 %1693
    %v1695 = vld [vmem:[#allocation28 + $0x6] sm:$0x1]
    %v1696 = vperm.slane %v1695, 0
    %v1697 = vmul.f32 %v1694, %v1696
    %1698 = vrot.lane.b32.xlu0 %v1667, 120
    %v1699 = vpop.permute.xlu0 %1698
    %v1700 = vld [vmem:[#allocation28 + $0x7] sm:$0x1]
    %v1701 = vperm.slane %v1700, 0
    %v1702 = vmul.f32 %v1699, %v1701
    %1703 = vrot.lane.b32.xlu0 %v1667, 119
    %v1704 = vpop.permute.xlu0 %1703
    %v1705 = vld [vmem:[#allocation28 + $0x8] sm:$0x1]
    %v1706 = vperm.slane %v1705, 0
    %v1707 = vmul.f32 %v1704, %v1706
    %v1708 = vld [vmem:[#allocation7] sm:$0xf]
    %v1709 = vld [vmem:[#allocation7 + $0x4] sm:$0xf]
    %v1710 = vpack.c.bf16 %v1677, %v1672
    %v1711 = vpack.c.bf16 %v1687, %v1682
    %v1712 = vpack.c.bf16 %v1692, %v1667
    %v1713 = vpack.c.bf16 %v1702, %v1697
    %v1714 = vpack.c.bf16 %v1707, %v1707
    %v1715 = vld [vmem:[#allocation9] sm:$0xff]
    %v1716 = vld [vmem:[#allocation9 + $0x8] sm:$0xff]
    %1718 = vset.pattern.permute.xlu0 0
    %1719 = vperm.xlu0 %1718, %v1715
    %v1720 = vpop.permute.xlu0 %1719
    %1723 = vset.pattern.permute.xlu0 0
    %1724 = vperm.xlu0 %1723, %v1716
    %v1725 = vpop.permute.xlu0 %1724
    %v1729 = vunpack.c.l.b16 %v1708
    %v1730 = vunpack.c.l.b16 %v1709
    %v1731 = vpack.c.b16 %v1730, %v1729
    %v1733 = vsel %vm1234, %v1731, 0
    %v1736 = vsel %vm962, %v1714, 0
    %1738 = vmatpush.bf16.msra.mxu0 0
    %1739 = vmatpush.bf16.msra.mxu0 0
    %1740 = vmatpush.bf16.msra.mxu0 0
    %1741 = vmatpush.bf16.msra.mxu0 %v1736
    %1742 = vmatpush.bf16.msra.mxu0 %v1713
    %1743 = vmatpush.bf16.msra.mxu0 %v1712
    %1744 = vmatpush.bf16.msra.mxu0 %v1711
    %1745 = vmatpush.bf16.msra.mxu0 %v1710
    %1746 = vmatmul.bf16.gmra.mxu0 %v1733
    %v1747 = vpop.f32.mrf.mxu0
    %v1748 = vadd.f32 %v1720, %v1747
    %v1749 = vpop.f32.mrf.mxu0
    %v1750 = vadd.f32 %v1725, %v1749
    %1751 = vdwg.mxu0
    %vm1752 = vcmp.gt.f32.partialorder %v1748, 0.0
    %vm1753 = vcmp.gt.f32.partialorder %v1750, 0.0
    %v1754 = vmul.f32 %v1748, 0.1
    %v1755 = vmul.f32 %v1750, 0.1
    %v1756 = vsel %vm1752, %v1748, %v1754
    %v1757 = vsel %vm1753, %v1750, %v1755
    %v1758 = vadd.f32 %v1756, %v1638
    %v1759 = vadd.f32 %v1757, %v1639
    %1760 = vrot.lane.b32.xlu0 %v1758, 9
    %v1761 = vpop.permute.xlu0 %1760
    %1762 = vrot.lane.b32.xlu0 %v1759, 9
    %v1763 = vpop.permute.xlu0 %1762
    %v1764 = vmul.f32 %v1761, %v1671
    %v1765 = vmul.f32 %v1763, %v1671
    %1766 = vrot.lane.b32.xlu0 %v1758, 8
    %v1767 = vpop.permute.xlu0 %1766
    %1768 = vrot.lane.b32.xlu0 %v1759, 8
    %v1769 = vpop.permute.xlu0 %1768
    %v1770 = vmul.f32 %v1767, %v1676
    %v1771 = vmul.f32 %v1769, %v1676
    %1772 = vrot.lane.b32.xlu0 %v1758, 7
    %v1773 = vpop.permute.xlu0 %1772
    %1774 = vrot.lane.b32.xlu0 %v1759, 7
    %v1775 = vpop.permute.xlu0 %1774
    %v1776 = vmul.f32 %v1773, %v1681
    %v1777 = vmul.f32 %v1775, %v1681
    %1778 = vrot.lane.b32.xlu0 %v1758, 1
    %v1779 = vpop.permute.xlu0 %1778
    %1780 = vrot.lane.b32.xlu0 %v1759, 1
    %v1781 = vpop.permute.xlu0 %1780
    %v1782 = vmul.f32 %v1779, %v1686
    %v1783 = vmul.f32 %v1781, %v1686
    %1784 = vrot.lane.b32.xlu0 %v1758, 127
    %v1785 = vpop.permute.xlu0 %1784
    %1786 = vrot.lane.b32.xlu0 %v1759, 127
    %v1787 = vpop.permute.xlu0 %1786
    %v1788 = vmul.f32 %v1785, %v1691
    %v1789 = vmul.f32 %v1787, %v1691
    %1790 = vrot.lane.b32.xlu0 %v1758, 121
    %v1791 = vpop.permute.xlu0 %1790
    %1792 = vrot.lane.b32.xlu0 %v1759, 121
    %v1793 = vpop.permute.xlu0 %1792
    %v1794 = vmul.f32 %v1791, %v1696
    %v1795 = vmul.f32 %v1793, %v1696
    %1796 = vrot.lane.b32.xlu0 %v1758, 120
    %v1797 = vpop.permute.xlu0 %1796
    %1798 = vrot.lane.b32.xlu0 %v1759, 120
    %v1799 = vpop.permute.xlu0 %1798
    %v1800 = vmul.f32 %v1797, %v1701
    %v1801 = vmul.f32 %v1799, %v1701
    %1802 = vrot.lane.b32.xlu0 %v1758, 119
    %v1803 = vpop.permute.xlu0 %1802
    %1804 = vrot.lane.b32.xlu0 %v1759, 119
    %v1805 = vpop.permute.xlu0 %1804
    %v1806 = vmul.f32 %v1803, %v1706
    %v1807 = vmul.f32 %v1805, %v1706
    %v1808 = vld [vmem:[#allocation10] sm:$0xff]
    %v1809 = vld [vmem:[#allocation10 + $0x8] sm:$0xff]
    %v1810 = vld [vmem:[#allocation10 + $0x10] sm:$0xff]
    %v1811 = vld [vmem:[#allocation10 + $0x18] sm:$0xff]
    %v1812 = vpack.c.bf16 %v1765, %v1764
    %v1813 = vpack.c.bf16 %v1771, %v1770
    %v1814 = vpack.c.bf16 %v1777, %v1776
    %v1815 = vpack.c.bf16 %v1783, %v1782
    %v1816 = vpack.c.bf16 %v1759, %v1758
    %v1817 = vpack.c.bf16 %v1789, %v1788
    %v1818 = vpack.c.bf16 %v1795, %v1794
    %v1819 = vpack.c.bf16 %v1801, %v1800
    %v1820 = vpack.c.bf16 %v1807, %v1806
    %v1825 = vunpack.c.l.b16 %v1808
    %v1826 = vunpack.c.h.b16 %v1808
    %v1827 = vunpack.c.l.b16 %v1809
    %v1828 = vunpack.c.h.b16 %v1809
    %v1829 = vunpack.c.l.b16 %v1810
    %v1830 = vunpack.c.h.b16 %v1810
    %v1831 = vunpack.c.l.b16 %v1811
    %v1832 = vunpack.c.h.b16 %v1811
    %v1833 = vpack.c.b16 %v1827, %v1825
    %v1834 = vpack.c.b16 %v1828, %v1826
    %v1835 = vpack.c.b16 %v1831, %v1829
    %v1836 = vpack.c.b16 %v1832, %v1830
    %v1840 = vsel %vm1648, %v1834, 0
    %v1843 = vsel %vm1648, %v1836, 0
    %1845 = vmatpush.bf16.msra.mxu0 %v1819
    %1846 = vmatpush.bf16.msra.mxu0 %v1818
    %1847 = vmatpush.bf16.msra.mxu0 %v1817
    %1848 = vmatpush.bf16.msra.mxu0 %v1816
    %1849 = vmatpush.bf16.msra.mxu0 %v1815
    %1850 = vmatpush.bf16.msra.mxu0 %v1814
    %1851 = vmatpush.bf16.msra.mxu0 %v1813
    %1852 = vmatpush.bf16.msra.mxu0 %v1812
    %1853 = vmatmul.bf16.gmra.mxu0 %v1833
    %v1854 = vpop.f32.mrf.mxu0
    %v1855 = vadd.f32 0.0, %v1854
    %v1856 = vpop.f32.mrf.mxu0
    %v1857 = vadd.f32 0.0, %v1856
    %1858 = vmatmul.bf16.gmra.mxu0 %v1835
    %v1859 = vpop.f32.mrf.mxu0
    %v1860 = vadd.f32 0.0, %v1859
    %v1861 = vpop.f32.mrf.mxu0
    %v1862 = vadd.f32 0.0, %v1861
    %1863 = vdwg.mxu0
    %1864 = vmatpush.bf16.msra.mxu0 0
    %1865 = vmatpush.bf16.msra.mxu0 0
    %1866 = vmatpush.bf16.msra.mxu0 0
    %1867 = vmatpush.bf16.msra.mxu0 0
    %1868 = vmatpush.bf16.msra.mxu0 0
    %1869 = vmatpush.bf16.msra.mxu0 0
    %1870 = vmatpush.bf16.msra.mxu0 0
    %1871 = vmatpush.bf16.msra.mxu0 %v1820
    %1872 = vmatmul.bf16.gmra.mxu0 %v1840
    %v1873 = vpop.f32.mrf.mxu0
    %v1874 = vadd.f32 %v1855, %v1873
    %v1875 = vpop.f32.mrf.mxu0
    %v1876 = vadd.f32 %v1857, %v1875
    %1877 = vmatmul.bf16.gmra.mxu0 %v1843
    %v1878 = vpop.f32.mrf.mxu0
    %v1879 = vadd.f32 %v1860, %v1878
    %v1880 = vpop.f32.mrf.mxu0
    %v1881 = vadd.f32 %v1862, %v1880
    %1882 = vdwg.mxu0
    %v1883 = vpack.c.bf16 %v1876, %v1874
    %v1884 = vpack.c.bf16 %v1881, %v1879
    %v1885 = vld [vmem:[#allocation31] sm:$0xf]
    %v1886 = vld [vmem:[#allocation31 + $0x4] sm:$0xf]
    %v1887 = vld [vmem:[#allocation31 + $0x8] sm:$0xf]
    %v1888 = vld [vmem:[#allocation31 + $0xc] sm:$0xf]
    %v1889 = vld [vmem:[#allocation31 + $0x10] sm:$0xf]
    %v1890 = vld [vmem:[#allocation31 + $0x14] sm:$0xf]
    %v1891 = vld [vmem:[#allocation31 + $0x18] sm:$0xf]
    %v1892 = vld [vmem:[#allocation31 + $0x1c] sm:$0xf]
    %v1893 = vld [vmem:[#allocation31 + $0x20] sm:$0xf]
    %v1894 = vld [vmem:[#allocation31 + $0x24] sm:$0xf]
    %v1895 = vld [vmem:[#allocation31 + $0x28] sm:$0xf]
    %v1896 = vld [vmem:[#allocation31 + $0x2c] sm:$0xf]
    %v1897 = vld [vmem:[#allocation31 + $0x30] sm:$0xf]
    %v1898 = vld [vmem:[#allocation31 + $0x34] sm:$0xf]
    %v1899 = vld [vmem:[#allocation31 + $0x38] sm:$0xf]
    %v1900 = vld [vmem:[#allocation31 + $0x3c] sm:$0xf]
    %v1901 = vld [vmem:[#allocation12] sm:$0xff]
    %v1902 = vld [vmem:[#allocation12 + $0x8] sm:$0xff]
    %v1903 = vld [vmem:[#allocation12 + $0x10] sm:$0xff]
    %v1904 = vld [vmem:[#allocation12 + $0x18] sm:$0xff]
    %1906 = vset.pattern.permute.xlu0 0
    %1907 = vperm.xlu0 %1906, %v1901
    %v1908 = vpop.permute.xlu0 %1907
    %1911 = vset.pattern.permute.xlu0 0
    %1912 = vperm.xlu0 %1911, %v1902
    %v1913 = vpop.permute.xlu0 %1912
    %1916 = vset.pattern.permute.xlu0 0
    %1917 = vperm.xlu0 %1916, %v1903
    %v1918 = vpop.permute.xlu0 %1917
    %1921 = vset.pattern.permute.xlu0 0
    %1922 = vperm.xlu0 %1921, %v1904
    %v1923 = vpop.permute.xlu0 %1922
    %v1941 = vunpack.c.l.b16 %v1885
    %v1942 = vunpack.c.l.b16 %v1886
    %v1943 = vunpack.c.l.b16 %v1887
    %v1944 = vunpack.c.l.b16 %v1888
    %v1945 = vunpack.c.l.b16 %v1889
    %v1946 = vunpack.c.l.b16 %v1890
    %v1947 = vunpack.c.l.b16 %v1891
    %v1948 = vunpack.c.l.b16 %v1892
    %v1949 = vunpack.c.l.b16 %v1893
    %v1950 = vunpack.c.l.b16 %v1894
    %v1951 = vunpack.c.l.b16 %v1895
    %v1952 = vunpack.c.l.b16 %v1896
    %v1953 = vunpack.c.l.b16 %v1897
    %v1954 = vunpack.c.l.b16 %v1898
    %v1955 = vunpack.c.l.b16 %v1899
    %v1956 = vunpack.c.l.b16 %v1900
    %v1957 = vpack.c.b16 %v1942, %v1941
    %v1958 = vpack.c.b16 %v1944, %v1943
    %v1959 = vpack.c.b16 %v1946, %v1945
    %v1960 = vpack.c.b16 %v1948, %v1947
    %v1961 = vpack.c.b16 %v1950, %v1949
    %v1962 = vpack.c.b16 %v1952, %v1951
    %v1963 = vpack.c.b16 %v1954, %v1953
    %v1964 = vpack.c.b16 %v1956, %v1955
    %1973 = vmatpush.bf16.msra.mxu0 %v1964
    %1974 = vmatpush.bf16.msra.mxu0 %v1963
    %1975 = vmatpush.bf16.msra.mxu0 %v1962
    %1976 = vmatpush.bf16.msra.mxu0 %v1961
    %1977 = vmatpush.bf16.msra.mxu0 %v1960
    %1978 = vmatpush.bf16.msra.mxu0 %v1959
    %1979 = vmatpush.bf16.msra.mxu0 %v1958
    %1980 = vmatpush.bf16.msra.mxu0 %v1957
    %1981 = vmatmul.bf16.gmra.mxu0 %v1883
    %v1982 = vpop.f32.mrf.mxu0
    %v1983 = vadd.f32 %v1908, %v1982
    %v1984 = vpop.f32.mrf.mxu0
    %v1985 = vadd.f32 %v1913, %v1984
    %1986 = vmatmul.bf16.gmra.mxu0 %v1884
    %v1987 = vpop.f32.mrf.mxu0
    %v1988 = vadd.f32 %v1918, %v1987
    %v1989 = vpop.f32.mrf.mxu0
    %v1990 = vadd.f32 %v1923, %v1989
    %1991 = vdwg.mxu0
    %vm1992 = vcmp.gt.f32.partialorder %v1983, 0.0
    %vm1993 = vcmp.gt.f32.partialorder %v1985, 0.0
    %vm1994 = vcmp.gt.f32.partialorder %v1988, 0.0
    %vm1995 = vcmp.gt.f32.partialorder %v1990, 0.0
    %v1996 = vmul.f32 %v1983, 0.1
    %v1997 = vmul.f32 %v1985, 0.1
    %v1998 = vmul.f32 %v1988, 0.1
    %v1999 = vmul.f32 %v1990, 0.1
    %v2000 = vsel %vm1992, %v1983, %v1996
    %v2001 = vsel %vm1993, %v1985, %v1997
    %v2002 = vsel %vm1994, %v1988, %v1998
    %v2003 = vsel %vm1995, %v1990, %v1999
    %2008 = vrot.lane.b32.xlu0 %v2000, 101
    %v2009 = vpop.permute.xlu0 %2008
    %2010 = vrot.lane.b32.xlu0 %v2001, 101
    %v2011 = vpop.permute.xlu0 %2010
    %2012 = vrot.lane.b32.xlu0 %v2002, 101
    %v2013 = vpop.permute.xlu0 %2012
    %2014 = vrot.lane.b32.xlu0 %v2003, 101
    %v2015 = vpop.permute.xlu0 %2014
    %2020 = vrot.lane.b32.xlu0 %v2000, 5
    %v2021 = vpop.permute.xlu0 %2020
    %2022 = vrot.lane.b32.xlu0 %v2001, 5
    %v2023 = vpop.permute.xlu0 %2022
    %2024 = vrot.lane.b32.xlu0 %v2002, 5
    %v2025 = vpop.permute.xlu0 %2024
    %2026 = vrot.lane.b32.xlu0 %v2003, 5
    %v2027 = vpop.permute.xlu0 %2026
    %vm2032 = vcmask 39936
    %v2033 = vsel %vm2032, %v2009, %v2021
    %v2034 = vsel %vm2032, %v2011, %v2023
    %v2035 = vsel %vm2032, %v2013, %v2025
    %v2036 = vsel %vm2032, %v2015, %v2027
    %v2037 = vld [vmem:[#allocation30] sm:$0x1]
    %v2038 = vperm.slane %v2037, 0
    %v2039 = vmul.f32 %v2033, %v2038
    %v2040 = vmul.f32 %v2034, %v2038
    %v2041 = vmul.f32 %v2035, %v2038
    %v2042 = vmul.f32 %v2036, %v2038
    %2043 = vrot.lane.b32.xlu0 %v2000, 100
    %v2044 = vpop.permute.xlu0 %2043
    %2045 = vrot.lane.b32.xlu0 %v2001, 100
    %v2046 = vpop.permute.xlu0 %2045
    %2047 = vrot.lane.b32.xlu0 %v2002, 100
    %v2048 = vpop.permute.xlu0 %2047
    %2049 = vrot.lane.b32.xlu0 %v2003, 100
    %v2050 = vpop.permute.xlu0 %2049
    %2055 = vrot.lane.b32.xlu0 %v2000, 4
    %v2056 = vpop.permute.xlu0 %2055
    %2057 = vrot.lane.b32.xlu0 %v2001, 4
    %v2058 = vpop.permute.xlu0 %2057
    %2059 = vrot.lane.b32.xlu0 %v2002, 4
    %v2060 = vpop.permute.xlu0 %2059
    %2061 = vrot.lane.b32.xlu0 %v2003, 4
    %v2062 = vpop.permute.xlu0 %2061
    %vm2067 = vcmask 31744
    %v2068 = vsel %vm2067, %v2044, %v2056
    %v2069 = vsel %vm2067, %v2046, %v2058
    %v2070 = vsel %vm2067, %v2048, %v2060
    %v2071 = vsel %vm2067, %v2050, %v2062
    %v2072 = vld [vmem:[#allocation30 + $0x1] sm:$0x1]
    %v2073 = vperm.slane %v2072, 0
    %v2074 = vmul.f32 %v2068, %v2073
    %v2075 = vmul.f32 %v2069, %v2073
    %v2076 = vmul.f32 %v2070, %v2073
    %v2077 = vmul.f32 %v2071, %v2073
    %2078 = vrot.lane.b32.xlu0 %v2000, 99
    %v2079 = vpop.permute.xlu0 %2078
    %2080 = vrot.lane.b32.xlu0 %v2001, 99
    %v2081 = vpop.permute.xlu0 %2080
    %2082 = vrot.lane.b32.xlu0 %v2002, 99
    %v2083 = vpop.permute.xlu0 %2082
    %2084 = vrot.lane.b32.xlu0 %v2003, 99
    %v2085 = vpop.permute.xlu0 %2084
    %2090 = vrot.lane.b32.xlu0 %v2000, 3
    %v2091 = vpop.permute.xlu0 %2090
    %2092 = vrot.lane.b32.xlu0 %v2001, 3
    %v2093 = vpop.permute.xlu0 %2092
    %2094 = vrot.lane.b32.xlu0 %v2002, 3
    %v2095 = vpop.permute.xlu0 %2094
    %2096 = vrot.lane.b32.xlu0 %v2003, 3
    %v2097 = vpop.permute.xlu0 %2096
    %vm2102 = vcmask 23552
    %v2103 = vsel %vm2102, %v2079, %v2091
    %v2104 = vsel %vm2102, %v2081, %v2093
    %v2105 = vsel %vm2102, %v2083, %v2095
    %v2106 = vsel %vm2102, %v2085, %v2097
    %v2107 = vld [vmem:[#allocation30 + $0x2] sm:$0x1]
    %v2108 = vperm.slane %v2107, 0
    %v2109 = vmul.f32 %v2103, %v2108
    %v2110 = vmul.f32 %v2104, %v2108
    %v2111 = vmul.f32 %v2105, %v2108
    %v2112 = vmul.f32 %v2106, %v2108
    %2113 = vrot.lane.b32.xlu0 %v2000, 97
    %v2114 = vpop.permute.xlu0 %2113
    %2115 = vrot.lane.b32.xlu0 %v2001, 97
    %v2116 = vpop.permute.xlu0 %2115
    %2117 = vrot.lane.b32.xlu0 %v2002, 97
    %v2118 = vpop.permute.xlu0 %2117
    %2119 = vrot.lane.b32.xlu0 %v2003, 97
    %v2120 = vpop.permute.xlu0 %2119
    %2125 = vrot.lane.b32.xlu0 %v2000, 1
    %v2126 = vpop.permute.xlu0 %2125
    %2127 = vrot.lane.b32.xlu0 %v2001, 1
    %v2128 = vpop.permute.xlu0 %2127
    %2129 = vrot.lane.b32.xlu0 %v2002, 1
    %v2130 = vpop.permute.xlu0 %2129
    %2131 = vrot.lane.b32.xlu0 %v2003, 1
    %v2132 = vpop.permute.xlu0 %2131
    %vm2137 = vcmask 7168
    %v2138 = vsel %vm2137, %v2114, %v2126
    %v2139 = vsel %vm2137, %v2116, %v2128
    %v2140 = vsel %vm2137, %v2118, %v2130
    %v2141 = vsel %vm2137, %v2120, %v2132
    %v2142 = vld [vmem:[#allocation30 + $0x3] sm:$0x1]
    %v2143 = vperm.slane %v2142, 0
    %v2144 = vmul.f32 %v2138, %v2143
    %v2145 = vmul.f32 %v2139, %v2143
    %v2146 = vmul.f32 %v2140, %v2143
    %v2147 = vmul.f32 %v2141, %v2143
    %2148 = vrot.lane.b32.xlu0 %v2000, 127
    %v2149 = vpop.permute.xlu0 %2148
    %2150 = vrot.lane.b32.xlu0 %v2001, 127
    %v2151 = vpop.permute.xlu0 %2150
    %2152 = vrot.lane.b32.xlu0 %v2002, 127
    %v2153 = vpop.permute.xlu0 %2152
    %2154 = vrot.lane.b32.xlu0 %v2003, 127
    %v2155 = vpop.permute.xlu0 %2154
    %2160 = vrot.lane.b32.xlu0 %v2000, 31
    %v2161 = vpop.permute.xlu0 %2160
    %2162 = vrot.lane.b32.xlu0 %v2001, 31
    %v2163 = vpop.permute.xlu0 %2162
    %2164 = vrot.lane.b32.xlu0 %v2002, 31
    %v2165 = vpop.permute.xlu0 %2164
    %2166 = vrot.lane.b32.xlu0 %v2003, 31
    %v2167 = vpop.permute.xlu0 %2166
    %vm2172 = vcmask 252928
    %v2173 = vsel %vm2172, %v2149, %v2161
    %v2174 = vsel %vm2172, %v2151, %v2163
    %v2175 = vsel %vm2172, %v2153, %v2165
    %v2176 = vsel %vm2172, %v2155, %v2167
    %v2177 = vld [vmem:[#allocation30 + $0x5] sm:$0x1]
    %v2178 = vperm.slane %v2177, 0
    %v2179 = vmul.f32 %v2173, %v2178
    %v2180 = vmul.f32 %v2174, %v2178
    %v2181 = vmul.f32 %v2175, %v2178
    %v2182 = vmul.f32 %v2176, %v2178
    %2183 = vrot.lane.b32.xlu0 %v2000, 125
    %v2184 = vpop.permute.xlu0 %2183
    %2185 = vrot.lane.b32.xlu0 %v2001, 125
    %v2186 = vpop.permute.xlu0 %2185
    %2187 = vrot.lane.b32.xlu0 %v2002, 125
    %v2188 = vpop.permute.xlu0 %2187
    %2189 = vrot.lane.b32.xlu0 %v2003, 125
    %v2190 = vpop.permute.xlu0 %2189
    %2195 = vrot.lane.b32.xlu0 %v2000, 29
    %v2196 = vpop.permute.xlu0 %2195
    %2197 = vrot.lane.b32.xlu0 %v2001, 29
    %v2198 = vpop.permute.xlu0 %2197
    %2199 = vrot.lane.b32.xlu0 %v2002, 29
    %v2200 = vpop.permute.xlu0 %2199
    %2201 = vrot.lane.b32.xlu0 %v2003, 29
    %v2202 = vpop.permute.xlu0 %2201
    %vm2207 = vcmask 236544
    %v2208 = vsel %vm2207, %v2184, %v2196
    %v2209 = vsel %vm2207, %v2186, %v2198
    %v2210 = vsel %vm2207, %v2188, %v2200
    %v2211 = vsel %vm2207, %v2190, %v2202
    %v2212 = vld [vmem:[#allocation30 + $0x6] sm:$0x1]
    %v2213 = vperm.slane %v2212, 0
    %v2214 = vmul.f32 %v2208, %v2213
    %v2215 = vmul.f32 %v2209, %v2213
    %v2216 = vmul.f32 %v2210, %v2213
    %v2217 = vmul.f32 %v2211, %v2213
    %2218 = vrot.lane.b32.xlu0 %v2000, 124
    %v2219 = vpop.permute.xlu0 %2218
    %2220 = vrot.lane.b32.xlu0 %v2001, 124
    %v2221 = vpop.permute.xlu0 %2220
    %2222 = vrot.lane.b32.xlu0 %v2002, 124
    %v2223 = vpop.permute.xlu0 %2222
    %2224 = vrot.lane.b32.xlu0 %v2003, 124
    %v2225 = vpop.permute.xlu0 %2224
    %2230 = vrot.lane.b32.xlu0 %v2000, 28
    %v2231 = vpop.permute.xlu0 %2230
    %2232 = vrot.lane.b32.xlu0 %v2001, 28
    %v2233 = vpop.permute.xlu0 %2232
    %2234 = vrot.lane.b32.xlu0 %v2002, 28
    %v2235 = vpop.permute.xlu0 %2234
    %2236 = vrot.lane.b32.xlu0 %v2003, 28
    %v2237 = vpop.permute.xlu0 %2236
    %vm2242 = vcmask 228352
    %v2243 = vsel %vm2242, %v2219, %v2231
    %v2244 = vsel %vm2242, %v2221, %v2233
    %v2245 = vsel %vm2242, %v2223, %v2235
    %v2246 = vsel %vm2242, %v2225, %v2237
    %v2247 = vld [vmem:[#allocation30 + $0x7] sm:$0x1]
    %v2248 = vperm.slane %v2247, 0
    %v2249 = vmul.f32 %v2243, %v2248
    %v2250 = vmul.f32 %v2244, %v2248
    %v2251 = vmul.f32 %v2245, %v2248
    %v2252 = vmul.f32 %v2246, %v2248
    %2253 = vrot.lane.b32.xlu0 %v2000, 123
    %v2254 = vpop.permute.xlu0 %2253
    %2255 = vrot.lane.b32.xlu0 %v2001, 123
    %v2256 = vpop.permute.xlu0 %2255
    %2257 = vrot.lane.b32.xlu0 %v2002, 123
    %v2258 = vpop.permute.xlu0 %2257
    %2259 = vrot.lane.b32.xlu0 %v2003, 123
    %v2260 = vpop.permute.xlu0 %2259
    %2265 = vrot.lane.b32.xlu0 %v2000, 27
    %v2266 = vpop.permute.xlu0 %2265
    %2267 = vrot.lane.b32.xlu0 %v2001, 27
    %v2268 = vpop.permute.xlu0 %2267
    %2269 = vrot.lane.b32.xlu0 %v2002, 27
    %v2270 = vpop.permute.xlu0 %2269
    %2271 = vrot.lane.b32.xlu0 %v2003, 27
    %v2272 = vpop.permute.xlu0 %2271
    %v2277 = vsel %vm997, %v2254, %v2266
    %v2278 = vsel %vm997, %v2256, %v2268
    %v2279 = vsel %vm997, %v2258, %v2270
    %v2280 = vsel %vm997, %v2260, %v2272
    %v2281 = vld [vmem:[#allocation30 + $0x8] sm:$0x1]
    %v2282 = vperm.slane %v2281, 0
    %v2283 = vmul.f32 %v2277, %v2282
    %v2284 = vmul.f32 %v2278, %v2282
    %v2285 = vmul.f32 %v2279, %v2282
    %v2286 = vmul.f32 %v2280, %v2282
    %v2287 = vld [vmem:[%s23] sm:$0xff]
    %v2288 = vld [vmem:[%s23 + $0x8] sm:$0xf]
    %v2289 = vld [vmem:[%s23 + $0xc] sm:$0xff]
    %v2290 = vld [vmem:[%s23 + $0x14] sm:$0xf]
    %v2291 = vld [vmem:[%s23 + $0x18] sm:$0xff]
    %v2292 = vld [vmem:[%s23 + $0x20] sm:$0xf]
    %v2293 = vld [vmem:[%s23 + $0x24] sm:$0xff]
    %v2294 = vld [vmem:[%s23 + $0x2c] sm:$0xf]
    %v2295 = vpack.c.bf16 %v2040, %v2039
    %v2296 = vpack.c.bf16 %v2042, %v2041
    %v2297 = vpack.c.bf16 %v2075, %v2074
    %v2298 = vpack.c.bf16 %v2077, %v2076
    %v2299 = vpack.c.bf16 %v2110, %v2109
    %v2300 = vpack.c.bf16 %v2112, %v2111
    %v2301 = vpack.c.bf16 %v2145, %v2144
    %v2302 = vpack.c.bf16 %v2147, %v2146
    %v2303 = vpack.c.bf16 %v2001, %v2000
    %v2304 = vpack.c.bf16 %v2003, %v2002
    %v2305 = vpack.c.bf16 %v2180, %v2179
    %v2306 = vpack.c.bf16 %v2182, %v2181
    %v2307 = vpack.c.bf16 %v2215, %v2214
    %v2308 = vpack.c.bf16 %v2217, %v2216
    %v2309 = vpack.c.bf16 %v2250, %v2249
    %v2310 = vpack.c.bf16 %v2252, %v2251
    %v2311 = vpack.c.bf16 %v2284, %v2283
    %v2312 = vpack.c.bf16 %v2286, %v2285
    %v2313 = vld [vmem:[#allocation13] sm:$0xff]
    %v2314 = vld [vmem:[#allocation13 + $0x8] sm:$0xff]
    %v2315 = vld [vmem:[#allocation13 + $0x10] sm:$0xff]
    %v2316 = vld [vmem:[#allocation13 + $0x18] sm:$0xff]
    %2318 = vset.pattern.permute.xlu0 0
    %2319 = vperm.xlu0 %2318, %v2313
    %v2320 = vpop.permute.xlu0 %2319
    %2323 = vset.pattern.permute.xlu0 0
    %2324 = vperm.xlu0 %2323, %v2314
    %v2325 = vpop.permute.xlu0 %2324
    %2328 = vset.pattern.permute.xlu0 0
    %2329 = vperm.xlu0 %2328, %v2315
    %v2330 = vpop.permute.xlu0 %2329
    %2333 = vset.pattern.permute.xlu0 0
    %2334 = vperm.xlu0 %2333, %v2316
    %v2335 = vpop.permute.xlu0 %2334
    %v2345 = vunpack.c.l.b16 %v2287
    %v2346 = vunpack.c.h.b16 %v2287
    %v2347 = vunpack.c.l.b16 %v2288
    %v2348 = vunpack.c.l.b16 %v2289
    %v2349 = vunpack.c.h.b16 %v2289
    %v2350 = vunpack.c.l.b16 %v2290
    %v2351 = vunpack.c.l.b16 %v2291
    %v2352 = vunpack.c.h.b16 %v2291
    %v2353 = vunpack.c.l.b16 %v2292
    %v2354 = vunpack.c.l.b16 %v2293
    %v2355 = vunpack.c.h.b16 %v2293
    %v2356 = vunpack.c.l.b16 %v2294
    %v2357 = vpack.c.b16 %v2348, %v2345
    %v2358 = vpack.c.b16 %v2349, %v2346
    %v2359 = vpack.c.b16 %v2350, %v2347
    %v2360 = vpack.c.b16 %v2354, %v2351
    %v2361 = vpack.c.b16 %v2355, %v2352
    %v2362 = vpack.c.b16 %v2356, %v2353
    %vm2367 = vcmask 261120
    %v2369 = vsel %vm2367, %v2359, 0
    %v2372 = vsel %vm2367, %v2362, 0
    %2374 = vmatpush.bf16.msra.mxu0 %v2302
    %2375 = vmatpush.bf16.msra.mxu0 %v2301
    %2376 = vmatpush.bf16.msra.mxu0 %v2300
    %2377 = vmatpush.bf16.msra.mxu0 %v2299
    %2378 = vmatpush.bf16.msra.mxu0 %v2298
    %2379 = vmatpush.bf16.msra.mxu0 %v2297
    %2380 = vmatpush.bf16.msra.mxu0 %v2296
    %2381 = vmatpush.bf16.msra.mxu0 %v2295
    %2382 = vmatmul.bf16.gmra.mxu0 %v2357
    %v2383 = vpop.f32.mrf.mxu0
    %v2384 = vadd.f32 %v2320, %v2383
    %v2385 = vpop.f32.mrf.mxu0
    %v2386 = vadd.f32 %v2325, %v2385
    %2387 = vmatmul.bf16.gmra.mxu0 %v2360
    %v2388 = vpop.f32.mrf.mxu0
    %v2389 = vadd.f32 %v2330, %v2388
    %v2390 = vpop.f32.mrf.mxu0
    %v2391 = vadd.f32 %v2335, %v2390
    %2392 = vdwg.mxu0
    %2393 = vmatpush.bf16.msra.mxu0 %v2310
    %2394 = vmatpush.bf16.msra.mxu0 %v2309
    %2395 = vmatpush.bf16.msra.mxu0 %v2308
    %2396 = vmatpush.bf16.msra.mxu0 %v2307
    %2397 = vmatpush.bf16.msra.mxu0 %v2306
    %2398 = vmatpush.bf16.msra.mxu0 %v2305
    %2399 = vmatpush.bf16.msra.mxu0 %v2304
    %2400 = vmatpush.bf16.msra.mxu0 %v2303
    %2401 = vmatmul.bf16.gmra.mxu0 %v2358
    %v2402 = vpop.f32.mrf.mxu0
    %v2403 = vadd.f32 %v2384, %v2402
    %v2404 = vpop.f32.mrf.mxu0
    %v2405 = vadd.f32 %v2386, %v2404
    %2406 = vmatmul.bf16.gmra.mxu0 %v2361
    %v2407 = vpop.f32.mrf.mxu0
    %v2408 = vadd.f32 %v2389, %v2407
    %v2409 = vpop.f32.mrf.mxu0
    %v2410 = vadd.f32 %v2391, %v2409
    %2411 = vdwg.mxu0
    %2412 = vmatpush.bf16.msra.mxu0 0
    %2413 = vmatpush.bf16.msra.mxu0 0
    %2414 = vmatpush.bf16.msra.mxu0 0
    %2415 = vmatpush.bf16.msra.mxu0 0
    %2416 = vmatpush.bf16.msra.mxu0 0
    %2417 = vmatpush.bf16.msra.mxu0 0
    %2418 = vmatpush.bf16.msra.mxu0 %v2312
    %2419 = vmatpush.bf16.msra.mxu0 %v2311
    %2420 = vmatmul.bf16.gmra.mxu0 %v2369
    %v2421 = vpop.f32.mrf.mxu0
    %v2422 = vadd.f32 %v2403, %v2421
    %v2423 = vpop.f32.mrf.mxu0
    %v2424 = vadd.f32 %v2405, %v2423
    %2425 = vmatmul.bf16.gmra.mxu0 %v2372
    %v2426 = vpop.f32.mrf.mxu0
    %v2427 = vadd.f32 %v2408, %v2426
    %v2428 = vpop.f32.mrf.mxu0
    %v2429 = vadd.f32 %v2410, %v2428
    %2430 = vdwg.mxu0
    %vm2431 = vcmp.gt.f32.partialorder %v2422, 0.0
    %vm2432 = vcmp.gt.f32.partialorder %v2424, 0.0
    %vm2433 = vcmp.gt.f32.partialorder %v2427, 0.0
    %vm2434 = vcmp.gt.f32.partialorder %v2429, 0.0
    %v2435 = vmul.f32 %v2422, 0.1
    %v2436 = vmul.f32 %v2424, 0.1
    %v2437 = vmul.f32 %v2427, 0.1
    %v2438 = vmul.f32 %v2429, 0.1
    %v2439 = vsel %vm2431, %v2422, %v2435
    %v2440 = vsel %vm2432, %v2424, %v2436
    %v2441 = vsel %vm2433, %v2427, %v2437
    %v2442 = vsel %vm2434, %v2429, %v2438
    %v2443 = vld [vmem:[#allocation15] sm:$0xf]
    %v2444 = vld [vmem:[#allocation15 + $0x4] sm:$0xf]
    %v2445 = vld [vmem:[#allocation15 + $0x8] sm:$0xf]
    %v2446 = vld [vmem:[#allocation15 + $0xc] sm:$0x3]
    %v2447 = vpack.c.bf16 %v2440, %v2439
    %v2448 = vpack.c.bf16 %v2442, %v2441
    %v2449 = vld [vmem:[#allocation16] sm:$0xff]
    %v2450 = vld [vmem:[#allocation16 + $0x8] sm:$0xff]
    %v2451 = vld [vmem:[#allocation16 + $0x10] sm:$0xff]
    %v2452 = vld [vmem:[#allocation16 + $0x18] sm:$0x7]
    %2454 = vset.pattern.permute.xlu0 0
    %2455 = vperm.xlu0 %2454, %v2449
    %v2456 = vpop.permute.xlu0 %2455
    %2459 = vset.pattern.permute.xlu0 0
    %2460 = vperm.xlu0 %2459, %v2450
    %v2461 = vpop.permute.xlu0 %2460
    %2464 = vset.pattern.permute.xlu0 0
    %2465 = vperm.xlu0 %2464, %v2451
    %v2466 = vpop.permute.xlu0 %2465
    %2469 = vset.pattern.permute.xlu0 0
    %2470 = vperm.xlu0 %2469, %v2452
    %v2471 = vpop.permute.xlu0 %2470
    %v2477 = vunpack.c.l.b16 %v2443
    %v2478 = vunpack.c.l.b16 %v2444
    %v2479 = vunpack.c.l.b16 %v2445
    %v2480 = vunpack.c.l.b16 %v2446
    %v2481 = vpack.c.b16 %v2478, %v2477
    %v2482 = vpack.c.b16 %v2480, %v2479
    %v2484 = vsel %vm2367, %v2481, 0
    %v2487 = vsel %vm2367, %v2482, 0
    %2489 = vmatpush.bf16.msra.mxu0 0
    %2490 = vmatpush.bf16.msra.mxu0 0
    %2491 = vmatpush.bf16.msra.mxu0 0
    %2492 = vmatpush.bf16.msra.mxu0 0
    %2493 = vmatpush.bf16.msra.mxu0 0
    %2494 = vmatpush.bf16.msra.mxu0 0
    %2495 = vmatpush.bf16.msra.mxu0 %v2448
    %2496 = vmatpush.bf16.msra.mxu0 %v2447
    %2497 = vmatmul.bf16.gmra.mxu0 %v2484
    %v2498 = vpop.f32.mrf.mxu0
    %v2499 = vadd.f32 %v2456, %v2498
    %v2500 = vpop.f32.mrf.mxu0
    %v2501 = vadd.f32 %v2461, %v2500
    %2502 = vmatmul.bf16.gmra.mxu0 %v2487
    %v2503 = vpop.f32.mrf.mxu0
    %v2504 = vadd.f32 %v2466, %v2503
    %v2505 = vpop.f32.mrf.mxu0
    %v2506 = vadd.f32 %v2471, %v2505
    %2507 = vdwg.mxu0
    %2508 = vst.msk [vmem:[%s65] sm:$0xff] %vm2367, %v2499
    %2509 = vst.msk [vmem:[%s65 + $0x8] sm:$0xff] %vm2367, %v2501
    %2510 = vst.msk [vmem:[%s65 + $0x10] sm:$0xff] %vm2367, %v2504
    %vm2511 = vcmask 256000
    %2512 = vst.msk [vmem:[%s65 + $0x18] sm:$0x7] %vm2511, %v2506
    %v2513 = vld [vmem:[#allocation36] sm:$0xff]
    %v2514 = vld [vmem:[#allocation36 + $0x8] sm:$0xff]
    %v2515 = vld [vmem:[#allocation36 + $0x10] sm:$0xff]
    %v2516 = vld [vmem:[#allocation36 + $0x18] sm:$0x7]
    %v2517 = vld [vmem:[#allocation37] sm:$0xff]
    %v2518 = vld [vmem:[#allocation37 + $0x8] sm:$0xff]
    %v2519 = vld [vmem:[#allocation37 + $0x10] sm:$0xff]
    %v2520 = vld [vmem:[#allocation37 + $0x18] sm:$0x7]
    %v2521 = vxor.u32 %v2499, 2147483648
    %v2522 = vxor.u32 %v2501, 2147483648
    %v2523 = vxor.u32 %v2504, 2147483648
    %v2524 = vxor.u32 %v2506, 2147483648
    %v2525 = vmul.f32 %v2521, 1.442695
    %v2526 = vpow.pop %v2525
    %v2527 = vmul.f32 %v2522, 1.442695
    %v2528 = vpow.pop %v2527
    %v2529 = vmul.f32 %v2523, 1.442695
    %v2530 = vpow.pop %v2529
    %v2531 = vmul.f32 %v2524, 1.442695
    %v2532 = vpow.pop %v2531
    %v2533 = vadd.f32 %v2526, 1.0
    %v2534 = vadd.f32 %v2528, 1.0
    %v2535 = vadd.f32 %v2530, 1.0
    %v2536 = vadd.f32 %v2532, 1.0
    %v2537 = vrcp.pop %v2533
    %v2538 = vmul.f32 %v2533, %v2537
    %v2539 = vsub.f32 1.0, %v2538
    %v2540 = vmul.f32 %v2537, %v2539
    %v2541 = vadd.f32 %v2537, %v2540
    %vm2542 = vweird.f32 %v2533
    %vm2543 = vweird.f32 %v2537
    %vm2544 = vmor %vm2542, %vm2543
    %v2545 = vsel %vm2544, %v2537, %v2541
    %v2546 = vand.u32 2147483647, %v2533
    %vm2547 = vcmp.eq.f32.partialorder %v2546, 8.507059e+37
    %v2548 = vand.u32 %v2533, 2147483648
    %v2549 = vor.u32 1.1754944e-38, %v2548
    %v2550 = vsel %vm2547, %v2549, %v2545
    %v2551 = vmul.f32 1.0, %v2550
    %v2552 = vrcp.pop %v2534
    %v2553 = vmul.f32 %v2534, %v2552
    %v2554 = vsub.f32 1.0, %v2553
    %v2555 = vmul.f32 %v2552, %v2554
    %v2556 = vadd.f32 %v2552, %v2555
    %vm2557 = vweird.f32 %v2534
    %vm2558 = vweird.f32 %v2552
    %vm2559 = vmor %vm2557, %vm2558
    %v2560 = vsel %vm2559, %v2552, %v2556
    %v2561 = vand.u32 2147483647, %v2534
    %vm2562 = vcmp.eq.f32.partialorder %v2561, 8.507059e+37
    %v2563 = vand.u32 %v2534, 2147483648
    %v2564 = vor.u32 1.1754944e-38, %v2563
    %v2565 = vsel %vm2562, %v2564, %v2560
    %v2566 = vmul.f32 1.0, %v2565
    %v2567 = vrcp.pop %v2535
    %v2568 = vmul.f32 %v2535, %v2567
    %v2569 = vsub.f32 1.0, %v2568
    %v2570 = vmul.f32 %v2567, %v2569
    %v2571 = vadd.f32 %v2567, %v2570
    %vm2572 = vweird.f32 %v2535
    %vm2573 = vweird.f32 %v2567
    %vm2574 = vmor %vm2572, %vm2573
    %v2575 = vsel %vm2574, %v2567, %v2571
    %v2576 = vand.u32 2147483647, %v2535
    %vm2577 = vcmp.eq.f32.partialorder %v2576, 8.507059e+37
    %v2578 = vand.u32 %v2535, 2147483648
    %v2579 = vor.u32 1.1754944e-38, %v2578
    %v2580 = vsel %vm2577, %v2579, %v2575
    %v2581 = vmul.f32 1.0, %v2580
    %v2582 = vrcp.pop %v2536
    %v2583 = vmul.f32 %v2536, %v2582
    %v2584 = vsub.f32 1.0, %v2583
    %v2585 = vmul.f32 %v2582, %v2584
    %v2586 = vadd.f32 %v2582, %v2585
    %vm2587 = vweird.f32 %v2536
    %vm2588 = vweird.f32 %v2582
    %vm2589 = vmor %vm2587, %vm2588
    %v2590 = vsel %vm2589, %v2582, %v2586
    %v2591 = vand.u32 2147483647, %v2536
    %vm2592 = vcmp.eq.f32.partialorder %v2591, 8.507059e+37
    %v2593 = vand.u32 %v2536, 2147483648
    %v2594 = vor.u32 1.1754944e-38, %v2593
    %v2595 = vsel %vm2592, %v2594, %v2590
    %v2596 = vmul.f32 1.0, %v2595
    %vm2597 = vcmp.gt.f32.partialorder %v542, 0.5
    %vm2598 = vcmp.gt.f32.partialorder %v543, 0.5
    %vm2599 = vcmp.gt.f32.partialorder %v544, 0.5
    %vm2600 = vcmp.gt.f32.partialorder %v545, 0.5
    %v2601 = vsel %vm2597, 1, 0
    %v2602 = vsel %vm2598, 1, 0
    %v2603 = vsel %vm2599, 1, 0
    %v2604 = vsel %vm2600, 1, 0
    %2605 = vset.pattern.permute.xlu0 0
    %2606 = vperm.xlu0 %2605, %v2601
    %v2607 = vpop.permute.xlu0 %2606
    %2608 = vset.pattern.permute.xlu0 0
    %2609 = vperm.xlu0 %2608, %v2602
    %v2610 = vpop.permute.xlu0 %2609
    %2611 = vset.pattern.permute.xlu0 0
    %2612 = vperm.xlu0 %2611, %v2603
    %v2613 = vpop.permute.xlu0 %2612
    %2614 = vset.pattern.permute.xlu0 0
    %2615 = vperm.xlu0 %2614, %v2604
    %v2616 = vpop.permute.xlu0 %2615
    %vm2617 = vcmp.eq.s32.totalorder %v2607, 1
    %vm2618 = vcmp.eq.s32.totalorder %v2610, 1
    %vm2619 = vcmp.eq.s32.totalorder %v2613, 1
    %vm2620 = vcmp.eq.s32.totalorder %v2616, 1
    %v2621 = vsel %vm2617, %v2499, 0.0
    %v2622 = vsel %vm2618, %v2501, 0.0
    %v2623 = vsel %vm2619, %v2504, 0.0
    %v2624 = vsel %vm2620, %v2506, 0.0
    %v2625 = vmul.f32 %v2621, 1.442695
    %v2626 = vpow.pop %v2625
    %v2627 = vmul.f32 %v2622, 1.442695
    %v2628 = vpow.pop %v2627
    %v2629 = vmul.f32 %v2623, 1.442695
    %v2630 = vpow.pop %v2629
    %v2631 = vmul.f32 %v2624, 1.442695
    %v2632 = vpow.pop %v2631
    %v2633 = vadd.f32 %v2551, %v2513
    %v2634 = vadd.f32 %v2566, %v2514
    %v2635 = vadd.f32 %v2581, %v2515
    %v2636 = vadd.f32 %v2596, %v2516
    %v2637 = vsel %vm2617, %v2626, %v2633
    %v2638 = vsel %vm2618, %v2628, %v2634
    %v2639 = vsel %vm2619, %v2630, %v2635
    %v2640 = vsel %vm2620, %v2632, %v2636
    %2642 = vset.pattern.permute.xlu0 0
    %2643 = vperm.xlu0 %2642, %v2517
    %v2644 = vpop.permute.xlu0 %2643
    %2647 = vset.pattern.permute.xlu0 0
    %2648 = vperm.xlu0 %2647, %v2518
    %v2649 = vpop.permute.xlu0 %2648
    %2652 = vset.pattern.permute.xlu0 0
    %2653 = vperm.xlu0 %2652, %v2519
    %v2654 = vpop.permute.xlu0 %2653
    %2657 = vset.pattern.permute.xlu0 0
    %2658 = vperm.xlu0 %2657, %v2520
    %v2659 = vpop.permute.xlu0 %2658
    %v2661 = vmul.f32 %v2637, %v2644
    %v2662 = vmul.f32 %v2638, %v2649
    %v2663 = vmul.f32 %v2639, %v2654
    %v2664 = vmul.f32 %v2640, %v2659
    %2665 = vst.msk [vmem:[%s67] sm:$0xff] %vm2367, %v2661
    %2666 = vst.msk [vmem:[%s67 + $0x8] sm:$0xff] %vm2367, %v2662
    %2667 = vst.msk [vmem:[%s67 + $0x10] sm:$0xff] %vm2367, %v2663
    %2668 = vst.msk [vmem:[%s67 + $0x18] sm:$0x7] %vm2511, %v2664
    %v2669 = vld [vmem:[#allocation18] sm:$0xf]
    %v2670 = vld [vmem:[#allocation18 + $0x4] sm:$0xf]
    %v2671 = vld [vmem:[#allocation19] sm:$0xff]
    %v2672 = vld [vmem:[#allocation19 + $0x8] sm:$0xff]
    %2674 = vset.pattern.permute.xlu0 0
    %2675 = vperm.xlu0 %2674, %v2671
    %v2676 = vpop.permute.xlu0 %2675
    %2679 = vset.pattern.permute.xlu0 0
    %2680 = vperm.xlu0 %2679, %v2672
    %v2681 = vpop.permute.xlu0 %2680
    %v2685 = vunpack.c.l.b16 %v2669
    %v2686 = vunpack.c.l.b16 %v2670
    %v2687 = vpack.c.b16 %v2686, %v2685
    %v2689 = vsel %vm2367, %v2687, 0
    %2691 = vmatpush.bf16.msra.mxu0 0
    %2692 = vmatpush.bf16.msra.mxu0 0
    %2693 = vmatpush.bf16.msra.mxu0 0
    %2694 = vmatpush.bf16.msra.mxu0 0
    %2695 = vmatpush.bf16.msra.mxu0 0
    %2696 = vmatpush.bf16.msra.mxu0 0
    %2697 = vmatpush.bf16.msra.mxu0 %v2448
    %2698 = vmatpush.bf16.msra.mxu0 %v2447
    %2699 = vmatmul.bf16.gmra.mxu0 %v2689
    %v2700 = vpop.f32.mrf.mxu0
    %v2701 = vadd.f32 %v2676, %v2700
    %v2702 = vpop.f32.mrf.mxu0
    %v2703 = vadd.f32 %v2681, %v2702
    %2704 = vdwg.mxu0
    %vm2705 = vcmp.gt.f32.partialorder %v2701, 0.0
    %vm2706 = vcmp.gt.f32.partialorder %v2703, 0.0
    %v2707 = vmul.f32 %v2701, 0.1
    %v2708 = vmul.f32 %v2703, 0.1
    %v2709 = vsel %vm2705, %v2701, %v2707
    %v2710 = vsel %vm2706, %v2703, %v2708
    %v2711 = vpack.c.bf16 %v2710, %v2709
    %v2712 = vld [vmem:[#allocation33] sm:$0xf]
    %v2713 = vld [vmem:[#allocation33 + $0x4] sm:$0xf]
    %v2714 = vld [vmem:[#allocation33 + $0x8] sm:$0xf]
    %v2715 = vld [vmem:[#allocation33 + $0xc] sm:$0xf]
    %v2720 = vunpack.c.l.b16 %v2712
    %v2721 = vunpack.c.l.b16 %v2713
    %v2722 = vunpack.c.l.b16 %v2714
    %v2723 = vunpack.c.l.b16 %v2715
    %v2724 = vpack.c.b16 %v2721, %v2720
    %v2725 = vpack.c.b16 %v2723, %v2722
    %v2729 = vsel %vm2367, %v2711, 0
    %2731 = vmatpush.bf16.msra.mxu0 0
    %2732 = vmatpush.bf16.msra.mxu0 0
    %2733 = vmatpush.bf16.msra.mxu0 0
    %2734 = vmatpush.bf16.msra.mxu0 0
    %2735 = vmatpush.bf16.msra.mxu0 0
    %2736 = vmatpush.bf16.msra.mxu0 0
    %2737 = vmatpush.bf16.msra.mxu0 %v2725
    %2738 = vmatpush.bf16.msra.mxu0 %v2724
    %2739 = vmatmul.bf16.gmra.mxu0 %v2729
    %v2740 = vpop.f32.mrf.mxu0
    %v2741 = vadd.f32 0.0, %v2740
    %v2742 = vpop.f32.mrf.mxu0
    %v2743 = vadd.f32 0.0, %v2742
    %2744 = vdwg.mxu0
    %2745 = vrot.lane.b32.xlu0 %v2741, 9
    %v2746 = vpop.permute.xlu0 %2745
    %2747 = vrot.lane.b32.xlu0 %v2743, 9
    %v2748 = vpop.permute.xlu0 %2747
    %v2749 = vld [vmem:[#allocation28] sm:$0x1]
    %v2750 = vperm.slane %v2749, 0
    %v2751 = vmul.f32 %v2746, %v2750
    %v2752 = vmul.f32 %v2748, %v2750
    %v2753 = vmul.f32 %v1761, %v2750
    %v2754 = vmul.f32 %v1763, %v2750
    %2755 = vrot.lane.b32.xlu0 %v2741, 8
    %v2756 = vpop.permute.xlu0 %2755
    %2757 = vrot.lane.b32.xlu0 %v2743, 8
    %v2758 = vpop.permute.xlu0 %2757
    %v2759 = vld [vmem:[#allocation28 + $0x1] sm:$0x1]
    %v2760 = vperm.slane %v2759, 0
    %v2761 = vmul.f32 %v2756, %v2760
    %v2762 = vmul.f32 %v2758, %v2760
    %v2763 = vmul.f32 %v1767, %v2760
    %v2764 = vmul.f32 %v1769, %v2760
    %2765 = vrot.lane.b32.xlu0 %v2741, 7
    %v2766 = vpop.permute.xlu0 %2765
    %2767 = vrot.lane.b32.xlu0 %v2743, 7
    %v2768 = vpop.permute.xlu0 %2767
    %v2769 = vld [vmem:[#allocation28 + $0x2] sm:$0x1]
    %v2770 = vperm.slane %v2769, 0
    %v2771 = vmul.f32 %v2766, %v2770
    %v2772 = vmul.f32 %v2768, %v2770
    %v2773 = vmul.f32 %v1773, %v2770
    %v2774 = vmul.f32 %v1775, %v2770
    %2775 = vrot.lane.b32.xlu0 %v2741, 1
    %v2776 = vpop.permute.xlu0 %2775
    %2777 = vrot.lane.b32.xlu0 %v2743, 1
    %v2778 = vpop.permute.xlu0 %2777
    %v2779 = vld [vmem:[#allocation28 + $0x3] sm:$0x1]
    %v2780 = vperm.slane %v2779, 0
    %v2781 = vmul.f32 %v2776, %v2780
    %v2782 = vmul.f32 %v2778, %v2780
    %v2783 = vmul.f32 %v1779, %v2780
    %v2784 = vmul.f32 %v1781, %v2780
    %2785 = vrot.lane.b32.xlu0 %v2741, 127
    %v2786 = vpop.permute.xlu0 %2785
    %2787 = vrot.lane.b32.xlu0 %v2743, 127
    %v2788 = vpop.permute.xlu0 %2787
    %v2789 = vld [vmem:[#allocation28 + $0x5] sm:$0x1]
    %v2790 = vperm.slane %v2789, 0
    %v2791 = vmul.f32 %v2786, %v2790
    %v2792 = vmul.f32 %v2788, %v2790
    %v2793 = vmul.f32 %v1785, %v2790
    %v2794 = vmul.f32 %v1787, %v2790
    %2795 = vrot.lane.b32.xlu0 %v2741, 121
    %v2796 = vpop.permute.xlu0 %2795
    %2797 = vrot.lane.b32.xlu0 %v2743, 121
    %v2798 = vpop.permute.xlu0 %2797
    %v2799 = vld [vmem:[#allocation28 + $0x6] sm:$0x1]
    %v2800 = vperm.slane %v2799, 0
    %v2801 = vmul.f32 %v2796, %v2800
    %v2802 = vmul.f32 %v2798, %v2800
    %v2803 = vmul.f32 %v1791, %v2800
    %v2804 = vmul.f32 %v1793, %v2800
    %2805 = vrot.lane.b32.xlu0 %v2741, 120
    %v2806 = vpop.permute.xlu0 %2805
    %2807 = vrot.lane.b32.xlu0 %v2743, 120
    %v2808 = vpop.permute.xlu0 %2807
    %v2809 = vld [vmem:[#allocation28 + $0x7] sm:$0x1]
    %v2810 = vperm.slane %v2809, 0
    %v2811 = vmul.f32 %v2806, %v2810
    %v2812 = vmul.f32 %v2808, %v2810
    %v2813 = vmul.f32 %v1797, %v2810
    %v2814 = vmul.f32 %v1799, %v2810
    %2815 = vrot.lane.b32.xlu0 %v2741, 119
    %v2816 = vpop.permute.xlu0 %2815
    %2817 = vrot.lane.b32.xlu0 %v2743, 119
    %v2818 = vpop.permute.xlu0 %2817
    %v2819 = vld [vmem:[#allocation28 + $0x8] sm:$0x1]
    %v2820 = vperm.slane %v2819, 0
    %v2821 = vmul.f32 %v2816, %v2820
    %v2822 = vmul.f32 %v2818, %v2820
    %v2823 = vmul.f32 %v1803, %v2820
    %v2824 = vmul.f32 %v1805, %v2820
    %v2825 = vld [vmem:[#allocation21] sm:$0xff]
    %v2826 = vld [vmem:[#allocation21 + $0x8] sm:$0xf]
    %v2827 = vld [vmem:[#allocation21 + $0xc] sm:$0xff]
    %v2828 = vld [vmem:[#allocation21 + $0x14] sm:$0xf]
    %v2829 = vpack.c.bf16 %v2752, %v2751
    %v2830 = vpack.c.bf16 %v2754, %v2753
    %v2831 = vpack.c.bf16 %v2762, %v2761
    %v2832 = vpack.c.bf16 %v2764, %v2763
    %v2833 = vpack.c.bf16 %v2772, %v2771
    %v2834 = vpack.c.bf16 %v2774, %v2773
    %v2835 = vpack.c.bf16 %v2782, %v2781
    %v2836 = vpack.c.bf16 %v2784, %v2783
    %v2837 = vpack.c.bf16 %v2743, %v2741
    %v2838 = vpack.c.bf16 %v2792, %v2791
    %v2839 = vpack.c.bf16 %v2794, %v2793
    %v2840 = vpack.c.bf16 %v2802, %v2801
    %v2841 = vpack.c.bf16 %v2804, %v2803
    %v2842 = vpack.c.bf16 %v2812, %v2811
    %v2843 = vpack.c.bf16 %v2814, %v2813
    %v2844 = vpack.c.bf16 %v2822, %v2821
    %v2845 = vpack.c.bf16 %v2824, %v2823
    %v2846 = vld [vmem:[#allocation22] sm:$0xff]
    %v2847 = vld [vmem:[#allocation22 + $0x8] sm:$0xff]
    %2849 = vset.pattern.permute.xlu0 0
    %2850 = vperm.xlu0 %2849, %v2846
    %v2851 = vpop.permute.xlu0 %2850
    %2854 = vset.pattern.permute.xlu0 0
    %2855 = vperm.xlu0 %2854, %v2847
    %v2856 = vpop.permute.xlu0 %2855
    %v2862 = vunpack.c.l.b16 %v2825
    %v2863 = vunpack.c.h.b16 %v2825
    %v2864 = vunpack.c.l.b16 %v2826
    %v2865 = vunpack.c.l.b16 %v2827
    %v2866 = vunpack.c.h.b16 %v2827
    %v2867 = vunpack.c.l.b16 %v2828
    %v2868 = vpack.c.b16 %v2865, %v2862
    %v2869 = vpack.c.b16 %v2866, %v2863
    %v2870 = vpack.c.b16 %v2867, %v2864
    %v2874 = vsel %vm2367, %v2870, 0
    %2876 = vmatpush.bf16.msra.mxu0 %v2836
    %2877 = vmatpush.bf16.msra.mxu0 %v2835
    %2878 = vmatpush.bf16.msra.mxu0 %v2834
    %2879 = vmatpush.bf16.msra.mxu0 %v2833
    %2880 = vmatpush.bf16.msra.mxu0 %v2832
    %2881 = vmatpush.bf16.msra.mxu0 %v2831
    %2882 = vmatpush.bf16.msra.mxu0 %v2830
    %2883 = vmatpush.bf16.msra.mxu0 %v2829
    %2884 = vmatmul.bf16.gmra.mxu0 %v2868
    %v2885 = vpop.f32.mrf.mxu0
    %v2886 = vadd.f32 %v2851, %v2885
    %v2887 = vpop.f32.mrf.mxu0
    %v2888 = vadd.f32 %v2856, %v2887
    %2889 = vdwg.mxu0
    %2890 = vmatpush.bf16.msra.mxu0 %v2843
    %2891 = vmatpush.bf16.msra.mxu0 %v2842
    %2892 = vmatpush.bf16.msra.mxu0 %v2841
    %2893 = vmatpush.bf16.msra.mxu0 %v2840
    %2894 = vmatpush.bf16.msra.mxu0 %v2839
    %2895 = vmatpush.bf16.msra.mxu0 %v2838
    %2896 = vmatpush.bf16.msra.mxu0 %v1816
    %2897 = vmatpush.bf16.msra.mxu0 %v2837
    %2898 = vmatmul.bf16.gmra.mxu0 %v2869
    %v2899 = vpop.f32.mrf.mxu0
    %v2900 = vadd.f32 %v2886, %v2899
    %v2901 = vpop.f32.mrf.mxu0
    %v2902 = vadd.f32 %v2888, %v2901
    %2903 = vdwg.mxu0
    %2904 = vmatpush.bf16.msra.mxu0 0
    %2905 = vmatpush.bf16.msra.mxu0 0
    %2906 = vmatpush.bf16.msra.mxu0 0
    %2907 = vmatpush.bf16.msra.mxu0 0
    %2908 = vmatpush.bf16.msra.mxu0 0
    %2909 = vmatpush.bf16.msra.mxu0 0
    %2910 = vmatpush.bf16.msra.mxu0 %v2845
    %2911 = vmatpush.bf16.msra.mxu0 %v2844
    %2912 = vmatmul.bf16.gmra.mxu0 %v2874
    %v2913 = vpop.f32.mrf.mxu0
    %v2914 = vadd.f32 %v2900, %v2913
    %v2915 = vpop.f32.mrf.mxu0
    %v2916 = vadd.f32 %v2902, %v2915
    %2917 = vdwg.mxu0
    %vm2918 = vcmp.gt.f32.partialorder %v2914, 0.0
    %vm2919 = vcmp.gt.f32.partialorder %v2916, 0.0
    %v2920 = vmul.f32 %v2914, 0.1
    %v2921 = vmul.f32 %v2916, 0.1
    %v2922 = vsel %vm2918, %v2914, %v2920
    %v2923 = vsel %vm2919, %v2916, %v2921
    %v2924 = vld [vmem:[#allocation24] sm:$0xf]
    %v2925 = vld [vmem:[#allocation24 + $0x4] sm:$0xf]
    %v2926 = vld [vmem:[#allocation24 + $0x8] sm:$0xf]
    %v2927 = vld [vmem:[#allocation24 + $0xc] sm:$0x3]
    %v2928 = vpack.c.bf16 %v2923, %v2922
    %v2929 = vld [vmem:[#allocation25] sm:$0xff]
    %v2930 = vld [vmem:[#allocation25 + $0x8] sm:$0xff]
    %v2931 = vld [vmem:[#allocation25 + $0x10] sm:$0xff]
    %v2932 = vld [vmem:[#allocation25 + $0x18] sm:$0x7]
    %2934 = vset.pattern.permute.xlu0 0
    %2935 = vperm.xlu0 %2934, %v2929
    %v2936 = vpop.permute.xlu0 %2935
    %2939 = vset.pattern.permute.xlu0 0
    %2940 = vperm.xlu0 %2939, %v2930
    %v2941 = vpop.permute.xlu0 %2940
    %2944 = vset.pattern.permute.xlu0 0
    %2945 = vperm.xlu0 %2944, %v2931
    %v2946 = vpop.permute.xlu0 %2945
    %2949 = vset.pattern.permute.xlu0 0
    %2950 = vperm.xlu0 %2949, %v2932
    %v2951 = vpop.permute.xlu0 %2950
    %v2957 = vunpack.c.l.b16 %v2924
    %v2958 = vunpack.c.l.b16 %v2925
    %v2959 = vunpack.c.l.b16 %v2926
    %v2960 = vunpack.c.l.b16 %v2927
    %v2961 = vpack.c.b16 %v2958, %v2957
    %v2962 = vpack.c.b16 %v2960, %v2959
    %v2964 = vsel %vm1648, %v2961, 0
    %v2967 = vsel %vm1648, %v2962, 0
    %2969 = vmatpush.bf16.msra.mxu0 0
    %2970 = vmatpush.bf16.msra.mxu0 0
    %2971 = vmatpush.bf16.msra.mxu0 0
    %2972 = vmatpush.bf16.msra.mxu0 0
    %2973 = vmatpush.bf16.msra.mxu0 0
    %2974 = vmatpush.bf16.msra.mxu0 0
    %2975 = vmatpush.bf16.msra.mxu0 0
    %2976 = vmatpush.bf16.msra.mxu0 %v2928
    %2977 = vmatmul.bf16.gmra.mxu0 %v2964
    %v2978 = vpop.f32.mrf.mxu0
    %v2979 = vadd.f32 %v2936, %v2978
    %v2980 = vpop.f32.mrf.mxu0
    %v2981 = vadd.f32 %v2941, %v2980
    %2982 = vmatmul.bf16.gmra.mxu0 %v2967
    %v2983 = vpop.f32.mrf.mxu0
    %v2984 = vadd.f32 %v2946, %v2983
    %v2985 = vpop.f32.mrf.mxu0
    %v2986 = vadd.f32 %v2951, %v2985
    %2987 = vdwg.mxu0
    %2988 = vst [vmem:[%s69] sm:$0xff] %v2979
    %2989 = vst [vmem:[%s69 + $0x8] sm:$0xff] %v2981
    %2990 = vst [vmem:[%s69 + $0x10] sm:$0xff] %v2984
    %2991 = vst [vmem:[%s69 + $0x18] sm:$0x7] %v2986
    %v2992 = vld [vmem:[#allocation39] sm:$0xff]
    %v2993 = vld [vmem:[#allocation39 + $0x8] sm:$0xff]
    %v2994 = vld [vmem:[#allocation39 + $0x10] sm:$0xff]
    %v2995 = vld [vmem:[#allocation39 + $0x18] sm:$0x7]
    %v2996 = vld [vmem:[#allocation40] sm:$0xff]
    %v2997 = vld [vmem:[#allocation40 + $0x8] sm:$0xff]
    %v2998 = vld [vmem:[#allocation40 + $0x10] sm:$0xff]
    %v2999 = vld [vmem:[#allocation40 + $0x18] sm:$0x7]
    %v3000 = vxor.u32 %v2979, 2147483648
    %v3001 = vxor.u32 %v2981, 2147483648
    %v3002 = vxor.u32 %v2984, 2147483648
    %v3003 = vxor.u32 %v2986, 2147483648
    %v3004 = vmul.f32 %v3000, 1.442695
    %v3005 = vpow.pop %v3004
    %v3006 = vmul.f32 %v3001, 1.442695
    %v3007 = vpow.pop %v3006
    %v3008 = vmul.f32 %v3002, 1.442695
    %v3009 = vpow.pop %v3008
    %v3010 = vmul.f32 %v3003, 1.442695
    %v3011 = vpow.pop %v3010
    %v3012 = vadd.f32 %v3005, 1.0
    %v3013 = vadd.f32 %v3007, 1.0
    %v3014 = vadd.f32 %v3009, 1.0
    %v3015 = vadd.f32 %v3011, 1.0
    %v3016 = vrcp.pop %v3012
    %v3017 = vmul.f32 %v3012, %v3016
    %v3018 = vsub.f32 1.0, %v3017
    %v3019 = vmul.f32 %v3016, %v3018
    %v3020 = vadd.f32 %v3016, %v3019
    %vm3021 = vweird.f32 %v3012
    %vm3022 = vweird.f32 %v3016
    %vm3023 = vmor %vm3021, %vm3022
    %v3024 = vsel %vm3023, %v3016, %v3020
    %v3025 = vand.u32 2147483647, %v3012
    %vm3026 = vcmp.eq.f32.partialorder %v3025, 8.507059e+37
    %v3027 = vand.u32 %v3012, 2147483648
    %v3028 = vor.u32 1.1754944e-38, %v3027
    %v3029 = vsel %vm3026, %v3028, %v3024
    %v3030 = vmul.f32 1.0, %v3029
    %v3031 = vrcp.pop %v3013
    %v3032 = vmul.f32 %v3013, %v3031
    %v3033 = vsub.f32 1.0, %v3032
    %v3034 = vmul.f32 %v3031, %v3033
    %v3035 = vadd.f32 %v3031, %v3034
    %vm3036 = vweird.f32 %v3013
    %vm3037 = vweird.f32 %v3031
    %vm3038 = vmor %vm3036, %vm3037
    %v3039 = vsel %vm3038, %v3031, %v3035
    %v3040 = vand.u32 2147483647, %v3013
    %vm3041 = vcmp.eq.f32.partialorder %v3040, 8.507059e+37
    %v3042 = vand.u32 %v3013, 2147483648
    %v3043 = vor.u32 1.1754944e-38, %v3042
    %v3044 = vsel %vm3041, %v3043, %v3039
    %v3045 = vmul.f32 1.0, %v3044
    %v3046 = vrcp.pop %v3014
    %v3047 = vmul.f32 %v3014, %v3046
    %v3048 = vsub.f32 1.0, %v3047
    %v3049 = vmul.f32 %v3046, %v3048
    %v3050 = vadd.f32 %v3046, %v3049
    %vm3051 = vweird.f32 %v3014
    %vm3052 = vweird.f32 %v3046
    %vm3053 = vmor %vm3051, %vm3052
    %v3054 = vsel %vm3053, %v3046, %v3050
    %v3055 = vand.u32 2147483647, %v3014
    %vm3056 = vcmp.eq.f32.partialorder %v3055, 8.507059e+37
    %v3057 = vand.u32 %v3014, 2147483648
    %v3058 = vor.u32 1.1754944e-38, %v3057
    %v3059 = vsel %vm3056, %v3058, %v3054
    %v3060 = vmul.f32 1.0, %v3059
    %v3061 = vrcp.pop %v3015
    %v3062 = vmul.f32 %v3015, %v3061
    %v3063 = vsub.f32 1.0, %v3062
    %v3064 = vmul.f32 %v3061, %v3063
    %v3065 = vadd.f32 %v3061, %v3064
    %vm3066 = vweird.f32 %v3015
    %vm3067 = vweird.f32 %v3061
    %vm3068 = vmor %vm3066, %vm3067
    %v3069 = vsel %vm3068, %v3061, %v3065
    %v3070 = vand.u32 2147483647, %v3015
    %vm3071 = vcmp.eq.f32.partialorder %v3070, 8.507059e+37
    %v3072 = vand.u32 %v3015, 2147483648
    %v3073 = vor.u32 1.1754944e-38, %v3072
    %v3074 = vsel %vm3071, %v3073, %v3069
    %v3075 = vmul.f32 1.0, %v3074
    %v3076 = vsel %vm2617, %v2979, 0.0
    %v3077 = vsel %vm2618, %v2981, 0.0
    %v3078 = vsel %vm2619, %v2984, 0.0
    %v3079 = vsel %vm2620, %v2986, 0.0
    %v3080 = vmul.f32 %v3076, 1.442695
    %v3081 = vpow.pop %v3080
    %v3082 = vmul.f32 %v3077, 1.442695
    %v3083 = vpow.pop %v3082
    %v3084 = vmul.f32 %v3078, 1.442695
    %v3085 = vpow.pop %v3084
    %v3086 = vmul.f32 %v3079, 1.442695
    %v3087 = vpow.pop %v3086
    %v3088 = vadd.f32 %v3030, %v2992
    %v3089 = vadd.f32 %v3045, %v2993
    %v3090 = vadd.f32 %v3060, %v2994
    %v3091 = vadd.f32 %v3075, %v2995
    %v3092 = vsel %vm2617, %v3081, %v3088
    %v3093 = vsel %vm2618, %v3083, %v3089
    %v3094 = vsel %vm2619, %v3085, %v3090
    %v3095 = vsel %vm2620, %v3087, %v3091
    %3097 = vset.pattern.permute.xlu0 0
    %3098 = vperm.xlu0 %3097, %v2996
    %v3099 = vpop.permute.xlu0 %3098
    %3102 = vset.pattern.permute.xlu0 0
    %3103 = vperm.xlu0 %3102, %v2997
    %v3104 = vpop.permute.xlu0 %3103
    %3107 = vset.pattern.permute.xlu0 0
    %3108 = vperm.xlu0 %3107, %v2998
    %v3109 = vpop.permute.xlu0 %3108
    %3112 = vset.pattern.permute.xlu0 0
    %3113 = vperm.xlu0 %3112, %v2999
    %v3114 = vpop.permute.xlu0 %3113
    %v3116 = vmul.f32 %v3092, %v3099
    %v3117 = vmul.f32 %v3093, %v3104
    %v3118 = vmul.f32 %v3094, %v3109
    %v3119 = vmul.f32 %v3095, %v3114
    %3120 = vst [vmem:[%s71] sm:$0xff] %v3116
    %3121 = vst [vmem:[%s71 + $0x8] sm:$0xff] %v3117
    %3122 = vst [vmem:[%s71 + $0x10] sm:$0xff] %v3118
    %3123 = vst [vmem:[%s71 + $0x18] sm:$0x7] %v3119
    // Predicated region
    $region234: #{_lambda_.1} parent=1 // pred_check
      _
    $region235: #{_lambda_.1} parent=1 // pred_check_branch
      %3125 = sbr.rel (0) target = $region237
    $region236: #{_lambda_.1} parent=1 // pred_region
      _
    $region237: #{_lambda_.1} parent=1 // pred_fallthru
      _
    // Predicated region
    $region238: #{_lambda_.1} parent=1 // pred_check
      _
    $region239: #{_lambda_.1} parent=1 // pred_check_branch
      %3127 = sbr.rel (0) target = $region241
    $region240: #{_lambda_.1} parent=1 // pred_region
      _
    $region241: #{_lambda_.1} parent=1 // pred_fallthru
      _
    // Predicated region
    $region242: #{_lambda_.1} parent=1 // pred_check
      _
    $region243: #{_lambda_.1} parent=1 // pred_check_branch
      %3129 = sbr.rel (0) target = $region245
    $region244: #{_lambda_.1} parent=1 // pred_region
      _
    $region245: #{_lambda_.1} parent=1 // pred_fallthru
      _
    // Predicated region
    $region246: #{_lambda_.1} parent=1 // pred_check
      _
    $region247: #{_lambda_.1} parent=1 // pred_check_branch
      %3131 = sbr.rel (0) target = $region249
    $region248: #{_lambda_.1} parent=1 // pred_region
      _
    $region249: #{_lambda_.1} parent=1 // pred_fallthru
      _
    // Predicated region
    $region250: #{_lambda_.1} parent=1 // pred_check
      _
    $region251: #{_lambda_.1} parent=1 // pred_check_branch
      %3133 = sbr.rel (0) target = $region253
    $region252: #{_lambda_.1} parent=1 // pred_region
      _
    $region253: #{_lambda_.1} parent=1 // pred_fallthru
      _
    // Predicated region
    $region254: #{_lambda_.1} parent=1 // pred_check
      _
    $region255: #{_lambda_.1} parent=1 // pred_check_branch
      %3135 = sbr.rel (0) target = $region257
    $region256: #{_lambda_.1} parent=1 // pred_region
      _
    $region257: #{_lambda_.1} parent=1 // pred_fallthru
      _
    // Predicated region
    $region258: #{_lambda_.1} parent=1 // pred_check
      _
    $region259: #{_lambda_.1} parent=1 // pred_check_branch
      %3137 = sbr.rel (0) target = $region261
    $region260: #{_lambda_.1} parent=1 // pred_region
      _
    $region261: #{_lambda_.1} parent=1 // pred_fallthru
      _
    // Predicated region
    $region262: #{_lambda_.1} parent=1 // pred_check
      _
    $region263: #{_lambda_.1} parent=1 // pred_check_branch
      %3139 = sbr.rel (0) target = $region265
    $region264: #{_lambda_.1} parent=1 // pred_region
      _
    $region265: #{_lambda_.1} parent=1 // pred_fallthru
      _
    %3140 = vsyncpa [#allocation3], 1
    %3141 = vsyncpa [#allocation5], 1
    %3142 = vsyncpa [#allocation8], 1
    %3143 = vsyncpa [#allocation11], 1
    %3144 = vsyncpa [#allocation14], 1
    %3145 = vsyncpa [#allocation17], 1
    %3146 = vsyncpa [#allocation20], 1
    %3147 = vsyncpa [#allocation23], 1
    %3148 = vsyncpa [#allocation26], 1
    %3149 = vsyncpa [#allocation29], 1
    %3150 = vsyncpa [#allocation32], 1
    %3151 = vsyncpa [#allocation35], 1
    %3152 = vsyncpa [#allocation38], 1
    %3153 = vsyncpa [#allocation41], 1

</llo_original>
